<compile_context>
chip_gen: v7x
topology: tpu7x:2x2x1
jax: 0.10.0
libtpu: 0.0.40
codegen_flags: <defaults>
</compile_context>

<pallas_src>
import functools

import jax
import jax.numpy as jnp
from jax.experimental import pallas as pl
from jax.experimental.pallas import tpu as pltpu


def _bfgcn_kernel(x_ref, z_ref, A_ref, eye_ref, bmask_ref, beye_ref,
                  sel_ref, vcls_ref,
                  aw1_ref, ab1_ref, aw2_ref,
                  ws_ref, wf_ref,
                  attw1_ref, attb1_ref, attw2_ref,
                  bn1s_ref, bn1b_ref, bns_ref, bnb_ref,
                  bcls_ref, cbns_ref, cbnb_ref, wo_ref, bo_ref,
                  out_ref, *, B, N, Kp, K, O, pool):
    """Whole-batch fused BFGCN forward (eval-mode BN / dropout)."""
    f32 = jnp.float32
    BN = B * N
    Np = N // pool

    def dot(a, b):
        return jnp.dot(a, b, preferred_element_type=f32)

    # ---- BN1 (BatchNorm1d(F), eval) over the feature axis ----
    X = x_ref[...] * bn1s_ref[...] + bn1b_ref[...]                       # (BN, F)

    # ---- Attentionadj over the Kp PLV adjacency slices: two matmuls for the
    #      whole batch and all Kp slices, then a lane-cheap softmax over Kp ----
    zflat = z_ref[...]                                                   # (Kp*BN, N)
    h = jnp.tanh(dot(zflat, aw1_ref[...]) + ab1_ref[...])                # (Kp*BN, Hp)
    logit = dot(h, aw2_ref[...])                                         # (Kp*BN, 1)

    ls = [logit[k * BN:(k + 1) * BN, :] for k in range(Kp)]              # (BN, 1) each
    m = ls[0]
    for k in range(1, Kp):
        m = jnp.maximum(m, ls[k])
    es = [jnp.exp(l - m) for l in ls]
    den = es[0]
    for k in range(1, Kp):
        den = den + es[k]
    inv = pl.reciprocal(den, approx=True)                                # (BN, 1)
    fA = (es[0] * inv) * zflat[0:BN, :]
    for k in range(1, Kp):
        fA = fA + (es[k] * inv) * zflat[k * BN:(k + 1) * BN, :]          # (BN, N)

    # ---- normalize_A(fadj): 3-D torch.sum(A, 1) == per-batch column sums.
    #      D @ A @ D as broadcast row/column scaling (no diag matmuls). ----
    bmask = bmask_ref[...]                                               # (BN, BN)
    fA = jnp.maximum(fA, 0.0)
    colsum = dot(bmask, fA)                                              # (BN, N)
    dlane = jax.lax.rsqrt(colsum + 1e-10)                                # d[b, j] per row
    rowscale = jnp.sum(dlane * beye_ref[...], axis=1, keepdims=True)     # d[b, i]  (BN, 1)
    Lf = fA * dlane * rowscale                                           # (BN, N) stacked

    # ---- normalize_A(A + I): 2-D torch.sum(A, 1) == row sums (batch free) ----
    eyeN = eye_ref[...]
    sA = jnp.maximum(A_ref[...] + eyeN, 0.0)
    drow = jax.lax.rsqrt(jnp.sum(sA, axis=1, keepdims=True) + 1e-10)     # (N, 1)
    Ls = dot(sA * drow, eyeN * drow)                                     # (N, N)

    # ---- block-diagonal Laplacians: one matmul then covers the whole batch ----
    def block_diag(stacked):                                             # (BN, N) -> (BN, BN)
        return jnp.concatenate([stacked] * B, axis=1) * bmask

    Lf_bd = block_diag(Lf)
    Ls_bd = block_diag(jnp.concatenate([Ls] * B, axis=0))

    # ---- Chebyshev supports [I, L, L^2, ...] (matrix powers, exactly as in
    #      generate_cheby_adj) applied to X, concatenated over k ----
    def cheby_feats(Lbd):
        feats = [X]
        S = None
        for k in range(1, K):
            S = Lbd if k == 1 else dot(S, Lbd)
            feats.append(dot(S, X))
        return jnp.concatenate(feats, axis=1)                            # (BN, K*F)

    Fs = cheby_feats(Ls_bd)
    Ff = cheby_feats(Lf_bd)

    # ---- GCN branches: [SGCNi | CGCN] weights stacked along lanes -> one
    #      (BN, K*F) @ (K*F, 2O) matmul per Laplacian ----
    outs_s = dot(Fs, ws_ref[...])                                        # (BN, 2O)
    outs_f = dot(Ff, wf_ref[...])                                        # (BN, 2O)
    emb1 = jnp.maximum(outs_s[:, :O], 0.0)
    com1 = jnp.maximum(outs_s[:, O:], 0.0)
    emb2 = jnp.maximum(outs_f[:, :O], 0.0)
    com2 = jnp.maximum(outs_f[:, O:], 0.0)
    Xcom = 0.5 * (com1 + com2)

    # ---- Attention over the 3 branch embeddings (stacked along sublanes) ----
    E = jnp.concatenate([emb1, emb2, Xcom], axis=0)                      # (3*BN, O)
    hb = jnp.tanh(dot(E, attw1_ref[...]) + attb1_ref[...])               # (3*BN, H)
    lb = dot(hb, attw2_ref[...])                                         # (3*BN, 1)
    l0 = lb[0:BN, :]
    l1 = lb[BN:2 * BN, :]
    l2 = lb[2 * BN:3 * BN, :]
    bm = jnp.maximum(jnp.maximum(l0, l1), l2)
    e0 = jnp.exp(l0 - bm)
    e1 = jnp.exp(l1 - bm)
    e2 = jnp.exp(l2 - bm)
    binv = pl.reciprocal(e0 + e1 + e2, approx=True)
    attn = (e0 * emb1 + e1 * emb2 + e2 * Xcom) * binv                    # (BN, O)

    # ---- relu(BatchNorm1d(N), eval) ----
    act = jnp.maximum(attn * bns_ref[...] + bnb_ref[...], 0.0)           # (BN, O)

    # ---- AvgPool2d(pool) + flatten + class_classifier Linear, folded into the
    #      precomputed row-selector (sel) and pooled-weight (vcls) constants ----
    Ch = cbns_ref.shape[1]
    acc = jnp.zeros((B, Ch), f32)
    for p in range(Np):
        acc = acc + dot(dot(sel_ref[p], act), vcls_ref[p])               # (B, Ch)
    hcls = acc * (1.0 / (pool * pool)) + bcls_ref[...]
    hcls = jnp.maximum(hcls * cbns_ref[...] + cbnb_ref[...], 0.0)        # BN(eval)+ReLU

    # ---- output Linear (domain_classifier branch intentionally not computed) ----
    out_ref[...] = (dot(hcls, wo_ref[...]) + bo_ref[...]).astype(out_ref.dtype)


def init_params(key, *, N, F_, Kp, K, O, Hp, H, pool, Ch, nclass):
    del Kp
    ks = jax.random.split(key, 10)

    def nrm(k, shape, fan):
        return jax.random.normal(k, shape, jnp.float32) * (2.0 / fan) ** 0.5

    eps = 1e-5
    bn_sc = float(1.0 / (1.0 + eps) ** 0.5)   # eval BN with default stats/affine
    Din = (N // pool) * (O // pool)
    return dict(
        A=nrm(ks[0], (N, N), N),
        w_sgcn1=nrm(ks[1], (K, F_, O), F_),
        w_sgcn2=nrm(ks[2], (K, F_, O), F_),
        w_cgcn=nrm(ks[3], (K, F_, O), F_),
        aw1=nrm(ks[4], (N, Hp), N),
        ab1=jnp.zeros((1, Hp), jnp.float32),
        aw2=nrm(ks[5], (Hp, 1), Hp),
        attw1=nrm(ks[6], (O, H), O),
        attb1=jnp.zeros((1, H), jnp.float32),
        attw2=nrm(ks[7], (H, 1), H),
        bn1_scale=jnp.full((1, F_), bn_sc, jnp.float32),
        bn1_shift=jnp.zeros((1, F_), jnp.float32),
        bn_scale=jnp.full((N, 1), bn_sc, jnp.float32),
        bn_shift=jnp.zeros((N, 1), jnp.float32),
        wc=nrm(ks[8], (Din, Ch), Din),
        bc=jnp.zeros((1, Ch), jnp.float32),
        cbn_scale=jnp.full((1, Ch), bn_sc, jnp.float32),
        cbn_shift=jnp.zeros((1, Ch), jnp.float32),
        wo=nrm(ks[9], (Ch, nclass), Ch),
        bo=jnp.zeros((1, nclass), jnp.float32),
        pool=pool,
    )


def bfgcn_forward(params, input_data, fadj, alpha=1.0):
    """class_output of BFGCN.forward.  input_data: [B,1,N,F]; fadj: [B,N,N,Kp]."""
    del alpha                                   # only affects ReverseLayerF backward
    f32 = jnp.float32
    x = input_data[:, 0].astype(f32)            # .squeeze(1) -> (B, N, F)
    B, N, F_ = x.shape
    Kp = fadj.shape[-1]
    K, _, O = params["w_sgcn1"].shape
    Hp = params["aw1"].shape[1]
    H = params["attw1"].shape[1]
    pool = int(params["pool"])
    Np, Op = N // pool, O // pool
    Ch = params["wc"].shape[1]
    nclass = params["wo"].shape[1]
    BN_ = B * N

    # ---- data layout glue (host side) ----
    x2 = x.reshape(BN_, F_)
    # fadj.permute(0,3,1,2) stacked as (Kp*B*N, N): row k*BN + b*N + n
    zflat = jnp.transpose(fadj.astype(f32), (3, 0, 1, 2)).reshape(Kp * BN_, N)

    # ---- hoisted constants (DMA'd once) ----
    eyeN = jnp.eye(N, dtype=f32)
    b_of_r = jnp.arange(BN_) // N
    i_of_r = jnp.arange(BN_) % N
    blockmask = (b_of_r[:, None] == b_of_r[None, :]).astype(f32)          # (BN, BN)
    blockeye = jnp.tile(eyeN, (B, 1))                                     # (BN, N)

    # AvgPool2d(pool) + flatten + classifier Linear folded into constants:
    #   h1 = (1/pool^2) * sum_p (sel[p] @ act) @ vcls[p] + bc
    sel = ((jnp.arange(Np)[:, None, None] == (i_of_r // pool)[None, None, :])
           & (jnp.arange(B)[None, :, None] == b_of_r[None, None, :])).astype(f32)
    pc = (jnp.arange(O)[:, None] // pool
          == jnp.arange(Op)[None, :]).astype(f32)                         # (O, Op)
    wcls3 = params["wc"].reshape(Np, Op, Ch)
    vcls = jnp.einsum("jq,pqc->pjc", pc, wcls3)                           # (Np, O, Ch)

    # per-k GCN weights flattened and [SGCN | CGCN] stacked along the output axis
    ws_cat = jnp.concatenate([params["w_sgcn1"].reshape(K * F_, O),
                              params["w_cgcn"].reshape(K * F_, O)], axis=1)
    wf_cat = jnp.concatenate([params["w_sgcn2"].reshape(K * F_, O),
                              params["w_cgcn"].reshape(K * F_, O)], axis=1)
    bns_t = jnp.tile(params["bn_scale"], (B, 1))                          # (BN, 1)
    bnb_t = jnp.tile(params["bn_shift"], (B, 1))

    inputs = [x2, zflat, params["A"], eyeN, blockmask, blockeye, sel, vcls,
              params["aw1"], params["ab1"], params["aw2"],
              ws_cat, wf_cat,
              params["attw1"], params["attb1"], params["attw2"],
              params["bn1_scale"], params["bn1_shift"], bns_t, bnb_t,
              params["bc"], params["cbn_scale"], params["cbn_shift"],
              params["wo"], params["bo"]]

    def full_spec(a):
        zeros = (0,) * a.ndim
        return pl.BlockSpec(a.shape, lambda i, z=zeros: z)

    in_specs = [full_spec(a) for a in inputs]

    # rough cost hint so XLA schedules this tiny custom call sensibly
    KF = K * F_
    flops = 2.0 * (Kp * BN_ * N * Hp + Kp * BN_ * Hp
                   + BN_ * BN_ * N + N * N * N
                   + 2 * ((K - 1) * BN_ * BN_ * F_ + max(K - 2, 0) * BN_ * BN_ * BN_)
                   + 2 * BN_ * KF * 2 * O
                   + 3 * BN_ * O * H + 3 * BN_ * H
                   + Np * (B * BN_ * O + B * O * Ch)
                   + B * Ch * nclass)
    transcendentals = Kp * BN_ * Hp + 3 * BN_ * H + (Kp + 3) * BN_
    bytes_accessed = sum(int(a.size) * 4 for a in inputs) + B * nclass * 4
    cost = pl.CostEstimate(flops=int(flops),
                           transcendentals=int(transcendentals),
                           bytes_accessed=int(bytes_accessed))

    kernel = functools.partial(_bfgcn_kernel, B=B, N=N, Kp=Kp, K=K, O=O, pool=pool)
    class_output = pl.pallas_call(
        kernel,
        out_shape=jax.ShapeDtypeStruct((B, nclass), f32),
        grid=(1,),
        in_specs=in_specs,
        out_specs=pl.BlockSpec((B, nclass), lambda i: (0, 0)),
        compiler_params=pltpu.CompilerParams(dimension_semantics=("arbitrary",)),
        cost_estimate=cost,
    )(*inputs)
    return class_output


if __name__ == "__main__":
    # Shapes consistent with BFGCN(nclass, xdim=(N, F), kadj=K, num_out=O,
    # att_hidden=H, att_plv_hidden=Hp, classifier_hidden=Ch, avgpool=pool, dropout)
    B, N, F_, Kp = 2, 16, 8, 5
    K, O, Hp, H = 2, 32, 16, 16
    pool, Ch, nclass = 4, 32, 3

    key = jax.random.PRNGKey(0)
    kparam, kx, kf = jax.random.split(key, 3)
    params = init_params(kparam, N=N, F_=F_, Kp=Kp, K=K, O=O, Hp=Hp, H=H,
                         pool=pool, Ch=Ch, nclass=nclass)
    input_data = jax.random.normal(kx, (B, 1, N, F_), jnp.float32)
    fadj = jax.random.uniform(kf, (B, N, N, Kp), jnp.float32)

    out = bfgcn_forward(params, input_data, fadj, alpha=1.0)
    out = jax.block_until_ready(out)
    assert out.shape == (B, nclass) and out.dtype == jnp.float32
    print("KERNEL_OK")
</pallas_src>

<mosaic_0001>
module attributes {stable_mosaic.version = 11 : i64} {
  func.func @_bfgcn_kernel(%arg0: i32, %arg1: memref<32x8xf32, #tpu.memory_space<vmem>>, %arg2: memref<160x16xf32, #tpu.memory_space<vmem>>, %arg3: memref<16x16xf32, #tpu.memory_space<vmem>>, %arg4: memref<16x16xf32, #tpu.memory_space<vmem>>, %arg5: memref<32x32xf32, #tpu.memory_space<vmem>>, %arg6: memref<32x16xf32, #tpu.memory_space<vmem>>, %arg7: memref<4x2x32xf32, #tpu.memory_space<vmem>>, %arg8: memref<4x32x32xf32, #tpu.memory_space<vmem>>, %arg9: memref<16x16xf32, #tpu.memory_space<vmem>>, %arg10: memref<1x16xf32, #tpu.memory_space<vmem>>, %arg11: memref<16x1xf32, #tpu.memory_space<vmem>>, %arg12: memref<16x64xf32, #tpu.memory_space<vmem>>, %arg13: memref<16x64xf32, #tpu.memory_space<vmem>>, %arg14: memref<32x16xf32, #tpu.memory_space<vmem>>, %arg15: memref<1x16xf32, #tpu.memory_space<vmem>>, %arg16: memref<16x1xf32, #tpu.memory_space<vmem>>, %arg17: memref<1x8xf32, #tpu.memory_space<vmem>>, %arg18: memref<1x8xf32, #tpu.memory_space<vmem>>, %arg19: memref<32x1xf32, #tpu.memory_space<vmem>>, %arg20: memref<32x1xf32, #tpu.memory_space<vmem>>, %arg21: memref<1x32xf32, #tpu.memory_space<vmem>>, %arg22: memref<1x32xf32, #tpu.memory_space<vmem>>, %arg23: memref<1x32xf32, #tpu.memory_space<vmem>>, %arg24: memref<32x3xf32, #tpu.memory_space<vmem>>, %arg25: memref<1x3xf32, #tpu.memory_space<vmem>>, %arg26: memref<2x3xf32, #tpu.memory_space<vmem>>) attributes {dimension_semantics = [#tpu.dimension_semantics<arbitrary>], iteration_bounds = array<i64: 1>, scalar_prefetch = 0 : i64, scratch_operands = 0 : i64, tpu.core_type = #tpu.core_type<tc>, window_params = [{pipeline_mode = #tpu.pipeline_mode<synchronous>, transform_indices = @transform_0, window_bounds = array<i64: 32, 8>}, {pipeline_mode = #tpu.pipeline_mode<synchronous>, transform_indices = @transform_1, window_bounds = array<i64: 160, 16>}, {pipeline_mode = #tpu.pipeline_mode<synchronous>, transform_indices = @transform_2, window_bounds = array<i64: 16, 16>}, {pipeline_mode = #tpu.pipeline_mode<synchronous>, transform_indices = @transform_3, window_bounds = array<i64: 16, 16>}, {pipeline_mode = #tpu.pipeline_mode<synchronous>, transform_indices = @transform_4, window_bounds = array<i64: 32, 32>}, {pipeline_mode = #tpu.pipeline_mode<synchronous>, transform_indices = @transform_5, window_bounds = array<i64: 32, 16>}, {pipeline_mode = #tpu.pipeline_mode<synchronous>, transform_indices = @transform_6, window_bounds = array<i64: 4, 2, 32>}, {pipeline_mode = #tpu.pipeline_mode<synchronous>, transform_indices = @transform_7, window_bounds = array<i64: 4, 32, 32>}, {pipeline_mode = #tpu.pipeline_mode<synchronous>, transform_indices = @transform_8, window_bounds = array<i64: 16, 16>}, {pipeline_mode = #tpu.pipeline_mode<synchronous>, transform_indices = @transform_9, window_bounds = array<i64: 1, 16>}, {pipeline_mode = #tpu.pipeline_mode<synchronous>, transform_indices = @transform_10, window_bounds = array<i64: 16, 1>}, {pipeline_mode = #tpu.pipeline_mode<synchronous>, transform_indices = @transform_11, window_bounds = array<i64: 16, 64>}, {pipeline_mode = #tpu.pipeline_mode<synchronous>, transform_indices = @transform_12, window_bounds = array<i64: 16, 64>}, {pipeline_mode = #tpu.pipeline_mode<synchronous>, transform_indices = @transform_13, window_bounds = array<i64: 32, 16>}, {pipeline_mode = #tpu.pipeline_mode<synchronous>, transform_indices = @transform_14, window_bounds = array<i64: 1, 16>}, {pipeline_mode = #tpu.pipeline_mode<synchronous>, transform_indices = @transform_15, window_bounds = array<i64: 16, 1>}, {pipeline_mode = #tpu.pipeline_mode<synchronous>, transform_indices = @transform_16, window_bounds = array<i64: 1, 8>}, {pipeline_mode = #tpu.pipeline_mode<synchronous>, transform_indices = @transform_17, window_bounds = array<i64: 1, 8>}, {pipeline_mode = #tpu.pipeline_mode<synchronous>, transform_indices = @transform_18, window_bounds = array<i64: 32, 1>}, {pipeline_mode = #tpu.pipeline_mode<synchronous>, transform_indices = @transform_19, window_bounds = array<i64: 32, 1>}, {pipeline_mode = #tpu.pipeline_mode<synchronous>, transform_indices = @transform_20, window_bounds = array<i64: 1, 32>}, {pipeline_mode = #tpu.pipeline_mode<synchronous>, transform_indices = @transform_21, window_bounds = array<i64: 1, 32>}, {pipeline_mode = #tpu.pipeline_mode<synchronous>, transform_indices = @transform_22, window_bounds = array<i64: 1, 32>}, {pipeline_mode = #tpu.pipeline_mode<synchronous>, transform_indices = @transform_23, window_bounds = array<i64: 32, 3>}, {pipeline_mode = #tpu.pipeline_mode<synchronous>, transform_indices = @transform_24, window_bounds = array<i64: 1, 3>}, {pipeline_mode = #tpu.pipeline_mode<synchronous>, transform_indices = @transform_25, window_bounds = array<i64: 2, 3>}]} {
    %c0 = arith.constant 0 : index
    %c0_0 = arith.constant 0 : index
    %0 = vector.load %arg1[%c0, %c0_0] : memref<32x8xf32, #tpu.memory_space<vmem>>, vector<32x8xf32>
    %c0_1 = arith.constant 0 : index
    %c0_2 = arith.constant 0 : index
    %1 = vector.load %arg17[%c0_1, %c0_2] : memref<1x8xf32, #tpu.memory_space<vmem>>, vector<1x8xf32>
    %2 = vector.broadcast %1 : vector<1x8xf32> to vector<32x8xf32>
    %3 = arith.mulf %0, %2 : vector<32x8xf32>
    %c0_3 = arith.constant 0 : index
    %c0_4 = arith.constant 0 : index
    %4 = vector.load %arg18[%c0_3, %c0_4] : memref<1x8xf32, #tpu.memory_space<vmem>>, vector<1x8xf32>
    %5 = vector.broadcast %4 : vector<1x8xf32> to vector<32x8xf32>
    %6 = arith.addf %3, %5 : vector<32x8xf32>
    %c0_5 = arith.constant 0 : index
    %c0_6 = arith.constant 0 : index
    %7 = vector.load %arg2[%c0_5, %c0_6] : memref<160x16xf32, #tpu.memory_space<vmem>>, vector<160x16xf32>
    %c0_7 = arith.constant 0 : index
    %c0_8 = arith.constant 0 : index
    %8 = vector.load %arg9[%c0_7, %c0_8] : memref<16x16xf32, #tpu.memory_space<vmem>>, vector<16x16xf32>
    %cst = arith.constant dense<0.000000e+00> : vector<160x16xf32>
    %9 = tpu.matmul %7, %8, %cst {dimension_numbers = #tpu.dot_dimension_numbers<[1], [0], [0], [1], [0, 0, 1, 1], [], []>} : vector<160x16xf32>, vector<16x16xf32>, vector<160x16xf32> -> vector<160x16xf32>
    %c0_9 = arith.constant 0 : index
    %c0_10 = arith.constant 0 : index
    %10 = vector.load %arg10[%c0_9, %c0_10] : memref<1x16xf32, #tpu.memory_space<vmem>>, vector<1x16xf32>
    %11 = vector.broadcast %10 : vector<1x16xf32> to vector<160x16xf32>
    %12 = arith.addf %9, %11 : vector<160x16xf32>
    %13 = math.tanh %12 : vector<160x16xf32>
    %c0_11 = arith.constant 0 : index
    %c0_12 = arith.constant 0 : index
    %14 = vector.load %arg11[%c0_11, %c0_12] : memref<16x1xf32, #tpu.memory_space<vmem>>, vector<16x1xf32>
    %cst_13 = arith.constant dense<0.000000e+00> : vector<160x1xf32>
    %15 = tpu.matmul %13, %14, %cst_13 {dimension_numbers = #tpu.dot_dimension_numbers<[1], [0], [0], [1], [0, 0, 1, 1], [], []>} : vector<160x16xf32>, vector<16x1xf32>, vector<160x1xf32> -> vector<160x1xf32>
    %16 = vector.extract_strided_slice %15 {offsets = [0, 0], sizes = [32, 1], strides = [1, 1]} : vector<160x1xf32> to vector<32x1xf32>
    %17 = vector.extract_strided_slice %15 {offsets = [32, 0], sizes = [32, 1], strides = [1, 1]} : vector<160x1xf32> to vector<32x1xf32>
    %18 = vector.extract_strided_slice %15 {offsets = [64, 0], sizes = [32, 1], strides = [1, 1]} : vector<160x1xf32> to vector<32x1xf32>
    %19 = vector.extract_strided_slice %15 {offsets = [96, 0], sizes = [32, 1], strides = [1, 1]} : vector<160x1xf32> to vector<32x1xf32>
    %20 = vector.extract_strided_slice %15 {offsets = [128, 0], sizes = [32, 1], strides = [1, 1]} : vector<160x1xf32> to vector<32x1xf32>
    %21 = arith.maximumf %16, %17 : vector<32x1xf32>
    %22 = arith.maximumf %21, %18 : vector<32x1xf32>
    %23 = arith.maximumf %22, %19 : vector<32x1xf32>
    %24 = arith.maximumf %23, %20 : vector<32x1xf32>
    %25 = arith.subf %16, %24 : vector<32x1xf32>
    %26 = math.exp %25 : vector<32x1xf32>
    %27 = arith.subf %17, %24 : vector<32x1xf32>
    %28 = math.exp %27 : vector<32x1xf32>
    %29 = arith.subf %18, %24 : vector<32x1xf32>
    %30 = math.exp %29 : vector<32x1xf32>
    %31 = arith.subf %19, %24 : vector<32x1xf32>
    %32 = math.exp %31 : vector<32x1xf32>
    %33 = arith.subf %20, %24 : vector<32x1xf32>
    %34 = math.exp %33 : vector<32x1xf32>
    %35 = arith.addf %26, %28 : vector<32x1xf32>
    %36 = arith.addf %35, %30 : vector<32x1xf32>
    %37 = arith.addf %36, %32 : vector<32x1xf32>
    %38 = arith.addf %37, %34 : vector<32x1xf32>
    %39 = tpu.reciprocal %38 {approx = true} : vector<32x1xf32> -> vector<32x1xf32>
    %40 = arith.mulf %26, %39 : vector<32x1xf32>
    %41 = vector.extract_strided_slice %7 {offsets = [0, 0], sizes = [32, 16], strides = [1, 1]} : vector<160x16xf32> to vector<32x16xf32>
    %42 = vector.broadcast %40 : vector<32x1xf32> to vector<32x16xf32>
    %43 = arith.mulf %42, %41 : vector<32x16xf32>
    %44 = arith.mulf %28, %39 : vector<32x1xf32>
    %45 = vector.extract_strided_slice %7 {offsets = [32, 0], sizes = [32, 16], strides = [1, 1]} : vector<160x16xf32> to vector<32x16xf32>
    %46 = vector.broadcast %44 : vector<32x1xf32> to vector<32x16xf32>
    %47 = arith.mulf %46, %45 : vector<32x16xf32>
    %48 = arith.addf %43, %47 : vector<32x16xf32>
    %49 = arith.mulf %30, %39 : vector<32x1xf32>
    %50 = vector.extract_strided_slice %7 {offsets = [64, 0], sizes = [32, 16], strides = [1, 1]} : vector<160x16xf32> to vector<32x16xf32>
    %51 = vector.broadcast %49 : vector<32x1xf32> to vector<32x16xf32>
    %52 = arith.mulf %51, %50 : vector<32x16xf32>
    %53 = arith.addf %48, %52 : vector<32x16xf32>
    %54 = arith.mulf %32, %39 : vector<32x1xf32>
    %55 = vector.extract_strided_slice %7 {offsets = [96, 0], sizes = [32, 16], strides = [1, 1]} : vector<160x16xf32> to vector<32x16xf32>
    %56 = vector.broadcast %54 : vector<32x1xf32> to vector<32x16xf32>
    %57 = arith.mulf %56, %55 : vector<32x16xf32>
    %58 = arith.addf %53, %57 : vector<32x16xf32>
    %59 = arith.mulf %34, %39 : vector<32x1xf32>
    %60 = vector.extract_strided_slice %7 {offsets = [128, 0], sizes = [32, 16], strides = [1, 1]} : vector<160x16xf32> to vector<32x16xf32>
    %61 = vector.broadcast %59 : vector<32x1xf32> to vector<32x16xf32>
    %62 = arith.mulf %61, %60 : vector<32x16xf32>
    %63 = arith.addf %58, %62 : vector<32x16xf32>
    %c0_14 = arith.constant 0 : index
    %c0_15 = arith.constant 0 : index
    %64 = vector.load %arg5[%c0_14, %c0_15] : memref<32x32xf32, #tpu.memory_space<vmem>>, vector<32x32xf32>
    %cst_16 = arith.constant 0.000000e+00 : f32
    %65 = vector.broadcast %cst_16 : f32 to vector<32x16xf32>
    %66 = arith.maximumf %63, %65 : vector<32x16xf32>
    %cst_17 = arith.constant dense<0.000000e+00> : vector<32x16xf32>
    %67 = tpu.matmul %64, %66, %cst_17 {dimension_numbers = #tpu.dot_dimension_numbers<[1], [0], [0], [1], [0, 0, 1, 1], [], []>} : vector<32x32xf32>, vector<32x16xf32>, vector<32x16xf32> -> vector<32x16xf32>
    %cst_18 = arith.constant 1.000000e-10 : f32
    %68 = vector.broadcast %cst_18 : f32 to vector<32x16xf32>
    %69 = arith.addf %67, %68 : vector<32x16xf32>
    %70 = math.rsqrt %69 : vector<32x16xf32>
    %c0_19 = arith.constant 0 : index
    %c0_20 = arith.constant 0 : index
    %71 = vector.load %arg6[%c0_19, %c0_20] : memref<32x16xf32, #tpu.memory_space<vmem>>, vector<32x16xf32>
    %72 = arith.mulf %70, %71 : vector<32x16xf32>
    %cst_21 = arith.constant dense<0.000000e+00> : vector<32xf32>
    %73 = vector.multi_reduction <add>, %72, %cst_21 [1] : vector<32x16xf32> to vector<32xf32>
    %74 = vector.shape_cast %73 : vector<32xf32> to vector<32x1xf32>
    %75 = arith.mulf %66, %70 : vector<32x16xf32>
    %76 = vector.broadcast %74 : vector<32x1xf32> to vector<32x16xf32>
    %77 = arith.mulf %75, %76 : vector<32x16xf32>
    %c0_22 = arith.constant 0 : index
    %c0_23 = arith.constant 0 : index
    %78 = vector.load %arg4[%c0_22, %c0_23] : memref<16x16xf32, #tpu.memory_space<vmem>>, vector<16x16xf32>
    %c0_24 = arith.constant 0 : index
    %c0_25 = arith.constant 0 : index
    %79 = vector.load %arg3[%c0_24, %c0_25] : memref<16x16xf32, #tpu.memory_space<vmem>>, vector<16x16xf32>
    %80 = arith.addf %79, %78 : vector<16x16xf32>
    %cst_26 = arith.constant 0.000000e+00 : f32
    %81 = vector.broadcast %cst_26 : f32 to vector<16x16xf32>
    %82 = arith.maximumf %80, %81 : vector<16x16xf32>
    %cst_27 = arith.constant dense<0.000000e+00> : vector<16xf32>
    %83 = vector.multi_reduction <add>, %82, %cst_27 [1] : vector<16x16xf32> to vector<16xf32>
    %84 = vector.shape_cast %83 : vector<16xf32> to vector<16x1xf32>
    %cst_28 = arith.constant 1.000000e-10 : f32
    %85 = vector.broadcast %cst_28 : f32 to vector<16x1xf32>
    %86 = arith.addf %84, %85 : vector<16x1xf32>
    %87 = math.rsqrt %86 : vector<16x1xf32>
    %88 = vector.broadcast %87 : vector<16x1xf32> to vector<16x16xf32>
    %89 = arith.mulf %82, %88 : vector<16x16xf32>
    %90 = vector.broadcast %87 : vector<16x1xf32> to vector<16x16xf32>
    %91 = arith.mulf %78, %90 : vector<16x16xf32>
    %cst_29 = arith.constant dense<0.000000e+00> : vector<16x16xf32>
    %92 = tpu.matmul %89, %91, %cst_29 {dimension_numbers = #tpu.dot_dimension_numbers<[1], [0], [0], [1], [0, 0, 1, 1], [], []>} : vector<16x16xf32>, vector<16x16xf32>, vector<16x16xf32> -> vector<16x16xf32>
    %93 = tpu.concatenate %77, %77 in 1 : vector<32x16xf32>, vector<32x16xf32> -> vector<32x32xf32>
    %94 = arith.mulf %93, %64 : vector<32x32xf32>
    %95 = tpu.concatenate %92, %92 in 0 : vector<16x16xf32>, vector<16x16xf32> -> vector<32x16xf32>
    %96 = tpu.concatenate %95, %95 in 1 : vector<32x16xf32>, vector<32x16xf32> -> vector<32x32xf32>
    %97 = arith.mulf %96, %64 : vector<32x32xf32>
    %cst_30 = arith.constant dense<0.000000e+00> : vector<32x8xf32>
    %98 = tpu.matmul %97, %6, %cst_30 {dimension_numbers = #tpu.dot_dimension_numbers<[1], [0], [0], [1], [0, 0, 1, 1], [], []>} : vector<32x32xf32>, vector<32x8xf32>, vector<32x8xf32> -> vector<32x8xf32>
    %99 = tpu.concatenate %6, %98 in 1 : vector<32x8xf32>, vector<32x8xf32> -> vector<32x16xf32>
    %cst_31 = arith.constant dense<0.000000e+00> : vector<32x8xf32>
    %100 = tpu.matmul %94, %6, %cst_31 {dimension_numbers = #tpu.dot_dimension_numbers<[1], [0], [0], [1], [0, 0, 1, 1], [], []>} : vector<32x32xf32>, vector<32x8xf32>, vector<32x8xf32> -> vector<32x8xf32>
    %101 = tpu.concatenate %6, %100 in 1 : vector<32x8xf32>, vector<32x8xf32> -> vector<32x16xf32>
    %c0_32 = arith.constant 0 : index
    %c0_33 = arith.constant 0 : index
    %102 = vector.load %arg12[%c0_32, %c0_33] : memref<16x64xf32, #tpu.memory_space<vmem>>, vector<16x64xf32>
    %cst_34 = arith.constant dense<0.000000e+00> : vector<32x64xf32>
    %103 = tpu.matmul %99, %102, %cst_34 {dimension_numbers = #tpu.dot_dimension_numbers<[1], [0], [0], [1], [0, 0, 1, 1], [], []>} : vector<32x16xf32>, vector<16x64xf32>, vector<32x64xf32> -> vector<32x64xf32>
    %c0_35 = arith.constant 0 : index
    %c0_36 = arith.constant 0 : index
    %104 = vector.load %arg13[%c0_35, %c0_36] : memref<16x64xf32, #tpu.memory_space<vmem>>, vector<16x64xf32>
    %cst_37 = arith.constant dense<0.000000e+00> : vector<32x64xf32>
    %105 = tpu.matmul %101, %104, %cst_37 {dimension_numbers = #tpu.dot_dimension_numbers<[1], [0], [0], [1], [0, 0, 1, 1], [], []>} : vector<32x16xf32>, vector<16x64xf32>, vector<32x64xf32> -> vector<32x64xf32>
    %106 = vector.extract_strided_slice %103 {offsets = [0, 0], sizes = [32, 32], strides = [1, 1]} : vector<32x64xf32> to vector<32x32xf32>
    %cst_38 = arith.constant 0.000000e+00 : f32
    %107 = vector.broadcast %cst_38 : f32 to vector<32x32xf32>
    %108 = arith.maximumf %106, %107 : vector<32x32xf32>
    %109 = vector.extract_strided_slice %103 {offsets = [0, 32], sizes = [32, 32], strides = [1, 1]} : vector<32x64xf32> to vector<32x32xf32>
    %cst_39 = arith.constant 0.000000e+00 : f32
    %110 = vector.broadcast %cst_39 : f32 to vector<32x32xf32>
    %111 = arith.maximumf %109, %110 : vector<32x32xf32>
    %112 = vector.extract_strided_slice %105 {offsets = [0, 0], sizes = [32, 32], strides = [1, 1]} : vector<32x64xf32> to vector<32x32xf32>
    %cst_40 = arith.constant 0.000000e+00 : f32
    %113 = vector.broadcast %cst_40 : f32 to vector<32x32xf32>
    %114 = arith.maximumf %112, %113 : vector<32x32xf32>
    %115 = vector.extract_strided_slice %105 {offsets = [0, 32], sizes = [32, 32], strides = [1, 1]} : vector<32x64xf32> to vector<32x32xf32>
    %cst_41 = arith.constant 0.000000e+00 : f32
    %116 = vector.broadcast %cst_41 : f32 to vector<32x32xf32>
    %117 = arith.maximumf %115, %116 : vector<32x32xf32>
    %118 = arith.addf %111, %117 : vector<32x32xf32>
    %cst_42 = arith.constant 5.000000e-01 : f32
    %119 = vector.broadcast %cst_42 : f32 to vector<32x32xf32>
    %120 = arith.mulf %119, %118 : vector<32x32xf32>
    %121 = tpu.concatenate %108, %114, %120 in 0 : vector<32x32xf32>, vector<32x32xf32>, vector<32x32xf32> -> vector<96x32xf32>
    %c0_43 = arith.constant 0 : index
    %c0_44 = arith.constant 0 : index
    %122 = vector.load %arg14[%c0_43, %c0_44] : memref<32x16xf32, #tpu.memory_space<vmem>>, vector<32x16xf32>
    %cst_45 = arith.constant dense<0.000000e+00> : vector<96x16xf32>
    %123 = tpu.matmul %121, %122, %cst_45 {dimension_numbers = #tpu.dot_dimension_numbers<[1], [0], [0], [1], [0, 0, 1, 1], [], []>} : vector<96x32xf32>, vector<32x16xf32>, vector<96x16xf32> -> vector<96x16xf32>
    %c0_46 = arith.constant 0 : index
    %c0_47 = arith.constant 0 : index
    %124 = vector.load %arg15[%c0_46, %c0_47] : memref<1x16xf32, #tpu.memory_space<vmem>>, vector<1x16xf32>
    %125 = vector.broadcast %124 : vector<1x16xf32> to vector<96x16xf32>
    %126 = arith.addf %123, %125 : vector<96x16xf32>
    %127 = math.tanh %126 : vector<96x16xf32>
    %c0_48 = arith.constant 0 : index
    %c0_49 = arith.constant 0 : index
    %128 = vector.load %arg16[%c0_48, %c0_49] : memref<16x1xf32, #tpu.memory_space<vmem>>, vector<16x1xf32>
    %cst_50 = arith.constant dense<0.000000e+00> : vector<96x1xf32>
    %129 = tpu.matmul %127, %128, %cst_50 {dimension_numbers = #tpu.dot_dimension_numbers<[1], [0], [0], [1], [0, 0, 1, 1], [], []>} : vector<96x16xf32>, vector<16x1xf32>, vector<96x1xf32> -> vector<96x1xf32>
    %130 = vector.extract_strided_slice %129 {offsets = [0, 0], sizes = [32, 1], strides = [1, 1]} : vector<96x1xf32> to vector<32x1xf32>
    %131 = vector.extract_strided_slice %129 {offsets = [32, 0], sizes = [32, 1], strides = [1, 1]} : vector<96x1xf32> to vector<32x1xf32>
    %132 = vector.extract_strided_slice %129 {offsets = [64, 0], sizes = [32, 1], strides = [1, 1]} : vector<96x1xf32> to vector<32x1xf32>
    %133 = arith.maximumf %130, %131 : vector<32x1xf32>
    %134 = arith.maximumf %133, %132 : vector<32x1xf32>
    %135 = arith.subf %130, %134 : vector<32x1xf32>
    %136 = math.exp %135 : vector<32x1xf32>
    %137 = arith.subf %131, %134 : vector<32x1xf32>
    %138 = math.exp %137 : vector<32x1xf32>
    %139 = arith.subf %132, %134 : vector<32x1xf32>
    %140 = math.exp %139 : vector<32x1xf32>
    %141 = arith.addf %136, %138 : vector<32x1xf32>
    %142 = arith.addf %141, %140 : vector<32x1xf32>
    %143 = tpu.reciprocal %142 {approx = true} : vector<32x1xf32> -> vector<32x1xf32>
    %144 = vector.broadcast %136 : vector<32x1xf32> to vector<32x32xf32>
    %145 = arith.mulf %144, %108 : vector<32x32xf32>
    %146 = vector.broadcast %138 : vector<32x1xf32> to vector<32x32xf32>
    %147 = arith.mulf %146, %114 : vector<32x32xf32>
    %148 = arith.addf %145, %147 : vector<32x32xf32>
    %149 = vector.broadcast %140 : vector<32x1xf32> to vector<32x32xf32>
    %150 = arith.mulf %149, %120 : vector<32x32xf32>
    %151 = arith.addf %148, %150 : vector<32x32xf32>
    %152 = vector.broadcast %143 : vector<32x1xf32> to vector<32x32xf32>
    %153 = arith.mulf %151, %152 : vector<32x32xf32>
    %c0_51 = arith.constant 0 : index
    %c0_52 = arith.constant 0 : index
    %154 = vector.load %arg19[%c0_51, %c0_52] : memref<32x1xf32, #tpu.memory_space<vmem>>, vector<32x1xf32>
    %155 = vector.broadcast %154 : vector<32x1xf32> to vector<32x32xf32>
    %156 = arith.mulf %153, %155 : vector<32x32xf32>
    %c0_53 = arith.constant 0 : index
    %c0_54 = arith.constant 0 : index
    %157 = vector.load %arg20[%c0_53, %c0_54] : memref<32x1xf32, #tpu.memory_space<vmem>>, vector<32x1xf32>
    %158 = vector.broadcast %157 : vector<32x1xf32> to vector<32x32xf32>
    %159 = arith.addf %156, %158 : vector<32x32xf32>
    %cst_55 = arith.constant 0.000000e+00 : f32
    %160 = vector.broadcast %cst_55 : f32 to vector<32x32xf32>
    %161 = arith.maximumf %159, %160 : vector<32x32xf32>
    %cst_56 = arith.constant 0.000000e+00 : f32
    %162 = vector.broadcast %cst_56 : f32 to vector<2x32xf32>
    %c0_57 = arith.constant 0 : index
    %c0_58 = arith.constant 0 : index
    %c0_59 = arith.constant 0 : index
    %163 = vector.load %arg7[%c0_57, %c0_58, %c0_59] : memref<4x2x32xf32, #tpu.memory_space<vmem>>, vector<1x2x32xf32>
    %164 = vector.shape_cast %163 : vector<1x2x32xf32> to vector<2x32xf32>
    %cst_60 = arith.constant dense<0.000000e+00> : vector<2x32xf32>
    %165 = tpu.matmul %164, %161, %cst_60 {dimension_numbers = #tpu.dot_dimension_numbers<[1], [0], [0], [1], [0, 0, 1, 1], [], []>} : vector<2x32xf32>, vector<32x32xf32>, vector<2x32xf32> -> vector<2x32xf32>
    %c0_61 = arith.constant 0 : index
    %c0_62 = arith.constant 0 : index
    %c0_63 = arith.constant 0 : index
    %166 = vector.load %arg8[%c0_61, %c0_62, %c0_63] : memref<4x32x32xf32, #tpu.memory_space<vmem>>, vector<1x32x32xf32>
    %167 = vector.shape_cast %166 : vector<1x32x32xf32> to vector<32x32xf32>
    %cst_64 = arith.constant dense<0.000000e+00> : vector<2x32xf32>
    %168 = tpu.matmul %165, %167, %cst_64 {dimension_numbers = #tpu.dot_dimension_numbers<[1], [0], [0], [1], [0, 0, 1, 1], [], []>} : vector<2x32xf32>, vector<32x32xf32>, vector<2x32xf32> -> vector<2x32xf32>
    %169 = arith.addf %162, %168 : vector<2x32xf32>
    %c1 = arith.constant 1 : index
    %c0_65 = arith.constant 0 : index
    %c0_66 = arith.constant 0 : index
    %170 = vector.load %arg7[%c1, %c0_65, %c0_66] : memref<4x2x32xf32, #tpu.memory_space<vmem>>, vector<1x2x32xf32>
    %171 = vector.shape_cast %170 : vector<1x2x32xf32> to vector<2x32xf32>
    %cst_67 = arith.constant dense<0.000000e+00> : vector<2x32xf32>
    %172 = tpu.matmul %171, %161, %cst_67 {dimension_numbers = #tpu.dot_dimension_numbers<[1], [0], [0], [1], [0, 0, 1, 1], [], []>} : vector<2x32xf32>, vector<32x32xf32>, vector<2x32xf32> -> vector<2x32xf32>
    %c1_68 = arith.constant 1 : index
    %c0_69 = arith.constant 0 : index
    %c0_70 = arith.constant 0 : index
    %173 = vector.load %arg8[%c1_68, %c0_69, %c0_70] : memref<4x32x32xf32, #tpu.memory_space<vmem>>, vector<1x32x32xf32>
    %174 = vector.shape_cast %173 : vector<1x32x32xf32> to vector<32x32xf32>
    %cst_71 = arith.constant dense<0.000000e+00> : vector<2x32xf32>
    %175 = tpu.matmul %172, %174, %cst_71 {dimension_numbers = #tpu.dot_dimension_numbers<[1], [0], [0], [1], [0, 0, 1, 1], [], []>} : vector<2x32xf32>, vector<32x32xf32>, vector<2x32xf32> -> vector<2x32xf32>
    %176 = arith.addf %169, %175 : vector<2x32xf32>
    %c2 = arith.constant 2 : index
    %c0_72 = arith.constant 0 : index
    %c0_73 = arith.constant 0 : index
    %177 = vector.load %arg7[%c2, %c0_72, %c0_73] : memref<4x2x32xf32, #tpu.memory_space<vmem>>, vector<1x2x32xf32>
    %178 = vector.shape_cast %177 : vector<1x2x32xf32> to vector<2x32xf32>
    %cst_74 = arith.constant dense<0.000000e+00> : vector<2x32xf32>
    %179 = tpu.matmul %178, %161, %cst_74 {dimension_numbers = #tpu.dot_dimension_numbers<[1], [0], [0], [1], [0, 0, 1, 1], [], []>} : vector<2x32xf32>, vector<32x32xf32>, vector<2x32xf32> -> vector<2x32xf32>
    %c2_75 = arith.constant 2 : index
    %c0_76 = arith.constant 0 : index
    %c0_77 = arith.constant 0 : index
    %180 = vector.load %arg8[%c2_75, %c0_76, %c0_77] : memref<4x32x32xf32, #tpu.memory_space<vmem>>, vector<1x32x32xf32>
    %181 = vector.shape_cast %180 : vector<1x32x32xf32> to vector<32x32xf32>
    %cst_78 = arith.constant dense<0.000000e+00> : vector<2x32xf32>
    %182 = tpu.matmul %179, %181, %cst_78 {dimension_numbers = #tpu.dot_dimension_numbers<[1], [0], [0], [1], [0, 0, 1, 1], [], []>} : vector<2x32xf32>, vector<32x32xf32>, vector<2x32xf32> -> vector<2x32xf32>
    %183 = arith.addf %176, %182 : vector<2x32xf32>
    %c3 = arith.constant 3 : index
    %c0_79 = arith.constant 0 : index
    %c0_80 = arith.constant 0 : index
    %184 = vector.load %arg7[%c3, %c0_79, %c0_80] : memref<4x2x32xf32, #tpu.memory_space<vmem>>, vector<1x2x32xf32>
    %185 = vector.shape_cast %184 : vector<1x2x32xf32> to vector<2x32xf32>
    %cst_81 = arith.constant dense<0.000000e+00> : vector<2x32xf32>
    %186 = tpu.matmul %185, %161, %cst_81 {dimension_numbers = #tpu.dot_dimension_numbers<[1], [0], [0], [1], [0, 0, 1, 1], [], []>} : vector<2x32xf32>, vector<32x32xf32>, vector<2x32xf32> -> vector<2x32xf32>
    %c3_82 = arith.constant 3 : index
    %c0_83 = arith.constant 0 : index
    %c0_84 = arith.constant 0 : index
    %187 = vector.load %arg8[%c3_82, %c0_83, %c0_84] : memref<4x32x32xf32, #tpu.memory_space<vmem>>, vector<1x32x32xf32>
    %188 = vector.shape_cast %187 : vector<1x32x32xf32> to vector<32x32xf32>
    %cst_85 = arith.constant dense<0.000000e+00> : vector<2x32xf32>
    %189 = tpu.matmul %186, %188, %cst_85 {dimension_numbers = #tpu.dot_dimension_numbers<[1], [0], [0], [1], [0, 0, 1, 1], [], []>} : vector<2x32xf32>, vector<32x32xf32>, vector<2x32xf32> -> vector<2x32xf32>
    %190 = arith.addf %183, %189 : vector<2x32xf32>
    %cst_86 = arith.constant 6.250000e-02 : f32
    %191 = vector.broadcast %cst_86 : f32 to vector<2x32xf32>
    %192 = arith.mulf %190, %191 : vector<2x32xf32>
    %c0_87 = arith.constant 0 : index
    %c0_88 = arith.constant 0 : index
    %193 = vector.load %arg21[%c0_87, %c0_88] : memref<1x32xf32, #tpu.memory_space<vmem>>, vector<1x32xf32>
    %194 = vector.broadcast %193 : vector<1x32xf32> to vector<2x32xf32>
    %195 = arith.addf %192, %194 : vector<2x32xf32>
    %c0_89 = arith.constant 0 : index
    %c0_90 = arith.constant 0 : index
    %196 = vector.load %arg22[%c0_89, %c0_90] : memref<1x32xf32, #tpu.memory_space<vmem>>, vector<1x32xf32>
    %197 = vector.broadcast %196 : vector<1x32xf32> to vector<2x32xf32>
    %198 = arith.mulf %195, %197 : vector<2x32xf32>
    %c0_91 = arith.constant 0 : index
    %c0_92 = arith.constant 0 : index
    %199 = vector.load %arg23[%c0_91, %c0_92] : memref<1x32xf32, #tpu.memory_space<vmem>>, vector<1x32xf32>
    %200 = vector.broadcast %199 : vector<1x32xf32> to vector<2x32xf32>
    %201 = arith.addf %198, %200 : vector<2x32xf32>
    %cst_93 = arith.constant 0.000000e+00 : f32
    %202 = vector.broadcast %cst_93 : f32 to vector<2x32xf32>
    %203 = arith.maximumf %201, %202 : vector<2x32xf32>
    %c0_94 = arith.constant 0 : index
    %c0_95 = arith.constant 0 : index
    %204 = vector.load %arg24[%c0_94, %c0_95] : memref<32x3xf32, #tpu.memory_space<vmem>>, vector<32x3xf32>
    %cst_96 = arith.constant dense<0.000000e+00> : vector<2x3xf32>
    %205 = tpu.matmul %203, %204, %cst_96 {dimension_numbers = #tpu.dot_dimension_numbers<[1], [0], [0], [1], [0, 0, 1, 1], [], []>} : vector<2x32xf32>, vector<32x3xf32>, vector<2x3xf32> -> vector<2x3xf32>
    %c0_97 = arith.constant 0 : index
    %c0_98 = arith.constant 0 : index
    %206 = vector.load %arg25[%c0_97, %c0_98] : memref<1x3xf32, #tpu.memory_space<vmem>>, vector<1x3xf32>
    %207 = vector.broadcast %206 : vector<1x3xf32> to vector<2x3xf32>
    %208 = arith.addf %205, %207 : vector<2x3xf32>
    %c0_99 = arith.constant 0 : index
    %c0_100 = arith.constant 0 : index
    %209 = vector.load %arg26[%c0_99, %c0_100] : memref<2x3xf32, #tpu.memory_space<vmem>>, vector<2x3xf32>
    tpu.vector_store %arg26[%c0_99, %c0_100], %208 {strides = array<i32>} : memref<2x3xf32, #tpu.memory_space<vmem>>, vector<2x3xf32>,
    return
  }
  func.func @transform_0(%arg0: i32) -> (i32, i32) {
    %c0_i32 = arith.constant 0 : i32
    %c0_i32_0 = arith.constant 0 : i32
    %c0_i32_1 = arith.constant 0 : i32
    return %c0_i32, %c0_i32_0 : i32, i32
  }
  func.func @transform_1(%arg0: i32) -> (i32, i32) {
    %c0_i32 = arith.constant 0 : i32
    %c0_i32_0 = arith.constant 0 : i32
    %c0_i32_1 = arith.constant 0 : i32
    return %c0_i32, %c0_i32_0 : i32, i32
  }
  func.func @transform_2(%arg0: i32) -> (i32, i32) {
    %c0_i32 = arith.constant 0 : i32
    %c0_i32_0 = arith.constant 0 : i32
    %c0_i32_1 = arith.constant 0 : i32
    return %c0_i32, %c0_i32_0 : i32, i32
  }
  func.func @transform_3(%arg0: i32) -> (i32, i32) {
    %c0_i32 = arith.constant 0 : i32
    %c0_i32_0 = arith.constant 0 : i32
    %c0_i32_1 = arith.constant 0 : i32
    return %c0_i32, %c0_i32_0 : i32, i32
  }
  func.func @transform_4(%arg0: i32) -> (i32, i32) {
    %c0_i32 = arith.constant 0 : i32
    %c0_i32_0 = arith.constant 0 : i32
    %c0_i32_1 = arith.constant 0 : i32
    return %c0_i32, %c0_i32_0 : i32, i32
  }
  func.func @transform_5(%arg0: i32) -> (i32, i32) {
    %c0_i32 = arith.constant 0 : i32
    %c0_i32_0 = arith.constant 0 : i32
    %c0_i32_1 = arith.constant 0 : i32
    return %c0_i32, %c0_i32_0 : i32, i32
  }
  func.func @transform_6(%arg0: i32) -> (i32, i32, i32) {
    %c0_i32 = arith.constant 0 : i32
    %c0_i32_0 = arith.constant 0 : i32
    %c0_i32_1 = arith.constant 0 : i32
    %c0_i32_2 = arith.constant 0 : i32
    return %c0_i32, %c0_i32_0, %c0_i32_1 : i32, i32, i32
  }
  func.func @transform_7(%arg0: i32) -> (i32, i32, i32) {
    %c0_i32 = arith.constant 0 : i32
    %c0_i32_0 = arith.constant 0 : i32
    %c0_i32_1 = arith.constant 0 : i32
    %c0_i32_2 = arith.constant 0 : i32
    return %c0_i32, %c0_i32_0, %c0_i32_1 : i32, i32, i32
  }
  func.func @transform_8(%arg0: i32) -> (i32, i32) {
    %c0_i32 = arith.constant 0 : i32
    %c0_i32_0 = arith.constant 0 : i32
    %c0_i32_1 = arith.constant 0 : i32
    return %c0_i32, %c0_i32_0 : i32, i32
  }
  func.func @transform_9(%arg0: i32) -> (i32, i32) {
    %c0_i32 = arith.constant 0 : i32
    %c0_i32_0 = arith.constant 0 : i32
    %c0_i32_1 = arith.constant 0 : i32
    return %c0_i32, %c0_i32_0 : i32, i32
  }
  func.func @transform_10(%arg0: i32) -> (i32, i32) {
    %c0_i32 = arith.constant 0 : i32
    %c0_i32_0 = arith.constant 0 : i32
    %c0_i32_1 = arith.constant 0 : i32
    return %c0_i32, %c0_i32_0 : i32, i32
  }
  func.func @transform_11(%arg0: i32) -> (i32, i32) {
    %c0_i32 = arith.constant 0 : i32
    %c0_i32_0 = arith.constant 0 : i32
    %c0_i32_1 = arith.constant 0 : i32
    return %c0_i32, %c0_i32_0 : i32, i32
  }
  func.func @transform_12(%arg0: i32) -> (i32, i32) {
    %c0_i32 = arith.constant 0 : i32
    %c0_i32_0 = arith.constant 0 : i32
    %c0_i32_1 = arith.constant 0 : i32
    return %c0_i32, %c0_i32_0 : i32, i32
  }
  func.func @transform_13(%arg0: i32) -> (i32, i32) {
    %c0_i32 = arith.constant 0 : i32
    %c0_i32_0 = arith.constant 0 : i32
    %c0_i32_1 = arith.constant 0 : i32
    return %c0_i32, %c0_i32_0 : i32, i32
  }
  func.func @transform_14(%arg0: i32) -> (i32, i32) {
    %c0_i32 = arith.constant 0 : i32
    %c0_i32_0 = arith.constant 0 : i32
    %c0_i32_1 = arith.constant 0 : i32
    return %c0_i32, %c0_i32_0 : i32, i32
  }
  func.func @transform_15(%arg0: i32) -> (i32, i32) {
    %c0_i32 = arith.constant 0 : i32
    %c0_i32_0 = arith.constant 0 : i32
    %c0_i32_1 = arith.constant 0 : i32
    return %c0_i32, %c0_i32_0 : i32, i32
  }
  func.func @transform_16(%arg0: i32) -> (i32, i32) {
    %c0_i32 = arith.constant 0 : i32
    %c0_i32_0 = arith.constant 0 : i32
    %c0_i32_1 = arith.constant 0 : i32
    return %c0_i32, %c0_i32_0 : i32, i32
  }
  func.func @transform_17(%arg0: i32) -> (i32, i32) {
    %c0_i32 = arith.constant 0 : i32
    %c0_i32_0 = arith.constant 0 : i32
    %c0_i32_1 = arith.constant 0 : i32
    return %c0_i32, %c0_i32_0 : i32, i32
  }
  func.func @transform_18(%arg0: i32) -> (i32, i32) {
    %c0_i32 = arith.constant 0 : i32
    %c0_i32_0 = arith.constant 0 : i32
    %c0_i32_1 = arith.constant 0 : i32
    return %c0_i32, %c0_i32_0 : i32, i32
  }
  func.func @transform_19(%arg0: i32) -> (i32, i32) {
    %c0_i32 = arith.constant 0 : i32
    %c0_i32_0 = arith.constant 0 : i32
    %c0_i32_1 = arith.constant 0 : i32
    return %c0_i32, %c0_i32_0 : i32, i32
  }
  func.func @transform_20(%arg0: i32) -> (i32, i32) {
    %c0_i32 = arith.constant 0 : i32
    %c0_i32_0 = arith.constant 0 : i32
    %c0_i32_1 = arith.constant 0 : i32
    return %c0_i32, %c0_i32_0 : i32, i32
  }
  func.func @transform_21(%arg0: i32) -> (i32, i32) {
    %c0_i32 = arith.constant 0 : i32
    %c0_i32_0 = arith.constant 0 : i32
    %c0_i32_1 = arith.constant 0 : i32
    return %c0_i32, %c0_i32_0 : i32, i32
  }
  func.func @transform_22(%arg0: i32) -> (i32, i32) {
    %c0_i32 = arith.constant 0 : i32
    %c0_i32_0 = arith.constant 0 : i32
    %c0_i32_1 = arith.constant 0 : i32
    return %c0_i32, %c0_i32_0 : i32, i32
  }
  func.func @transform_23(%arg0: i32) -> (i32, i32) {
    %c0_i32 = arith.constant 0 : i32
    %c0_i32_0 = arith.constant 0 : i32
    %c0_i32_1 = arith.constant 0 : i32
    return %c0_i32, %c0_i32_0 : i32, i32
  }
  func.func @transform_24(%arg0: i32) -> (i32, i32) {
    %c0_i32 = arith.constant 0 : i32
    %c0_i32_0 = arith.constant 0 : i32
    %c0_i32_1 = arith.constant 0 : i32
    return %c0_i32, %c0_i32_0 : i32, i32
  }
  func.func @transform_25(%arg0: i32) -> (i32, i32) {
    %c0_i32 = arith.constant 0 : i32
    %c0_i32_0 = arith.constant 0 : i32
    %c0_i32_1 = arith.constant 0 : i32
    return %c0_i32, %c0_i32_0 : i32, i32
  }
}

</mosaic_0001>

<llo_original>
// kernel: tpu_custom_call.1
$region0: #{tpu_custom_call.1}
  #allocation0 [shape = 'u32[]', space=smem, size = 0x4, offset = 0x4, fixed_abs, tag = 'smem constant byte address 0x4 - core index']
  #allocation1 [shape = 'u32[144,128]{1,0:T(1,128)}', space=vmem, size = 0x12000, scoped, tag = 'internal scratch']
  %s0 = inlined_call_operand.vmem [shape: f32[32,8], index: 0, kind: input, shape index: {}]
  %s1 = inlined_call_operand.vmem [shape: f32[160,16], index: 1, kind: input, shape index: {}]
  %s2 = inlined_call_operand.vmem [shape: f32[16,16], index: 2, kind: input, shape index: {}]
  %s3 = inlined_call_operand.vmem [shape: f32[16,16], index: 3, kind: input, shape index: {}]
  %s4 = inlined_call_operand.vmem [shape: f32[32,32], index: 4, kind: input, shape index: {}]
  %s5 = inlined_call_operand.vmem [shape: f32[32,16], index: 5, kind: input, shape index: {}]
  %s6 = inlined_call_operand.vmem [shape: f32[4,2,32], index: 6, kind: input, shape index: {}]
  %s7 = inlined_call_operand.vmem [shape: f32[4,32,32], index: 7, kind: input, shape index: {}]
  %s8 = inlined_call_operand.vmem [shape: f32[16,16], index: 8, kind: input, shape index: {}]
  %s9 = inlined_call_operand.vmem [shape: f32[1,16], index: 9, kind: input, shape index: {}]
  %s10 = inlined_call_operand.vmem [shape: f32[16,1], index: 10, kind: input, shape index: {}]
  %s11 = inlined_call_operand.vmem [shape: f32[16,64], index: 11, kind: input, shape index: {}]
  %s12 = inlined_call_operand.vmem [shape: f32[16,64], index: 12, kind: input, shape index: {}]
  %s13 = inlined_call_operand.vmem [shape: f32[32,16], index: 13, kind: input, shape index: {}]
  %s14 = inlined_call_operand.vmem [shape: f32[1,16], index: 14, kind: input, shape index: {}]
  %s15 = inlined_call_operand.vmem [shape: f32[16,1], index: 15, kind: input, shape index: {}]
  %s16 = inlined_call_operand.vmem [shape: f32[1,8], index: 16, kind: input, shape index: {}]
  %s17 = inlined_call_operand.vmem [shape: f32[1,8], index: 17, kind: input, shape index: {}]
  %s18 = inlined_call_operand.vmem [shape: f32[32,1], index: 18, kind: input, shape index: {}]
  %s19 = inlined_call_operand.vmem [shape: f32[32,1], index: 19, kind: input, shape index: {}]
  %s20 = inlined_call_operand.vmem [shape: f32[1,32], index: 20, kind: input, shape index: {}]
  %s21 = inlined_call_operand.vmem [shape: f32[1,32], index: 21, kind: input, shape index: {}]
  %s22 = inlined_call_operand.vmem [shape: f32[1,32], index: 22, kind: input, shape index: {}]
  %s23 = inlined_call_operand.vmem [shape: f32[32,3], index: 23, kind: input, shape index: {}]
  %s24 = inlined_call_operand.vmem [shape: f32[1,3], index: 24, kind: input, shape index: {}]
  %s25 = inlined_call_operand.hbm [shape: f32[2,3], index: 25, kind: output, shape index: {}]
  %s26 = sld [smem:[#allocation0]]
  $region110: #{tpu_custom_call.1} parent=0
    _
  %s28 = ssub.s32 1, %s26
  %s29 = scalar_select 0, %s28, %s26
  $region1: #{tpu_custom_call.1} parent=0
    #allocation2 [shape = 'u8[1024]{0}', space=vmem, size = 0x400, scoped, tag = 'output window, operand 0, single buffered']
    #allocation3 [shape = 's32[1]{0}', space=sflag, size = 0x4, scoped, tag = 'scoped memory for tpu_custom_call.1']
    %30 = vsyncpa [#allocation3], 0
    // Predicated region
    $region2: #{tpu_custom_call.1} parent=1 // pred_check
      _
    $region3: #{tpu_custom_call.1} parent=1 // pred_check_branch
      %32 = sbr.rel (0) target = $region5
    $region4: #{tpu_custom_call.1} parent=1 // pred_region
      _
    $region5: #{tpu_custom_call.1} parent=1 // pred_fallthru
      _
    // Predicated region
    $region6: #{tpu_custom_call.1} parent=1 // pred_check
      _
    $region7: #{tpu_custom_call.1} parent=1 // pred_check_branch
      %34 = sbr.rel (0) target = $region9
    $region8: #{tpu_custom_call.1} parent=1 // pred_region
      _
    $region9: #{tpu_custom_call.1} parent=1 // pred_fallthru
      _
    // Predicated region
    $region10: #{tpu_custom_call.1} parent=1 // pred_check
      _
    $region11: #{tpu_custom_call.1} parent=1 // pred_check_branch
      %36 = sbr.rel (0) target = $region13
    $region12: #{tpu_custom_call.1} parent=1 // pred_region
      _
    $region13: #{tpu_custom_call.1} parent=1 // pred_fallthru
      _
    // Predicated region
    $region14: #{tpu_custom_call.1} parent=1 // pred_check
      _
    $region15: #{tpu_custom_call.1} parent=1 // pred_check_branch
      %38 = sbr.rel (0) target = $region17
    $region16: #{tpu_custom_call.1} parent=1 // pred_region
      _
    $region17: #{tpu_custom_call.1} parent=1 // pred_fallthru
      _
    // Predicated region
    $region18: #{tpu_custom_call.1} parent=1 // pred_check
      _
    $region19: #{tpu_custom_call.1} parent=1 // pred_check_branch
      %40 = sbr.rel (0) target = $region21
    $region20: #{tpu_custom_call.1} parent=1 // pred_region
      _
    $region21: #{tpu_custom_call.1} parent=1 // pred_fallthru
      _
    // Predicated region
    $region22: #{tpu_custom_call.1} parent=1 // pred_check
      _
    $region23: #{tpu_custom_call.1} parent=1 // pred_check_branch
      %42 = sbr.rel (0) target = $region25
    $region24: #{tpu_custom_call.1} parent=1 // pred_region
      _
    $region25: #{tpu_custom_call.1} parent=1 // pred_fallthru
      _
    // Predicated region
    $region26: #{tpu_custom_call.1} parent=1 // pred_check
      _
    $region27: #{tpu_custom_call.1} parent=1 // pred_check_branch
      %44 = sbr.rel (0) target = $region29
    $region28: #{tpu_custom_call.1} parent=1 // pred_region
      _
    $region29: #{tpu_custom_call.1} parent=1 // pred_fallthru
      _
    // Predicated region
    $region30: #{tpu_custom_call.1} parent=1 // pred_check
      _
    $region31: #{tpu_custom_call.1} parent=1 // pred_check_branch
      %46 = sbr.rel (0) target = $region33
    $region32: #{tpu_custom_call.1} parent=1 // pred_region
      _
    $region33: #{tpu_custom_call.1} parent=1 // pred_fallthru
      _
    // Predicated region
    $region34: #{tpu_custom_call.1} parent=1 // pred_check
      _
    $region35: #{tpu_custom_call.1} parent=1 // pred_check_branch
      %48 = sbr.rel (0) target = $region37
    $region36: #{tpu_custom_call.1} parent=1 // pred_region
      _
    $region37: #{tpu_custom_call.1} parent=1 // pred_fallthru
      _
    // Predicated region
    $region38: #{tpu_custom_call.1} parent=1 // pred_check
      _
    $region39: #{tpu_custom_call.1} parent=1 // pred_check_branch
      %50 = sbr.rel (0) target = $region41
    $region40: #{tpu_custom_call.1} parent=1 // pred_region
      _
    $region41: #{tpu_custom_call.1} parent=1 // pred_fallthru
      _
    // Predicated region
    $region42: #{tpu_custom_call.1} parent=1 // pred_check
      _
    $region43: #{tpu_custom_call.1} parent=1 // pred_check_branch
      %52 = sbr.rel (0) target = $region45
    $region44: #{tpu_custom_call.1} parent=1 // pred_region
      _
    $region45: #{tpu_custom_call.1} parent=1 // pred_fallthru
      _
    // Predicated region
    $region46: #{tpu_custom_call.1} parent=1 // pred_check
      _
    $region47: #{tpu_custom_call.1} parent=1 // pred_check_branch
      %54 = sbr.rel (0) target = $region49
    $region48: #{tpu_custom_call.1} parent=1 // pred_region
      _
    $region49: #{tpu_custom_call.1} parent=1 // pred_fallthru
      _
    // Predicated region
    $region50: #{tpu_custom_call.1} parent=1 // pred_check
      _
    $region51: #{tpu_custom_call.1} parent=1 // pred_check_branch
      %56 = sbr.rel (0) target = $region53
    $region52: #{tpu_custom_call.1} parent=1 // pred_region
      _
    $region53: #{tpu_custom_call.1} parent=1 // pred_fallthru
      _
    // Predicated region
    $region54: #{tpu_custom_call.1} parent=1 // pred_check
      _
    $region55: #{tpu_custom_call.1} parent=1 // pred_check_branch
      %58 = sbr.rel (0) target = $region57
    $region56: #{tpu_custom_call.1} parent=1 // pred_region
      _
    $region57: #{tpu_custom_call.1} parent=1 // pred_fallthru
      _
    // Predicated region
    $region58: #{tpu_custom_call.1} parent=1 // pred_check
      _
    $region59: #{tpu_custom_call.1} parent=1 // pred_check_branch
      %60 = sbr.rel (0) target = $region61
    $region60: #{tpu_custom_call.1} parent=1 // pred_region
      _
    $region61: #{tpu_custom_call.1} parent=1 // pred_fallthru
      _
    // Predicated region
    $region62: #{tpu_custom_call.1} parent=1 // pred_check
      _
    $region63: #{tpu_custom_call.1} parent=1 // pred_check_branch
      %62 = sbr.rel (0) target = $region65
    $region64: #{tpu_custom_call.1} parent=1 // pred_region
      _
    $region65: #{tpu_custom_call.1} parent=1 // pred_fallthru
      _
    // Predicated region
    $region66: #{tpu_custom_call.1} parent=1 // pred_check
      _
    $region67: #{tpu_custom_call.1} parent=1 // pred_check_branch
      %64 = sbr.rel (0) target = $region69
    $region68: #{tpu_custom_call.1} parent=1 // pred_region
      _
    $region69: #{tpu_custom_call.1} parent=1 // pred_fallthru
      _
    // Predicated region
    $region70: #{tpu_custom_call.1} parent=1 // pred_check
      _
    $region71: #{tpu_custom_call.1} parent=1 // pred_check_branch
      %66 = sbr.rel (0) target = $region73
    $region72: #{tpu_custom_call.1} parent=1 // pred_region
      _
    $region73: #{tpu_custom_call.1} parent=1 // pred_fallthru
      _
    // Predicated region
    $region74: #{tpu_custom_call.1} parent=1 // pred_check
      _
    $region75: #{tpu_custom_call.1} parent=1 // pred_check_branch
      %68 = sbr.rel (0) target = $region77
    $region76: #{tpu_custom_call.1} parent=1 // pred_region
      _
    $region77: #{tpu_custom_call.1} parent=1 // pred_fallthru
      _
    // Predicated region
    $region78: #{tpu_custom_call.1} parent=1 // pred_check
      _
    $region79: #{tpu_custom_call.1} parent=1 // pred_check_branch
      %70 = sbr.rel (0) target = $region81
    $region80: #{tpu_custom_call.1} parent=1 // pred_region
      _
    $region81: #{tpu_custom_call.1} parent=1 // pred_fallthru
      _
    // Predicated region
    $region82: #{tpu_custom_call.1} parent=1 // pred_check
      _
    $region83: #{tpu_custom_call.1} parent=1 // pred_check_branch
      %72 = sbr.rel (0) target = $region85
    $region84: #{tpu_custom_call.1} parent=1 // pred_region
      _
    $region85: #{tpu_custom_call.1} parent=1 // pred_fallthru
      _
    // Predicated region
    $region86: #{tpu_custom_call.1} parent=1 // pred_check
      _
    $region87: #{tpu_custom_call.1} parent=1 // pred_check_branch
      %74 = sbr.rel (0) target = $region89
    $region88: #{tpu_custom_call.1} parent=1 // pred_region
      _
    $region89: #{tpu_custom_call.1} parent=1 // pred_fallthru
      _
    // Predicated region
    $region90: #{tpu_custom_call.1} parent=1 // pred_check
      _
    $region91: #{tpu_custom_call.1} parent=1 // pred_check_branch
      %76 = sbr.rel (0) target = $region93
    $region92: #{tpu_custom_call.1} parent=1 // pred_region
      _
    $region93: #{tpu_custom_call.1} parent=1 // pred_fallthru
      _
    // Predicated region
    $region94: #{tpu_custom_call.1} parent=1 // pred_check
      _
    $region95: #{tpu_custom_call.1} parent=1 // pred_check_branch
      %78 = sbr.rel (0) target = $region97
    $region96: #{tpu_custom_call.1} parent=1 // pred_region
      _
    $region97: #{tpu_custom_call.1} parent=1 // pred_fallthru
      _
    // Predicated region
    $region98: #{tpu_custom_call.1} parent=1 // pred_check
      _
    $region99: #{tpu_custom_call.1} parent=1 // pred_check_branch
      %80 = sbr.rel (0) target = $region101
    $region100: #{tpu_custom_call.1} parent=1 // pred_region
      _
    $region101: #{tpu_custom_call.1} parent=1 // pred_fallthru
      _
    %v81 = vld [vmem:[%s0] sm:$0xff]
    %v82 = vld [vmem:[%s0 + $0x8] sm:$0xff]
    %v83 = vld [vmem:[%s0 + $0x10] sm:$0xff]
    %v84 = vld [vmem:[%s0 + $0x18] sm:$0xff]
    %v85 = vld [vmem:[%s16] sm:$0x1]
    %v87 = vlaneseq
    %v88 = vshrl.u32 %v87, 7
    %v89 = vsub.s32 0, %v88
    %v90 = vrot.slane %v85, %v89
    %v92 = vmul.f32 %v81, %v90
    %v93 = vmul.f32 %v82, %v90
    %v94 = vmul.f32 %v83, %v90
    %v95 = vmul.f32 %v84, %v90
    %v96 = vld [vmem:[%s17] sm:$0x1]
    %v98 = vlaneseq
    %v99 = vshrl.u32 %v98, 7
    %v100 = vsub.s32 0, %v99
    %v101 = vrot.slane %v96, %v100
    %v103 = vadd.f32 %v92, %v101
    %v104 = vadd.f32 %v93, %v101
    %v105 = vadd.f32 %v94, %v101
    %v106 = vadd.f32 %v95, %v101
    %v107 = vld [vmem:[%s1] sm:$0xff]
    %v108 = vld [vmem:[%s1 + $0x8] sm:$0xff]
    %v109 = vld [vmem:[%s1 + $0x10] sm:$0xff]
    %v110 = vld [vmem:[%s1 + $0x18] sm:$0xff]
    %v111 = vld [vmem:[%s1 + $0x20] sm:$0xff]
    %v112 = vld [vmem:[%s1 + $0x28] sm:$0xff]
    %v113 = vld [vmem:[%s1 + $0x30] sm:$0xff]
    %v114 = vld [vmem:[%s1 + $0x38] sm:$0xff]
    %v115 = vld [vmem:[%s1 + $0x40] sm:$0xff]
    %v116 = vld [vmem:[%s1 + $0x48] sm:$0xff]
    %v117 = vld [vmem:[%s1 + $0x50] sm:$0xff]
    %v118 = vld [vmem:[%s1 + $0x58] sm:$0xff]
    %v119 = vld [vmem:[%s1 + $0x60] sm:$0xff]
    %v120 = vld [vmem:[%s1 + $0x68] sm:$0xff]
    %v121 = vld [vmem:[%s1 + $0x70] sm:$0xff]
    %v122 = vld [vmem:[%s1 + $0x78] sm:$0xff]
    %v123 = vld [vmem:[%s1 + $0x80] sm:$0xff]
    %v124 = vld [vmem:[%s1 + $0x88] sm:$0xff]
    %v125 = vld [vmem:[%s1 + $0x90] sm:$0xff]
    %v126 = vld [vmem:[%s1 + $0x98] sm:$0xff]
    %v127 = vld [vmem:[%s8] sm:$0xff]
    %v128 = vld [vmem:[%s8 + $0x8] sm:$0xff]
    %v129 = vld [vmem:[%s9] sm:$0x1]
    %v131 = vlaneseq
    %v132 = vshrl.u32 %v131, 7
    %v133 = vsub.s32 0, %v132
    %v134 = vrot.slane %v129, %v133
    %vm136 = vcmask 130048
    %v138 = vsel %vm136, %v107, 0
    %v141 = vsel %vm136, %v108, 0
    %v144 = vsel %vm136, %v109, 0
    %v147 = vsel %vm136, %v110, 0
    %v150 = vsel %vm136, %v111, 0
    %v153 = vsel %vm136, %v112, 0
    %v156 = vsel %vm136, %v113, 0
    %v159 = vsel %vm136, %v114, 0
    %v162 = vsel %vm136, %v115, 0
    %v165 = vsel %vm136, %v116, 0
    %v168 = vsel %vm136, %v117, 0
    %v171 = vsel %vm136, %v118, 0
    %v174 = vsel %vm136, %v119, 0
    %v177 = vsel %vm136, %v120, 0
    %v180 = vsel %vm136, %v121, 0
    %v183 = vsel %vm136, %v122, 0
    %v186 = vsel %vm136, %v123, 0
    %v189 = vsel %vm136, %v124, 0
    %v192 = vsel %vm136, %v125, 0
    %v195 = vsel %vm136, %v126, 0
    %197 = vmatprep.subr.mxu0 0.0
    %198 = vmatpush1.msra.mxu0 %v127
    %199 = vmatprep.subr.mxu0 0.0
    %200 = vmatpush1.msra.mxu0 %v128
    %201 = vmatprep.subr.mxu0 0.0
    %202 = vmatpush1.msra.mxu0 0.0
    %203 = vmatprep.subr.mxu0 0.0
    %204 = vmatpush1.msra.mxu0 0.0
    %205 = vmatprep.subr.mxu0 0.0
    %206 = vmatpush1.msra.mxu0 0.0
    %207 = vmatprep.subr.mxu0 0.0
    %208 = vmatpush1.msra.mxu0 0.0
    %209 = vmatprep.subr.mxu0 0.0
    %210 = vmatpush1.msra.mxu0 0.0
    %211 = vmatprep.subr.mxu0 0.0
    %212 = vmatpush1.msra.mxu0 0.0
    %213 = vmatprep.subr.mxu0 0.0
    %214 = vmatpush1.msra.mxu0 0.0
    %215 = vmatprep.subr.mxu0 0.0
    %216 = vmatpush1.msra.mxu0 0.0
    %217 = vmatprep.subr.mxu0 0.0
    %218 = vmatpush1.msra.mxu0 0.0
    %219 = vmatprep.subr.mxu0 0.0
    %220 = vmatpush1.msra.mxu0 0.0
    %221 = vmatprep.subr.mxu0 0.0
    %222 = vmatpush1.msra.mxu0 0.0
    %223 = vmatprep.subr.mxu0 0.0
    %224 = vmatpush1.msra.mxu0 0.0
    %225 = vmatprep.subr.mxu0 0.0
    %226 = vmatpush1.msra.mxu0 0.0
    %227 = vmatprep.subr.mxu0 0.0
    %228 = vmatpush1.msra.mxu0 0.0
    %229 = vmatprep.subr.mxu0 0.0
    %230 = vmatpush1.msra.mxu0 0.0
    %231 = vmatprep.subr.mxu0 0.0
    %232 = vmatpush1.msra.mxu0 0.0
    %233 = vmatprep.subr.mxu0 0.0
    %234 = vmatpush1.msra.mxu0 0.0
    %235 = vmatprep.subr.mxu0 0.0
    %236 = vmatpush1.msra.mxu0 0.0
    %237 = vmatprep.subr.mxu0 0.0
    %238 = vmatpush1.msra.mxu0 0.0
    %239 = vmatprep.subr.mxu0 0.0
    %240 = vmatpush1.msra.mxu0 0.0
    %241 = vmatprep.subr.mxu0 0.0
    %242 = vmatpush1.msra.mxu0 0.0
    %243 = vmatprep.subr.mxu0 0.0
    %244 = vmatpush1.msra.mxu0 0.0
    %245 = vmatprep.subr.mxu0 0.0
    %246 = vmatpush1.msra.mxu0 0.0
    %247 = vmatprep.subr.mxu0 0.0
    %248 = vmatpush1.msra.mxu0 0.0
    %249 = vmatprep.subr.mxu0 0.0
    %250 = vmatpush1.msra.mxu0 0.0
    %251 = vmatprep.subr.mxu0 0.0
    %252 = vmatpush1.msra.mxu0 0.0
    %253 = vmatprep.subr.mxu0 0.0
    %254 = vmatpush1.msra.mxu0 0.0
    %255 = vmatprep.subr.mxu0 0.0
    %256 = vmatpush1.msra.mxu0 0.0
    %257 = vmatprep.subr.mxu0 0.0
    %258 = vmatpush1.msra.mxu0 0.0
    %259 = vmatprep.subr.mxu0 0.0
    %260 = vmatpush1.msra.mxu0 0.0
    %261 = vmatprep.mubr.f32.mxu0 0.0
    %262 = vmatmul.mubr.f32.gmra.mrb[0].mxu0 %v138
    %v263 = vpop.f32.mrb[0].mxu0
    %v264 = vadd.f32 %v134, %v263
    %v265 = vpop.f32.mrb[0].mxu0
    %266 = vmatprep.mubr.f32.mxu0 0.0
    %267 = vmatmul.mubr.f32.gmra.mrb[0].mxu0 %v141
    %v268 = vpop.f32.mrb[0].mxu0
    %v269 = vadd.f32 %v134, %v268
    %v270 = vpop.f32.mrb[0].mxu0
    %271 = vmatprep.mubr.f32.mxu0 0.0
    %272 = vmatmul.mubr.f32.gmra.mrb[0].mxu0 %v144
    %v273 = vpop.f32.mrb[0].mxu0
    %v274 = vadd.f32 %v134, %v273
    %v275 = vpop.f32.mrb[0].mxu0
    %276 = vmatprep.mubr.f32.mxu0 0.0
    %277 = vmatmul.mubr.f32.gmra.mrb[0].mxu0 %v147
    %v278 = vpop.f32.mrb[0].mxu0
    %v279 = vadd.f32 %v134, %v278
    %v280 = vpop.f32.mrb[0].mxu0
    %281 = vmatprep.mubr.f32.mxu0 0.0
    %282 = vmatmul.mubr.f32.gmra.mrb[0].mxu0 %v150
    %v283 = vpop.f32.mrb[0].mxu0
    %v284 = vadd.f32 %v134, %v283
    %v285 = vpop.f32.mrb[0].mxu0
    %286 = vmatprep.mubr.f32.mxu0 0.0
    %287 = vmatmul.mubr.f32.gmra.mrb[0].mxu0 %v153
    %v288 = vpop.f32.mrb[0].mxu0
    %v289 = vadd.f32 %v134, %v288
    %v290 = vpop.f32.mrb[0].mxu0
    %291 = vmatprep.mubr.f32.mxu0 0.0
    %292 = vmatmul.mubr.f32.gmra.mrb[0].mxu0 %v156
    %v293 = vpop.f32.mrb[0].mxu0
    %v294 = vadd.f32 %v134, %v293
    %v295 = vpop.f32.mrb[0].mxu0
    %296 = vmatprep.mubr.f32.mxu0 0.0
    %297 = vmatmul.mubr.f32.gmra.mrb[0].mxu0 %v159
    %v298 = vpop.f32.mrb[0].mxu0
    %v299 = vadd.f32 %v134, %v298
    %v300 = vpop.f32.mrb[0].mxu0
    %301 = vmatprep.mubr.f32.mxu0 0.0
    %302 = vmatmul.mubr.f32.gmra.mrb[0].mxu0 %v162
    %v303 = vpop.f32.mrb[0].mxu0
    %v304 = vadd.f32 %v134, %v303
    %v305 = vpop.f32.mrb[0].mxu0
    %306 = vmatprep.mubr.f32.mxu0 0.0
    %307 = vmatmul.mubr.f32.gmra.mrb[0].mxu0 %v165
    %v308 = vpop.f32.mrb[0].mxu0
    %v309 = vadd.f32 %v134, %v308
    %v310 = vpop.f32.mrb[0].mxu0
    %311 = vmatprep.mubr.f32.mxu0 0.0
    %312 = vmatmul.mubr.f32.gmra.mrb[0].mxu0 %v168
    %v313 = vpop.f32.mrb[0].mxu0
    %v314 = vadd.f32 %v134, %v313
    %v315 = vpop.f32.mrb[0].mxu0
    %316 = vmatprep.mubr.f32.mxu0 0.0
    %317 = vmatmul.mubr.f32.gmra.mrb[0].mxu0 %v171
    %v318 = vpop.f32.mrb[0].mxu0
    %v319 = vadd.f32 %v134, %v318
    %v320 = vpop.f32.mrb[0].mxu0
    %321 = vmatprep.mubr.f32.mxu0 0.0
    %322 = vmatmul.mubr.f32.gmra.mrb[0].mxu0 %v174
    %v323 = vpop.f32.mrb[0].mxu0
    %v324 = vadd.f32 %v134, %v323
    %v325 = vpop.f32.mrb[0].mxu0
    %326 = vmatprep.mubr.f32.mxu0 0.0
    %327 = vmatmul.mubr.f32.gmra.mrb[0].mxu0 %v177
    %v328 = vpop.f32.mrb[0].mxu0
    %v329 = vadd.f32 %v134, %v328
    %v330 = vpop.f32.mrb[0].mxu0
    %331 = vmatprep.mubr.f32.mxu0 0.0
    %332 = vmatmul.mubr.f32.gmra.mrb[0].mxu0 %v180
    %v333 = vpop.f32.mrb[0].mxu0
    %v334 = vadd.f32 %v134, %v333
    %v335 = vpop.f32.mrb[0].mxu0
    %336 = vmatprep.mubr.f32.mxu0 0.0
    %337 = vmatmul.mubr.f32.gmra.mrb[0].mxu0 %v183
    %v338 = vpop.f32.mrb[0].mxu0
    %v339 = vadd.f32 %v134, %v338
    %v340 = vpop.f32.mrb[0].mxu0
    %341 = vmatprep.mubr.f32.mxu0 0.0
    %342 = vmatmul.mubr.f32.gmra.mrb[0].mxu0 %v186
    %v343 = vpop.f32.mrb[0].mxu0
    %v344 = vadd.f32 %v134, %v343
    %v345 = vpop.f32.mrb[0].mxu0
    %346 = vmatprep.mubr.f32.mxu0 0.0
    %347 = vmatmul.mubr.f32.gmra.mrb[0].mxu0 %v189
    %v348 = vpop.f32.mrb[0].mxu0
    %v349 = vadd.f32 %v134, %v348
    %v350 = vpop.f32.mrb[0].mxu0
    %351 = vmatprep.mubr.f32.mxu0 0.0
    %352 = vmatmul.mubr.f32.gmra.mrb[0].mxu0 %v192
    %v353 = vpop.f32.mrb[0].mxu0
    %v354 = vadd.f32 %v134, %v353
    %v355 = vpop.f32.mrb[0].mxu0
    %356 = vmatprep.mubr.f32.mxu0 0.0
    %357 = vmatmul.mubr.f32.gmra.mrb[0].mxu0 %v195
    %v358 = vpop.f32.mrb[0].mxu0
    %v359 = vadd.f32 %v134, %v358
    %v360 = vpop.f32.mrb[0].mxu0
    %361 = vdwg.mxu0
    %v362 = vtanh.pop %v264
    %v363 = vtanh.pop %v269
    %v364 = vtanh.pop %v274
    %v365 = vtanh.pop %v279
    %v366 = vtanh.pop %v284
    %v367 = vtanh.pop %v289
    %v368 = vtanh.pop %v294
    %v369 = vtanh.pop %v299
    %v370 = vtanh.pop %v304
    %v371 = vtanh.pop %v309
    %v372 = vtanh.pop %v314
    %v373 = vtanh.pop %v319
    %v374 = vtanh.pop %v324
    %v375 = vtanh.pop %v329
    %v376 = vtanh.pop %v334
    %v377 = vtanh.pop %v339
    %v378 = vtanh.pop %v344
    %v379 = vtanh.pop %v349
    %v380 = vtanh.pop %v354
    %v381 = vtanh.pop %v359
    %v382 = vld [vmem:[%s10] sm:$0xff]
    %v383 = vld [vmem:[%s10 + $0x8] sm:$0xff]
    %v385 = vsel %vm136, %v362, 0
    %v388 = vsel %vm136, %v363, 0
    %v391 = vsel %vm136, %v364, 0
    %v394 = vsel %vm136, %v365, 0
    %v397 = vsel %vm136, %v366, 0
    %v400 = vsel %vm136, %v367, 0
    %v403 = vsel %vm136, %v368, 0
    %v406 = vsel %vm136, %v369, 0
    %v409 = vsel %vm136, %v370, 0
    %v412 = vsel %vm136, %v371, 0
    %v415 = vsel %vm136, %v372, 0
    %v418 = vsel %vm136, %v373, 0
    %v421 = vsel %vm136, %v374, 0
    %v424 = vsel %vm136, %v375, 0
    %v427 = vsel %vm136, %v376, 0
    %v430 = vsel %vm136, %v377, 0
    %v433 = vsel %vm136, %v378, 0
    %v436 = vsel %vm136, %v379, 0
    %v439 = vsel %vm136, %v380, 0
    %v442 = vsel %vm136, %v381, 0
    %444 = vmatprep.subr.mxu0 0.0
    %445 = vmatpush1.msra.mxu0 %v382
    %446 = vmatprep.subr.mxu0 0.0
    %447 = vmatpush1.msra.mxu0 %v383
    %448 = vmatprep.subr.mxu0 0.0
    %449 = vmatpush1.msra.mxu0 0.0
    %450 = vmatprep.subr.mxu0 0.0
    %451 = vmatpush1.msra.mxu0 0.0
    %452 = vmatprep.subr.mxu0 0.0
    %453 = vmatpush1.msra.mxu0 0.0
    %454 = vmatprep.subr.mxu0 0.0
    %455 = vmatpush1.msra.mxu0 0.0
    %456 = vmatprep.subr.mxu0 0.0
    %457 = vmatpush1.msra.mxu0 0.0
    %458 = vmatprep.subr.mxu0 0.0
    %459 = vmatpush1.msra.mxu0 0.0
    %460 = vmatprep.subr.mxu0 0.0
    %461 = vmatpush1.msra.mxu0 0.0
    %462 = vmatprep.subr.mxu0 0.0
    %463 = vmatpush1.msra.mxu0 0.0
    %464 = vmatprep.subr.mxu0 0.0
    %465 = vmatpush1.msra.mxu0 0.0
    %466 = vmatprep.subr.mxu0 0.0
    %467 = vmatpush1.msra.mxu0 0.0
    %468 = vmatprep.subr.mxu0 0.0
    %469 = vmatpush1.msra.mxu0 0.0
    %470 = vmatprep.subr.mxu0 0.0
    %471 = vmatpush1.msra.mxu0 0.0
    %472 = vmatprep.subr.mxu0 0.0
    %473 = vmatpush1.msra.mxu0 0.0
    %474 = vmatprep.subr.mxu0 0.0
    %475 = vmatpush1.msra.mxu0 0.0
    %476 = vmatprep.subr.mxu0 0.0
    %477 = vmatpush1.msra.mxu0 0.0
    %478 = vmatprep.subr.mxu0 0.0
    %479 = vmatpush1.msra.mxu0 0.0
    %480 = vmatprep.subr.mxu0 0.0
    %481 = vmatpush1.msra.mxu0 0.0
    %482 = vmatprep.subr.mxu0 0.0
    %483 = vmatpush1.msra.mxu0 0.0
    %484 = vmatprep.subr.mxu0 0.0
    %485 = vmatpush1.msra.mxu0 0.0
    %486 = vmatprep.subr.mxu0 0.0
    %487 = vmatpush1.msra.mxu0 0.0
    %488 = vmatprep.subr.mxu0 0.0
    %489 = vmatpush1.msra.mxu0 0.0
    %490 = vmatprep.subr.mxu0 0.0
    %491 = vmatpush1.msra.mxu0 0.0
    %492 = vmatprep.subr.mxu0 0.0
    %493 = vmatpush1.msra.mxu0 0.0
    %494 = vmatprep.subr.mxu0 0.0
    %495 = vmatpush1.msra.mxu0 0.0
    %496 = vmatprep.subr.mxu0 0.0
    %497 = vmatpush1.msra.mxu0 0.0
    %498 = vmatprep.subr.mxu0 0.0
    %499 = vmatpush1.msra.mxu0 0.0
    %500 = vmatprep.subr.mxu0 0.0
    %501 = vmatpush1.msra.mxu0 0.0
    %502 = vmatprep.subr.mxu0 0.0
    %503 = vmatpush1.msra.mxu0 0.0
    %504 = vmatprep.subr.mxu0 0.0
    %505 = vmatpush1.msra.mxu0 0.0
    %506 = vmatprep.subr.mxu0 0.0
    %507 = vmatpush1.msra.mxu0 0.0
    %508 = vmatprep.mubr.f32.mxu0 0.0
    %509 = vmatmul.mubr.f32.gmra.mrb[0].mxu0 %v385
    %v510 = vpop.f32.mrb[0].mxu0
    %v511 = vadd.f32 0.0, %v510
    %v512 = vpop.f32.mrb[0].mxu0
    %513 = vmatprep.mubr.f32.mxu0 0.0
    %514 = vmatmul.mubr.f32.gmra.mrb[0].mxu0 %v388
    %v515 = vpop.f32.mrb[0].mxu0
    %v516 = vadd.f32 0.0, %v515
    %v517 = vpop.f32.mrb[0].mxu0
    %518 = vmatprep.mubr.f32.mxu0 0.0
    %519 = vmatmul.mubr.f32.gmra.mrb[0].mxu0 %v391
    %v520 = vpop.f32.mrb[0].mxu0
    %v521 = vadd.f32 0.0, %v520
    %v522 = vpop.f32.mrb[0].mxu0
    %523 = vmatprep.mubr.f32.mxu0 0.0
    %524 = vmatmul.mubr.f32.gmra.mrb[0].mxu0 %v394
    %v525 = vpop.f32.mrb[0].mxu0
    %v526 = vadd.f32 0.0, %v525
    %v527 = vpop.f32.mrb[0].mxu0
    %528 = vmatprep.mubr.f32.mxu0 0.0
    %529 = vmatmul.mubr.f32.gmra.mrb[0].mxu0 %v397
    %v530 = vpop.f32.mrb[0].mxu0
    %v531 = vadd.f32 0.0, %v530
    %v532 = vpop.f32.mrb[0].mxu0
    %533 = vmatprep.mubr.f32.mxu0 0.0
    %534 = vmatmul.mubr.f32.gmra.mrb[0].mxu0 %v400
    %v535 = vpop.f32.mrb[0].mxu0
    %v536 = vadd.f32 0.0, %v535
    %v537 = vpop.f32.mrb[0].mxu0
    %538 = vmatprep.mubr.f32.mxu0 0.0
    %539 = vmatmul.mubr.f32.gmra.mrb[0].mxu0 %v403
    %v540 = vpop.f32.mrb[0].mxu0
    %v541 = vadd.f32 0.0, %v540
    %v542 = vpop.f32.mrb[0].mxu0
    %543 = vmatprep.mubr.f32.mxu0 0.0
    %544 = vmatmul.mubr.f32.gmra.mrb[0].mxu0 %v406
    %v545 = vpop.f32.mrb[0].mxu0
    %v546 = vadd.f32 0.0, %v545
    %v547 = vpop.f32.mrb[0].mxu0
    %548 = vmatprep.mubr.f32.mxu0 0.0
    %549 = vmatmul.mubr.f32.gmra.mrb[0].mxu0 %v409
    %v550 = vpop.f32.mrb[0].mxu0
    %v551 = vadd.f32 0.0, %v550
    %v552 = vpop.f32.mrb[0].mxu0
    %553 = vmatprep.mubr.f32.mxu0 0.0
    %554 = vmatmul.mubr.f32.gmra.mrb[0].mxu0 %v412
    %v555 = vpop.f32.mrb[0].mxu0
    %v556 = vadd.f32 0.0, %v555
    %v557 = vpop.f32.mrb[0].mxu0
    %558 = vmatprep.mubr.f32.mxu0 0.0
    %559 = vmatmul.mubr.f32.gmra.mrb[0].mxu0 %v415
    %v560 = vpop.f32.mrb[0].mxu0
    %v561 = vadd.f32 0.0, %v560
    %v562 = vpop.f32.mrb[0].mxu0
    %563 = vmatprep.mubr.f32.mxu0 0.0
    %564 = vmatmul.mubr.f32.gmra.mrb[0].mxu0 %v418
    %v565 = vpop.f32.mrb[0].mxu0
    %v566 = vadd.f32 0.0, %v565
    %v567 = vpop.f32.mrb[0].mxu0
    %568 = vmatprep.mubr.f32.mxu0 0.0
    %569 = vmatmul.mubr.f32.gmra.mrb[0].mxu0 %v421
    %v570 = vpop.f32.mrb[0].mxu0
    %v571 = vadd.f32 0.0, %v570
    %v572 = vpop.f32.mrb[0].mxu0
    %573 = vmatprep.mubr.f32.mxu0 0.0
    %574 = vmatmul.mubr.f32.gmra.mrb[0].mxu0 %v424
    %v575 = vpop.f32.mrb[0].mxu0
    %v576 = vadd.f32 0.0, %v575
    %v577 = vpop.f32.mrb[0].mxu0
    %578 = vmatprep.mubr.f32.mxu0 0.0
    %579 = vmatmul.mubr.f32.gmra.mrb[0].mxu0 %v427
    %v580 = vpop.f32.mrb[0].mxu0
    %v581 = vadd.f32 0.0, %v580
    %v582 = vpop.f32.mrb[0].mxu0
    %583 = vmatprep.mubr.f32.mxu0 0.0
    %584 = vmatmul.mubr.f32.gmra.mrb[0].mxu0 %v430
    %v585 = vpop.f32.mrb[0].mxu0
    %v586 = vadd.f32 0.0, %v585
    %v587 = vpop.f32.mrb[0].mxu0
    %588 = vmatprep.mubr.f32.mxu0 0.0
    %589 = vmatmul.mubr.f32.gmra.mrb[0].mxu0 %v433
    %v590 = vpop.f32.mrb[0].mxu0
    %v591 = vadd.f32 0.0, %v590
    %v592 = vpop.f32.mrb[0].mxu0
    %593 = vmatprep.mubr.f32.mxu0 0.0
    %594 = vmatmul.mubr.f32.gmra.mrb[0].mxu0 %v436
    %v595 = vpop.f32.mrb[0].mxu0
    %v596 = vadd.f32 0.0, %v595
    %v597 = vpop.f32.mrb[0].mxu0
    %598 = vmatprep.mubr.f32.mxu0 0.0
    %599 = vmatmul.mubr.f32.gmra.mrb[0].mxu0 %v439
    %v600 = vpop.f32.mrb[0].mxu0
    %v601 = vadd.f32 0.0, %v600
    %v602 = vpop.f32.mrb[0].mxu0
    %603 = vmatprep.mubr.f32.mxu0 0.0
    %604 = vmatmul.mubr.f32.gmra.mrb[0].mxu0 %v442
    %v605 = vpop.f32.mrb[0].mxu0
    %v606 = vadd.f32 0.0, %v605
    %v607 = vpop.f32.mrb[0].mxu0
    %608 = vdwg.mxu0
    %v609 = vmax.f32 %v511, %v531
    %v610 = vmax.f32 %v516, %v536
    %v611 = vmax.f32 %v521, %v541
    %v612 = vmax.f32 %v526, %v546
    %v613 = vmax.f32 %v609, %v551
    %v614 = vmax.f32 %v610, %v556
    %v615 = vmax.f32 %v611, %v561
    %v616 = vmax.f32 %v612, %v566
    %v617 = vmax.f32 %v613, %v571
    %v618 = vmax.f32 %v614, %v576
    %v619 = vmax.f32 %v615, %v581
    %v620 = vmax.f32 %v616, %v586
    %v621 = vmax.f32 %v617, %v591
    %v622 = vmax.f32 %v618, %v596
    %v623 = vmax.f32 %v619, %v601
    %v624 = vmax.f32 %v620, %v606
    %v625 = vsub.f32 %v511, %v621
    %v626 = vsub.f32 %v516, %v622
    %v627 = vsub.f32 %v521, %v623
    %v628 = vsub.f32 %v526, %v624
    %v629 = vmul.f32 %v625, 1.442695
    %v630 = vpow.pop %v629
    %v631 = vmul.f32 %v626, 1.442695
    %v632 = vpow.pop %v631
    %v633 = vmul.f32 %v627, 1.442695
    %v634 = vpow.pop %v633
    %v635 = vmul.f32 %v628, 1.442695
    %v636 = vpow.pop %v635
    %v637 = vsub.f32 %v531, %v621
    %v638 = vsub.f32 %v536, %v622
    %v639 = vsub.f32 %v541, %v623
    %v640 = vsub.f32 %v546, %v624
    %v641 = vmul.f32 %v637, 1.442695
    %v642 = vpow.pop %v641
    %v643 = vmul.f32 %v638, 1.442695
    %v644 = vpow.pop %v643
    %v645 = vmul.f32 %v639, 1.442695
    %v646 = vpow.pop %v645
    %v647 = vmul.f32 %v640, 1.442695
    %v648 = vpow.pop %v647
    %v649 = vsub.f32 %v551, %v621
    %v650 = vsub.f32 %v556, %v622
    %v651 = vsub.f32 %v561, %v623
    %v652 = vsub.f32 %v566, %v624
    %v653 = vmul.f32 %v649, 1.442695
    %v654 = vpow.pop %v653
    %v655 = vmul.f32 %v650, 1.442695
    %v656 = vpow.pop %v655
    %v657 = vmul.f32 %v651, 1.442695
    %v658 = vpow.pop %v657
    %v659 = vmul.f32 %v652, 1.442695
    %v660 = vpow.pop %v659
    %v661 = vsub.f32 %v571, %v621
    %v662 = vsub.f32 %v576, %v622
    %v663 = vsub.f32 %v581, %v623
    %v664 = vsub.f32 %v586, %v624
    %v665 = vmul.f32 %v661, 1.442695
    %v666 = vpow.pop %v665
    %v667 = vmul.f32 %v662, 1.442695
    %v668 = vpow.pop %v667
    %v669 = vmul.f32 %v663, 1.442695
    %v670 = vpow.pop %v669
    %v671 = vmul.f32 %v664, 1.442695
    %v672 = vpow.pop %v671
    %v673 = vsub.f32 %v591, %v621
    %v674 = vsub.f32 %v596, %v622
    %v675 = vsub.f32 %v601, %v623
    %v676 = vsub.f32 %v606, %v624
    %v677 = vmul.f32 %v673, 1.442695
    %v678 = vpow.pop %v677
    %v679 = vmul.f32 %v674, 1.442695
    %v680 = vpow.pop %v679
    %v681 = vmul.f32 %v675, 1.442695
    %v682 = vpow.pop %v681
    %v683 = vmul.f32 %v676, 1.442695
    %v684 = vpow.pop %v683
    %v685 = vadd.f32 %v630, %v642
    %v686 = vadd.f32 %v632, %v644
    %v687 = vadd.f32 %v634, %v646
    %v688 = vadd.f32 %v636, %v648
    %v689 = vadd.f32 %v685, %v654
    %v690 = vadd.f32 %v686, %v656
    %v691 = vadd.f32 %v687, %v658
    %v692 = vadd.f32 %v688, %v660
    %v693 = vadd.f32 %v689, %v666
    %v694 = vadd.f32 %v690, %v668
    %v695 = vadd.f32 %v691, %v670
    %v696 = vadd.f32 %v692, %v672
    %v697 = vadd.f32 %v693, %v678
    %v698 = vadd.f32 %v694, %v680
    %v699 = vadd.f32 %v695, %v682
    %v700 = vadd.f32 %v696, %v684
    %v701 = vrcp.pop %v697
    %v702 = vrcp.pop %v698
    %v703 = vrcp.pop %v699
    %v704 = vrcp.pop %v700
    %v705 = vmul.f32 %v630, %v701
    %v706 = vmul.f32 %v632, %v702
    %v707 = vmul.f32 %v634, %v703
    %v708 = vmul.f32 %v636, %v704
    %710 = vset.pattern.permute.xlu0 0
    %711 = vperm.xlu0 %710, %v705
    %v712 = vpop.permute.xlu0 %711
    %715 = vset.pattern.permute.xlu0 0
    %716 = vperm.xlu0 %715, %v706
    %v717 = vpop.permute.xlu0 %716
    %720 = vset.pattern.permute.xlu0 0
    %721 = vperm.xlu0 %720, %v707
    %v722 = vpop.permute.xlu0 %721
    %725 = vset.pattern.permute.xlu0 0
    %726 = vperm.xlu0 %725, %v708
    %v727 = vpop.permute.xlu0 %726
    %v729 = vmul.f32 %v712, %v107
    %v730 = vmul.f32 %v717, %v108
    %v731 = vmul.f32 %v722, %v109
    %v732 = vmul.f32 %v727, %v110
    %v733 = vmul.f32 %v642, %v701
    %v734 = vmul.f32 %v644, %v702
    %v735 = vmul.f32 %v646, %v703
    %v736 = vmul.f32 %v648, %v704
    %738 = vset.pattern.permute.xlu0 0
    %739 = vperm.xlu0 %738, %v733
    %v740 = vpop.permute.xlu0 %739
    %743 = vset.pattern.permute.xlu0 0
    %744 = vperm.xlu0 %743, %v734
    %v745 = vpop.permute.xlu0 %744
    %748 = vset.pattern.permute.xlu0 0
    %749 = vperm.xlu0 %748, %v735
    %v750 = vpop.permute.xlu0 %749
    %753 = vset.pattern.permute.xlu0 0
    %754 = vperm.xlu0 %753, %v736
    %v755 = vpop.permute.xlu0 %754
    %v757 = vmul.f32 %v740, %v111
    %v758 = vmul.f32 %v745, %v112
    %v759 = vmul.f32 %v750, %v113
    %v760 = vmul.f32 %v755, %v114
    %v761 = vadd.f32 %v729, %v757
    %v762 = vadd.f32 %v730, %v758
    %v763 = vadd.f32 %v731, %v759
    %v764 = vadd.f32 %v732, %v760
    %v765 = vmul.f32 %v654, %v701
    %v766 = vmul.f32 %v656, %v702
    %v767 = vmul.f32 %v658, %v703
    %v768 = vmul.f32 %v660, %v704
    %770 = vset.pattern.permute.xlu0 0
    %771 = vperm.xlu0 %770, %v765
    %v772 = vpop.permute.xlu0 %771
    %775 = vset.pattern.permute.xlu0 0
    %776 = vperm.xlu0 %775, %v766
    %v777 = vpop.permute.xlu0 %776
    %780 = vset.pattern.permute.xlu0 0
    %781 = vperm.xlu0 %780, %v767
    %v782 = vpop.permute.xlu0 %781
    %785 = vset.pattern.permute.xlu0 0
    %786 = vperm.xlu0 %785, %v768
    %v787 = vpop.permute.xlu0 %786
    %v789 = vmul.f32 %v772, %v115
    %v790 = vmul.f32 %v777, %v116
    %v791 = vmul.f32 %v782, %v117
    %v792 = vmul.f32 %v787, %v118
    %v793 = vadd.f32 %v761, %v789
    %v794 = vadd.f32 %v762, %v790
    %v795 = vadd.f32 %v763, %v791
    %v796 = vadd.f32 %v764, %v792
    %v797 = vmul.f32 %v666, %v701
    %v798 = vmul.f32 %v668, %v702
    %v799 = vmul.f32 %v670, %v703
    %v800 = vmul.f32 %v672, %v704
    %802 = vset.pattern.permute.xlu0 0
    %803 = vperm.xlu0 %802, %v797
    %v804 = vpop.permute.xlu0 %803
    %807 = vset.pattern.permute.xlu0 0
    %808 = vperm.xlu0 %807, %v798
    %v809 = vpop.permute.xlu0 %808
    %812 = vset.pattern.permute.xlu0 0
    %813 = vperm.xlu0 %812, %v799
    %v814 = vpop.permute.xlu0 %813
    %817 = vset.pattern.permute.xlu0 0
    %818 = vperm.xlu0 %817, %v800
    %v819 = vpop.permute.xlu0 %818
    %v821 = vmul.f32 %v804, %v119
    %v822 = vmul.f32 %v809, %v120
    %v823 = vmul.f32 %v814, %v121
    %v824 = vmul.f32 %v819, %v122
    %v825 = vadd.f32 %v793, %v821
    %v826 = vadd.f32 %v794, %v822
    %v827 = vadd.f32 %v795, %v823
    %v828 = vadd.f32 %v796, %v824
    %v829 = vmul.f32 %v678, %v701
    %v830 = vmul.f32 %v680, %v702
    %v831 = vmul.f32 %v682, %v703
    %v832 = vmul.f32 %v684, %v704
    %834 = vset.pattern.permute.xlu0 0
    %835 = vperm.xlu0 %834, %v829
    %v836 = vpop.permute.xlu0 %835
    %839 = vset.pattern.permute.xlu0 0
    %840 = vperm.xlu0 %839, %v830
    %v841 = vpop.permute.xlu0 %840
    %844 = vset.pattern.permute.xlu0 0
    %845 = vperm.xlu0 %844, %v831
    %v846 = vpop.permute.xlu0 %845
    %849 = vset.pattern.permute.xlu0 0
    %850 = vperm.xlu0 %849, %v832
    %v851 = vpop.permute.xlu0 %850
    %v853 = vmul.f32 %v836, %v123
    %v854 = vmul.f32 %v841, %v124
    %v855 = vmul.f32 %v846, %v125
    %v856 = vmul.f32 %v851, %v126
    %v857 = vadd.f32 %v825, %v853
    %v858 = vadd.f32 %v826, %v854
    %v859 = vadd.f32 %v827, %v855
    %v860 = vadd.f32 %v828, %v856
    %v861 = vld [vmem:[%s4] sm:$0xff]
    %v862 = vld [vmem:[%s4 + $0x8] sm:$0xff]
    %v863 = vld [vmem:[%s4 + $0x10] sm:$0xff]
    %v864 = vld [vmem:[%s4 + $0x18] sm:$0xff]
    %v865 = vmax.f32 %v857, 0.0
    %v866 = vmax.f32 %v858, 0.0
    %v867 = vmax.f32 %v859, 0.0
    %v868 = vmax.f32 %v860, 0.0
    %vm869 = vcmask 261120
    %v871 = vsel %vm869, %v861, 0
    %v874 = vsel %vm869, %v862, 0
    %v877 = vsel %vm869, %v863, 0
    %v880 = vsel %vm869, %v864, 0
    %882 = vmatprep.subr.mxu0 0.0
    %883 = vmatpush1.msra.mxu0 %v865
    %884 = vmatprep.subr.mxu0 0.0
    %885 = vmatpush1.msra.mxu0 %v866
    %886 = vmatprep.subr.mxu0 0.0
    %887 = vmatpush1.msra.mxu0 %v867
    %888 = vmatprep.subr.mxu0 0.0
    %889 = vmatpush1.msra.mxu0 %v868
    %890 = vmatprep.subr.mxu0 0.0
    %891 = vmatpush1.msra.mxu0 0.0
    %892 = vmatprep.subr.mxu0 0.0
    %893 = vmatpush1.msra.mxu0 0.0
    %894 = vmatprep.subr.mxu0 0.0
    %895 = vmatpush1.msra.mxu0 0.0
    %896 = vmatprep.subr.mxu0 0.0
    %897 = vmatpush1.msra.mxu0 0.0
    %898 = vmatprep.subr.mxu0 0.0
    %899 = vmatpush1.msra.mxu0 0.0
    %900 = vmatprep.subr.mxu0 0.0
    %901 = vmatpush1.msra.mxu0 0.0
    %902 = vmatprep.subr.mxu0 0.0
    %903 = vmatpush1.msra.mxu0 0.0
    %904 = vmatprep.subr.mxu0 0.0
    %905 = vmatpush1.msra.mxu0 0.0
    %906 = vmatprep.subr.mxu0 0.0
    %907 = vmatpush1.msra.mxu0 0.0
    %908 = vmatprep.subr.mxu0 0.0
    %909 = vmatpush1.msra.mxu0 0.0
    %910 = vmatprep.subr.mxu0 0.0
    %911 = vmatpush1.msra.mxu0 0.0
    %912 = vmatprep.subr.mxu0 0.0
    %913 = vmatpush1.msra.mxu0 0.0
    %914 = vmatprep.subr.mxu0 0.0
    %915 = vmatpush1.msra.mxu0 0.0
    %916 = vmatprep.subr.mxu0 0.0
    %917 = vmatpush1.msra.mxu0 0.0
    %918 = vmatprep.subr.mxu0 0.0
    %919 = vmatpush1.msra.mxu0 0.0
    %920 = vmatprep.subr.mxu0 0.0
    %921 = vmatpush1.msra.mxu0 0.0
    %922 = vmatprep.subr.mxu0 0.0
    %923 = vmatpush1.msra.mxu0 0.0
    %924 = vmatprep.subr.mxu0 0.0
    %925 = vmatpush1.msra.mxu0 0.0
    %926 = vmatprep.subr.mxu0 0.0
    %927 = vmatpush1.msra.mxu0 0.0
    %928 = vmatprep.subr.mxu0 0.0
    %929 = vmatpush1.msra.mxu0 0.0
    %930 = vmatprep.subr.mxu0 0.0
    %931 = vmatpush1.msra.mxu0 0.0
    %932 = vmatprep.subr.mxu0 0.0
    %933 = vmatpush1.msra.mxu0 0.0
    %934 = vmatprep.subr.mxu0 0.0
    %935 = vmatpush1.msra.mxu0 0.0
    %936 = vmatprep.subr.mxu0 0.0
    %937 = vmatpush1.msra.mxu0 0.0
    %938 = vmatprep.subr.mxu0 0.0
    %939 = vmatpush1.msra.mxu0 0.0
    %940 = vmatprep.subr.mxu0 0.0
    %941 = vmatpush1.msra.mxu0 0.0
    %942 = vmatprep.subr.mxu0 0.0
    %943 = vmatpush1.msra.mxu0 0.0
    %944 = vmatprep.subr.mxu0 0.0
    %945 = vmatpush1.msra.mxu0 0.0
    %946 = vmatprep.mubr.f32.mxu0 0.0
    %947 = vmatmul.mubr.f32.gmra.mrb[0].mxu0 %v871
    %v948 = vpop.f32.mrb[0].mxu0
    %v949 = vadd.f32 1e-10, %v948
    %v950 = vpop.f32.mrb[0].mxu0
    %951 = vmatprep.mubr.f32.mxu0 0.0
    %952 = vmatmul.mubr.f32.gmra.mrb[0].mxu0 %v874
    %v953 = vpop.f32.mrb[0].mxu0
    %v954 = vadd.f32 1e-10, %v953
    %v955 = vpop.f32.mrb[0].mxu0
    %956 = vmatprep.mubr.f32.mxu0 0.0
    %957 = vmatmul.mubr.f32.gmra.mrb[0].mxu0 %v877
    %v958 = vpop.f32.mrb[0].mxu0
    %v959 = vadd.f32 1e-10, %v958
    %v960 = vpop.f32.mrb[0].mxu0
    %961 = vmatprep.mubr.f32.mxu0 0.0
    %962 = vmatmul.mubr.f32.gmra.mrb[0].mxu0 %v880
    %v963 = vpop.f32.mrb[0].mxu0
    %v964 = vadd.f32 1e-10, %v963
    %v965 = vpop.f32.mrb[0].mxu0
    %966 = vdwg.mxu0
    %v967 = vrsqrt.pop %v949
    %v968 = vrsqrt.pop %v954
    %v969 = vrsqrt.pop %v959
    %v970 = vrsqrt.pop %v964
    %v971 = vld [vmem:[%s5] sm:$0xff]
    %v972 = vld [vmem:[%s5 + $0x8] sm:$0xff]
    %v973 = vld [vmem:[%s5 + $0x10] sm:$0xff]
    %v974 = vld [vmem:[%s5 + $0x18] sm:$0xff]
    %v975 = vmul.f32 %v967, %v971
    %v976 = vmul.f32 %v968, %v972
    %v977 = vmul.f32 %v969, %v973
    %v978 = vmul.f32 %v970, %v974
    %v979 = vsel %vm136, %v975, 0.0
    %980 = vadd.xlane.f32.xlu0 %v979
    %v981 = vpop.xlane.xlu0 %980
    %v982 = vsel %vm136, %v976, 0.0
    %983 = vadd.xlane.f32.xlu0 %v982
    %v984 = vpop.xlane.xlu0 %983
    %v985 = vsel %vm136, %v977, 0.0
    %986 = vadd.xlane.f32.xlu0 %v985
    %v987 = vpop.xlane.xlu0 %986
    %v988 = vsel %vm136, %v978, 0.0
    %989 = vadd.xlane.f32.xlu0 %v988
    %v990 = vpop.xlane.xlu0 %989
    %v991 = vmul.f32 %v865, %v967
    %v992 = vmul.f32 %v866, %v968
    %v993 = vmul.f32 %v867, %v969
    %v994 = vmul.f32 %v868, %v970
    %v995 = vmul.f32 %v991, %v981
    %v996 = vmul.f32 %v992, %v984
    %v997 = vmul.f32 %v993, %v987
    %v998 = vmul.f32 %v994, %v990
    %v999 = vld [vmem:[%s3] sm:$0xff]
    %v1000 = vld [vmem:[%s3 + $0x8] sm:$0xff]
    %v1001 = vld [vmem:[%s2] sm:$0xff]
    %v1002 = vld [vmem:[%s2 + $0x8] sm:$0xff]
    %v1003 = vadd.f32 %v1001, %v999
    %v1004 = vadd.f32 %v1002, %v1000
    %v1005 = vmax.f32 %v1003, 0.0
    %v1006 = vmax.f32 %v1004, 0.0
    %v1007 = vsel %vm136, %v1005, 0.0
    %1008 = vadd.xlane.f32.xlu0 %v1007
    %v1009 = vpop.xlane.xlu0 %1008
    %v1010 = vsel %vm136, %v1006, 0.0
    %1011 = vadd.xlane.f32.xlu0 %v1010
    %v1012 = vpop.xlane.xlu0 %1011
    %v1013 = vadd.f32 %v1009, 1e-10
    %v1014 = vadd.f32 %v1012, 1e-10
    %v1015 = vrsqrt.pop %v1013
    %v1016 = vrsqrt.pop %v1014
    %v1017 = vmul.f32 %v1005, %v1015
    %v1018 = vmul.f32 %v1006, %v1016
    %v1019 = vmul.f32 %v999, %v1015
    %v1020 = vmul.f32 %v1000, %v1016
    %v1022 = vsel %vm136, %v1017, 0
    %v1025 = vsel %vm136, %v1018, 0
    %1027 = vmatprep.subr.mxu0 0.0
    %1028 = vmatpush1.msra.mxu0 %v1019
    %1029 = vmatprep.subr.mxu0 0.0
    %1030 = vmatpush1.msra.mxu0 %v1020
    %1031 = vmatprep.subr.mxu0 0.0
    %1032 = vmatpush1.msra.mxu0 0.0
    %1033 = vmatprep.subr.mxu0 0.0
    %1034 = vmatpush1.msra.mxu0 0.0
    %1035 = vmatprep.subr.mxu0 0.0
    %1036 = vmatpush1.msra.mxu0 0.0
    %1037 = vmatprep.subr.mxu0 0.0
    %1038 = vmatpush1.msra.mxu0 0.0
    %1039 = vmatprep.subr.mxu0 0.0
    %1040 = vmatpush1.msra.mxu0 0.0
    %1041 = vmatprep.subr.mxu0 0.0
    %1042 = vmatpush1.msra.mxu0 0.0
    %1043 = vmatprep.subr.mxu0 0.0
    %1044 = vmatpush1.msra.mxu0 0.0
    %1045 = vmatprep.subr.mxu0 0.0
    %1046 = vmatpush1.msra.mxu0 0.0
    %1047 = vmatprep.subr.mxu0 0.0
    %1048 = vmatpush1.msra.mxu0 0.0
    %1049 = vmatprep.subr.mxu0 0.0
    %1050 = vmatpush1.msra.mxu0 0.0
    %1051 = vmatprep.subr.mxu0 0.0
    %1052 = vmatpush1.msra.mxu0 0.0
    %1053 = vmatprep.subr.mxu0 0.0
    %1054 = vmatpush1.msra.mxu0 0.0
    %1055 = vmatprep.subr.mxu0 0.0
    %1056 = vmatpush1.msra.mxu0 0.0
    %1057 = vmatprep.subr.mxu0 0.0
    %1058 = vmatpush1.msra.mxu0 0.0
    %1059 = vmatprep.subr.mxu0 0.0
    %1060 = vmatpush1.msra.mxu0 0.0
    %1061 = vmatprep.subr.mxu0 0.0
    %1062 = vmatpush1.msra.mxu0 0.0
    %1063 = vmatprep.subr.mxu0 0.0
    %1064 = vmatpush1.msra.mxu0 0.0
    %1065 = vmatprep.subr.mxu0 0.0
    %1066 = vmatpush1.msra.mxu0 0.0
    %1067 = vmatprep.subr.mxu0 0.0
    %1068 = vmatpush1.msra.mxu0 0.0
    %1069 = vmatprep.subr.mxu0 0.0
    %1070 = vmatpush1.msra.mxu0 0.0
    %1071 = vmatprep.subr.mxu0 0.0
    %1072 = vmatpush1.msra.mxu0 0.0
    %1073 = vmatprep.subr.mxu0 0.0
    %1074 = vmatpush1.msra.mxu0 0.0
    %1075 = vmatprep.subr.mxu0 0.0
    %1076 = vmatpush1.msra.mxu0 0.0
    %1077 = vmatprep.subr.mxu0 0.0
    %1078 = vmatpush1.msra.mxu0 0.0
    %1079 = vmatprep.subr.mxu0 0.0
    %1080 = vmatpush1.msra.mxu0 0.0
    %1081 = vmatprep.subr.mxu0 0.0
    %1082 = vmatpush1.msra.mxu0 0.0
    %1083 = vmatprep.subr.mxu0 0.0
    %1084 = vmatpush1.msra.mxu0 0.0
    %1085 = vmatprep.subr.mxu0 0.0
    %1086 = vmatpush1.msra.mxu0 0.0
    %1087 = vmatprep.subr.mxu0 0.0
    %1088 = vmatpush1.msra.mxu0 0.0
    %1089 = vmatprep.subr.mxu0 0.0
    %1090 = vmatpush1.msra.mxu0 0.0
    %1091 = vmatprep.mubr.f32.mxu0 0.0
    %1092 = vmatmul.mubr.f32.gmra.mrb[0].mxu0 %v1022
    %v1093 = vpop.f32.mrb[0].mxu0
    %v1094 = vadd.f32 0.0, %v1093
    %v1095 = vpop.f32.mrb[0].mxu0
    %1096 = vmatprep.mubr.f32.mxu0 0.0
    %1097 = vmatmul.mubr.f32.gmra.mrb[0].mxu0 %v1025
    %v1098 = vpop.f32.mrb[0].mxu0
    %v1099 = vadd.f32 0.0, %v1098
    %v1100 = vpop.f32.mrb[0].mxu0
    %1101 = vdwg.mxu0
    %1106 = vrot.lane.b32.xlu0 %v995, 16
    %v1107 = vpop.permute.xlu0 %1106
    %1108 = vrot.lane.b32.xlu0 %v996, 16
    %v1109 = vpop.permute.xlu0 %1108
    %1110 = vrot.lane.b32.xlu0 %v997, 16
    %v1111 = vpop.permute.xlu0 %1110
    %1112 = vrot.lane.b32.xlu0 %v998, 16
    %v1113 = vpop.permute.xlu0 %1112
    %v1118 = vsel %vm136, %v995, %v1107
    %v1119 = vsel %vm136, %v996, %v1109
    %v1120 = vsel %vm136, %v997, %v1111
    %v1121 = vsel %vm136, %v998, %v1113
    %v1122 = vmul.f32 %v1118, %v861
    %v1123 = vmul.f32 %v1119, %v862
    %v1124 = vmul.f32 %v1120, %v863
    %v1125 = vmul.f32 %v1121, %v864
    %1128 = vrot.lane.b32.xlu0 %v1094, 16
    %v1129 = vpop.permute.xlu0 %1128
    %1130 = vrot.lane.b32.xlu0 %v1099, 16
    %v1131 = vpop.permute.xlu0 %1130
    %v1134 = vsel %vm136, %v1094, %v1129
    %v1135 = vsel %vm136, %v1099, %v1131
    %v1136 = vmul.f32 %v1134, %v861
    %v1137 = vmul.f32 %v1135, %v862
    %v1138 = vmul.f32 %v1134, %v863
    %v1139 = vmul.f32 %v1135, %v864
    %v1141 = vsel %vm869, %v1136, 0
    %v1144 = vsel %vm869, %v1137, 0
    %v1147 = vsel %vm869, %v1138, 0
    %v1150 = vsel %vm869, %v1139, 0
    %1152 = vmatprep.subr.mxu0 0.0
    %1153 = vmatpush1.msra.mxu0 %v103
    %1154 = vmatprep.subr.mxu0 0.0
    %1155 = vmatpush1.msra.mxu0 %v104
    %1156 = vmatprep.subr.mxu0 0.0
    %1157 = vmatpush1.msra.mxu0 %v105
    %1158 = vmatprep.subr.mxu0 0.0
    %1159 = vmatpush1.msra.mxu0 %v106
    %1160 = vmatprep.subr.mxu0 0.0
    %1161 = vmatpush1.msra.mxu0 0.0
    %1162 = vmatprep.subr.mxu0 0.0
    %1163 = vmatpush1.msra.mxu0 0.0
    %1164 = vmatprep.subr.mxu0 0.0
    %1165 = vmatpush1.msra.mxu0 0.0
    %1166 = vmatprep.subr.mxu0 0.0
    %1167 = vmatpush1.msra.mxu0 0.0
    %1168 = vmatprep.subr.mxu0 0.0
    %1169 = vmatpush1.msra.mxu0 0.0
    %1170 = vmatprep.subr.mxu0 0.0
    %1171 = vmatpush1.msra.mxu0 0.0
    %1172 = vmatprep.subr.mxu0 0.0
    %1173 = vmatpush1.msra.mxu0 0.0
    %1174 = vmatprep.subr.mxu0 0.0
    %1175 = vmatpush1.msra.mxu0 0.0
    %1176 = vmatprep.subr.mxu0 0.0
    %1177 = vmatpush1.msra.mxu0 0.0
    %1178 = vmatprep.subr.mxu0 0.0
    %1179 = vmatpush1.msra.mxu0 0.0
    %1180 = vmatprep.subr.mxu0 0.0
    %1181 = vmatpush1.msra.mxu0 0.0
    %1182 = vmatprep.subr.mxu0 0.0
    %1183 = vmatpush1.msra.mxu0 0.0
    %1184 = vmatprep.subr.mxu0 0.0
    %1185 = vmatpush1.msra.mxu0 0.0
    %1186 = vmatprep.subr.mxu0 0.0
    %1187 = vmatpush1.msra.mxu0 0.0
    %1188 = vmatprep.subr.mxu0 0.0
    %1189 = vmatpush1.msra.mxu0 0.0
    %1190 = vmatprep.subr.mxu0 0.0
    %1191 = vmatpush1.msra.mxu0 0.0
    %1192 = vmatprep.subr.mxu0 0.0
    %1193 = vmatpush1.msra.mxu0 0.0
    %1194 = vmatprep.subr.mxu0 0.0
    %1195 = vmatpush1.msra.mxu0 0.0
    %1196 = vmatprep.subr.mxu0 0.0
    %1197 = vmatpush1.msra.mxu0 0.0
    %1198 = vmatprep.subr.mxu0 0.0
    %1199 = vmatpush1.msra.mxu0 0.0
    %1200 = vmatprep.subr.mxu0 0.0
    %1201 = vmatpush1.msra.mxu0 0.0
    %1202 = vmatprep.subr.mxu0 0.0
    %1203 = vmatpush1.msra.mxu0 0.0
    %1204 = vmatprep.subr.mxu0 0.0
    %1205 = vmatpush1.msra.mxu0 0.0
    %1206 = vmatprep.subr.mxu0 0.0
    %1207 = vmatpush1.msra.mxu0 0.0
    %1208 = vmatprep.subr.mxu0 0.0
    %1209 = vmatpush1.msra.mxu0 0.0
    %1210 = vmatprep.subr.mxu0 0.0
    %1211 = vmatpush1.msra.mxu0 0.0
    %1212 = vmatprep.subr.mxu0 0.0
    %1213 = vmatpush1.msra.mxu0 0.0
    %1214 = vmatprep.subr.mxu0 0.0
    %1215 = vmatpush1.msra.mxu0 0.0
    %1216 = vmatprep.mubr.f32.mxu0 0.0
    %1217 = vmatmul.mubr.f32.gmra.mrb[0].mxu0 %v1141
    %v1218 = vpop.f32.mrb[0].mxu0
    %v1219 = vadd.f32 0.0, %v1218
    %v1220 = vpop.f32.mrb[0].mxu0
    %1221 = vmatprep.mubr.f32.mxu0 0.0
    %1222 = vmatmul.mubr.f32.gmra.mrb[0].mxu0 %v1144
    %v1223 = vpop.f32.mrb[0].mxu0
    %v1224 = vadd.f32 0.0, %v1223
    %v1225 = vpop.f32.mrb[0].mxu0
    %1226 = vmatprep.mubr.f32.mxu0 0.0
    %1227 = vmatmul.mubr.f32.gmra.mrb[0].mxu0 %v1147
    %v1228 = vpop.f32.mrb[0].mxu0
    %v1229 = vadd.f32 0.0, %v1228
    %v1230 = vpop.f32.mrb[0].mxu0
    %1231 = vmatprep.mubr.f32.mxu0 0.0
    %1232 = vmatmul.mubr.f32.gmra.mrb[0].mxu0 %v1150
    %v1233 = vpop.f32.mrb[0].mxu0
    %v1234 = vadd.f32 0.0, %v1233
    %v1235 = vpop.f32.mrb[0].mxu0
    %1236 = vdwg.mxu0
    %1241 = vrot.lane.b32.xlu0 %v1219, 8
    %v1242 = vpop.permute.xlu0 %1241
    %1243 = vrot.lane.b32.xlu0 %v1224, 8
    %v1244 = vpop.permute.xlu0 %1243
    %1245 = vrot.lane.b32.xlu0 %v1229, 8
    %v1246 = vpop.permute.xlu0 %1245
    %1247 = vrot.lane.b32.xlu0 %v1234, 8
    %v1248 = vpop.permute.xlu0 %1247
    %vm1253 = vcmask 64512
    %v1254 = vsel %vm1253, %v103, %v1242
    %v1255 = vsel %vm1253, %v104, %v1244
    %v1256 = vsel %vm1253, %v105, %v1246
    %v1257 = vsel %vm1253, %v106, %v1248
    %v1259 = vsel %vm869, %v1122, 0
    %v1262 = vsel %vm869, %v1123, 0
    %v1265 = vsel %vm869, %v1124, 0
    %v1268 = vsel %vm869, %v1125, 0
    %1270 = vmatprep.subr.mxu0 0.0
    %1271 = vmatpush1.msra.mxu0 %v103
    %1272 = vmatprep.subr.mxu0 0.0
    %1273 = vmatpush1.msra.mxu0 %v104
    %1274 = vmatprep.subr.mxu0 0.0
    %1275 = vmatpush1.msra.mxu0 %v105
    %1276 = vmatprep.subr.mxu0 0.0
    %1277 = vmatpush1.msra.mxu0 %v106
    %1278 = vmatprep.subr.mxu0 0.0
    %1279 = vmatpush1.msra.mxu0 0.0
    %1280 = vmatprep.subr.mxu0 0.0
    %1281 = vmatpush1.msra.mxu0 0.0
    %1282 = vmatprep.subr.mxu0 0.0
    %1283 = vmatpush1.msra.mxu0 0.0
    %1284 = vmatprep.subr.mxu0 0.0
    %1285 = vmatpush1.msra.mxu0 0.0
    %1286 = vmatprep.subr.mxu0 0.0
    %1287 = vmatpush1.msra.mxu0 0.0
    %1288 = vmatprep.subr.mxu0 0.0
    %1289 = vmatpush1.msra.mxu0 0.0
    %1290 = vmatprep.subr.mxu0 0.0
    %1291 = vmatpush1.msra.mxu0 0.0
    %1292 = vmatprep.subr.mxu0 0.0
    %1293 = vmatpush1.msra.mxu0 0.0
    %1294 = vmatprep.subr.mxu0 0.0
    %1295 = vmatpush1.msra.mxu0 0.0
    %1296 = vmatprep.subr.mxu0 0.0
    %1297 = vmatpush1.msra.mxu0 0.0
    %1298 = vmatprep.subr.mxu0 0.0
    %1299 = vmatpush1.msra.mxu0 0.0
    %1300 = vmatprep.subr.mxu0 0.0
    %1301 = vmatpush1.msra.mxu0 0.0
    %1302 = vmatprep.subr.mxu0 0.0
    %1303 = vmatpush1.msra.mxu0 0.0
    %1304 = vmatprep.subr.mxu0 0.0
    %1305 = vmatpush1.msra.mxu0 0.0
    %1306 = vmatprep.subr.mxu0 0.0
    %1307 = vmatpush1.msra.mxu0 0.0
    %1308 = vmatprep.subr.mxu0 0.0
    %1309 = vmatpush1.msra.mxu0 0.0
    %1310 = vmatprep.subr.mxu0 0.0
    %1311 = vmatpush1.msra.mxu0 0.0
    %1312 = vmatprep.subr.mxu0 0.0
    %1313 = vmatpush1.msra.mxu0 0.0
    %1314 = vmatprep.subr.mxu0 0.0
    %1315 = vmatpush1.msra.mxu0 0.0
    %1316 = vmatprep.subr.mxu0 0.0
    %1317 = vmatpush1.msra.mxu0 0.0
    %1318 = vmatprep.subr.mxu0 0.0
    %1319 = vmatpush1.msra.mxu0 0.0
    %1320 = vmatprep.subr.mxu0 0.0
    %1321 = vmatpush1.msra.mxu0 0.0
    %1322 = vmatprep.subr.mxu0 0.0
    %1323 = vmatpush1.msra.mxu0 0.0
    %1324 = vmatprep.subr.mxu0 0.0
    %1325 = vmatpush1.msra.mxu0 0.0
    %1326 = vmatprep.subr.mxu0 0.0
    %1327 = vmatpush1.msra.mxu0 0.0
    %1328 = vmatprep.subr.mxu0 0.0
    %1329 = vmatpush1.msra.mxu0 0.0
    %1330 = vmatprep.subr.mxu0 0.0
    %1331 = vmatpush1.msra.mxu0 0.0
    %1332 = vmatprep.subr.mxu0 0.0
    %1333 = vmatpush1.msra.mxu0 0.0
    %1334 = vmatprep.mubr.f32.mxu0 0.0
    %1335 = vmatmul.mubr.f32.gmra.mrb[0].mxu0 %v1259
    %v1336 = vpop.f32.mrb[0].mxu0
    %v1337 = vadd.f32 0.0, %v1336
    %v1338 = vpop.f32.mrb[0].mxu0
    %1339 = vmatprep.mubr.f32.mxu0 0.0
    %1340 = vmatmul.mubr.f32.gmra.mrb[0].mxu0 %v1262
    %v1341 = vpop.f32.mrb[0].mxu0
    %v1342 = vadd.f32 0.0, %v1341
    %v1343 = vpop.f32.mrb[0].mxu0
    %1344 = vmatprep.mubr.f32.mxu0 0.0
    %1345 = vmatmul.mubr.f32.gmra.mrb[0].mxu0 %v1265
    %v1346 = vpop.f32.mrb[0].mxu0
    %v1347 = vadd.f32 0.0, %v1346
    %v1348 = vpop.f32.mrb[0].mxu0
    %1349 = vmatprep.mubr.f32.mxu0 0.0
    %1350 = vmatmul.mubr.f32.gmra.mrb[0].mxu0 %v1268
    %v1351 = vpop.f32.mrb[0].mxu0
    %v1352 = vadd.f32 0.0, %v1351
    %v1353 = vpop.f32.mrb[0].mxu0
    %1354 = vdwg.mxu0
    %1359 = vrot.lane.b32.xlu0 %v1337, 8
    %v1360 = vpop.permute.xlu0 %1359
    %1361 = vrot.lane.b32.xlu0 %v1342, 8
    %v1362 = vpop.permute.xlu0 %1361
    %1363 = vrot.lane.b32.xlu0 %v1347, 8
    %v1364 = vpop.permute.xlu0 %1363
    %1365 = vrot.lane.b32.xlu0 %v1352, 8
    %v1366 = vpop.permute.xlu0 %1365
    %v1371 = vsel %vm1253, %v103, %v1360
    %v1372 = vsel %vm1253, %v104, %v1362
    %v1373 = vsel %vm1253, %v105, %v1364
    %v1374 = vsel %vm1253, %v106, %v1366
    %v1375 = vld [vmem:[%s11] sm:$0xff]
    %v1376 = vld [vmem:[%s11 + $0x8] sm:$0xff]
    %v1378 = vsel %vm136, %v1254, 0
    %v1381 = vsel %vm136, %v1255, 0
    %v1384 = vsel %vm136, %v1256, 0
    %v1387 = vsel %vm136, %v1257, 0
    %1389 = vmatprep.subr.mxu0 0.0
    %1390 = vmatpush1.msra.mxu0 %v1375
    %1391 = vmatprep.subr.mxu0 0.0
    %1392 = vmatpush1.msra.mxu0 %v1376
    %1393 = vmatprep.subr.mxu0 0.0
    %1394 = vmatpush1.msra.mxu0 0.0
    %1395 = vmatprep.subr.mxu0 0.0
    %1396 = vmatpush1.msra.mxu0 0.0
    %1397 = vmatprep.subr.mxu0 0.0
    %1398 = vmatpush1.msra.mxu0 0.0
    %1399 = vmatprep.subr.mxu0 0.0
    %1400 = vmatpush1.msra.mxu0 0.0
    %1401 = vmatprep.subr.mxu0 0.0
    %1402 = vmatpush1.msra.mxu0 0.0
    %1403 = vmatprep.subr.mxu0 0.0
    %1404 = vmatpush1.msra.mxu0 0.0
    %1405 = vmatprep.subr.mxu0 0.0
    %1406 = vmatpush1.msra.mxu0 0.0
    %1407 = vmatprep.subr.mxu0 0.0
    %1408 = vmatpush1.msra.mxu0 0.0
    %1409 = vmatprep.subr.mxu0 0.0
    %1410 = vmatpush1.msra.mxu0 0.0
    %1411 = vmatprep.subr.mxu0 0.0
    %1412 = vmatpush1.msra.mxu0 0.0
    %1413 = vmatprep.subr.mxu0 0.0
    %1414 = vmatpush1.msra.mxu0 0.0
    %1415 = vmatprep.subr.mxu0 0.0
    %1416 = vmatpush1.msra.mxu0 0.0
    %1417 = vmatprep.subr.mxu0 0.0
    %1418 = vmatpush1.msra.mxu0 0.0
    %1419 = vmatprep.subr.mxu0 0.0
    %1420 = vmatpush1.msra.mxu0 0.0
    %1421 = vmatprep.subr.mxu0 0.0
    %1422 = vmatpush1.msra.mxu0 0.0
    %1423 = vmatprep.subr.mxu0 0.0
    %1424 = vmatpush1.msra.mxu0 0.0
    %1425 = vmatprep.subr.mxu0 0.0
    %1426 = vmatpush1.msra.mxu0 0.0
    %1427 = vmatprep.subr.mxu0 0.0
    %1428 = vmatpush1.msra.mxu0 0.0
    %1429 = vmatprep.subr.mxu0 0.0
    %1430 = vmatpush1.msra.mxu0 0.0
    %1431 = vmatprep.subr.mxu0 0.0
    %1432 = vmatpush1.msra.mxu0 0.0
    %1433 = vmatprep.subr.mxu0 0.0
    %1434 = vmatpush1.msra.mxu0 0.0
    %1435 = vmatprep.subr.mxu0 0.0
    %1436 = vmatpush1.msra.mxu0 0.0
    %1437 = vmatprep.subr.mxu0 0.0
    %1438 = vmatpush1.msra.mxu0 0.0
    %1439 = vmatprep.subr.mxu0 0.0
    %1440 = vmatpush1.msra.mxu0 0.0
    %1441 = vmatprep.subr.mxu0 0.0
    %1442 = vmatpush1.msra.mxu0 0.0
    %1443 = vmatprep.subr.mxu0 0.0
    %1444 = vmatpush1.msra.mxu0 0.0
    %1445 = vmatprep.subr.mxu0 0.0
    %1446 = vmatpush1.msra.mxu0 0.0
    %1447 = vmatprep.subr.mxu0 0.0
    %1448 = vmatpush1.msra.mxu0 0.0
    %1449 = vmatprep.subr.mxu0 0.0
    %1450 = vmatpush1.msra.mxu0 0.0
    %1451 = vmatprep.subr.mxu0 0.0
    %1452 = vmatpush1.msra.mxu0 0.0
    %1453 = vmatprep.mubr.f32.mxu0 0.0
    %1454 = vmatmul.mubr.f32.gmra.mrb[0].mxu0 %v1378
    %v1455 = vpop.f32.mrb[0].mxu0
    %v1456 = vadd.f32 0.0, %v1455
    %v1457 = vpop.f32.mrb[0].mxu0
    %1458 = vmatprep.mubr.f32.mxu0 0.0
    %1459 = vmatmul.mubr.f32.gmra.mrb[0].mxu0 %v1381
    %v1460 = vpop.f32.mrb[0].mxu0
    %v1461 = vadd.f32 0.0, %v1460
    %v1462 = vpop.f32.mrb[0].mxu0
    %1463 = vmatprep.mubr.f32.mxu0 0.0
    %1464 = vmatmul.mubr.f32.gmra.mrb[0].mxu0 %v1384
    %v1465 = vpop.f32.mrb[0].mxu0
    %v1466 = vadd.f32 0.0, %v1465
    %v1467 = vpop.f32.mrb[0].mxu0
    %1468 = vmatprep.mubr.f32.mxu0 0.0
    %1469 = vmatmul.mubr.f32.gmra.mrb[0].mxu0 %v1387
    %v1470 = vpop.f32.mrb[0].mxu0
    %v1471 = vadd.f32 0.0, %v1470
    %v1472 = vpop.f32.mrb[0].mxu0
    %1473 = vdwg.mxu0
    %v1474 = vld [vmem:[%s12] sm:$0xff]
    %v1475 = vld [vmem:[%s12 + $0x8] sm:$0xff]
    %v1477 = vsel %vm136, %v1371, 0
    %v1480 = vsel %vm136, %v1372, 0
    %v1483 = vsel %vm136, %v1373, 0
    %v1486 = vsel %vm136, %v1374, 0
    %1488 = vmatprep.subr.mxu0 0.0
    %1489 = vmatpush1.msra.mxu0 %v1474
    %1490 = vmatprep.subr.mxu0 0.0
    %1491 = vmatpush1.msra.mxu0 %v1475
    %1492 = vmatprep.subr.mxu0 0.0
    %1493 = vmatpush1.msra.mxu0 0.0
    %1494 = vmatprep.subr.mxu0 0.0
    %1495 = vmatpush1.msra.mxu0 0.0
    %1496 = vmatprep.subr.mxu0 0.0
    %1497 = vmatpush1.msra.mxu0 0.0
    %1498 = vmatprep.subr.mxu0 0.0
    %1499 = vmatpush1.msra.mxu0 0.0
    %1500 = vmatprep.subr.mxu0 0.0
    %1501 = vmatpush1.msra.mxu0 0.0
    %1502 = vmatprep.subr.mxu0 0.0
    %1503 = vmatpush1.msra.mxu0 0.0
    %1504 = vmatprep.subr.mxu0 0.0
    %1505 = vmatpush1.msra.mxu0 0.0
    %1506 = vmatprep.subr.mxu0 0.0
    %1507 = vmatpush1.msra.mxu0 0.0
    %1508 = vmatprep.subr.mxu0 0.0
    %1509 = vmatpush1.msra.mxu0 0.0
    %1510 = vmatprep.subr.mxu0 0.0
    %1511 = vmatpush1.msra.mxu0 0.0
    %1512 = vmatprep.subr.mxu0 0.0
    %1513 = vmatpush1.msra.mxu0 0.0
    %1514 = vmatprep.subr.mxu0 0.0
    %1515 = vmatpush1.msra.mxu0 0.0
    %1516 = vmatprep.subr.mxu0 0.0
    %1517 = vmatpush1.msra.mxu0 0.0
    %1518 = vmatprep.subr.mxu0 0.0
    %1519 = vmatpush1.msra.mxu0 0.0
    %1520 = vmatprep.subr.mxu0 0.0
    %1521 = vmatpush1.msra.mxu0 0.0
    %1522 = vmatprep.subr.mxu0 0.0
    %1523 = vmatpush1.msra.mxu0 0.0
    %1524 = vmatprep.subr.mxu0 0.0
    %1525 = vmatpush1.msra.mxu0 0.0
    %1526 = vmatprep.subr.mxu0 0.0
    %1527 = vmatpush1.msra.mxu0 0.0
    %1528 = vmatprep.subr.mxu0 0.0
    %1529 = vmatpush1.msra.mxu0 0.0
    %1530 = vmatprep.subr.mxu0 0.0
    %1531 = vmatpush1.msra.mxu0 0.0
    %1532 = vmatprep.subr.mxu0 0.0
    %1533 = vmatpush1.msra.mxu0 0.0
    %1534 = vmatprep.subr.mxu0 0.0
    %1535 = vmatpush1.msra.mxu0 0.0
    %1536 = vmatprep.subr.mxu0 0.0
    %1537 = vmatpush1.msra.mxu0 0.0
    %1538 = vmatprep.subr.mxu0 0.0
    %1539 = vmatpush1.msra.mxu0 0.0
    %1540 = vmatprep.subr.mxu0 0.0
    %1541 = vmatpush1.msra.mxu0 0.0
    %1542 = vmatprep.subr.mxu0 0.0
    %1543 = vmatpush1.msra.mxu0 0.0
    %1544 = vmatprep.subr.mxu0 0.0
    %1545 = vmatpush1.msra.mxu0 0.0
    %1546 = vmatprep.subr.mxu0 0.0
    %1547 = vmatpush1.msra.mxu0 0.0
    %1548 = vmatprep.subr.mxu0 0.0
    %1549 = vmatpush1.msra.mxu0 0.0
    %1550 = vmatprep.subr.mxu0 0.0
    %1551 = vmatpush1.msra.mxu0 0.0
    %1552 = vmatprep.mubr.f32.mxu0 0.0
    %1553 = vmatmul.mubr.f32.gmra.mrb[0].mxu0 %v1477
    %v1554 = vpop.f32.mrb[0].mxu0
    %v1555 = vadd.f32 0.0, %v1554
    %v1556 = vpop.f32.mrb[0].mxu0
    %1557 = vmatprep.mubr.f32.mxu0 0.0
    %1558 = vmatmul.mubr.f32.gmra.mrb[0].mxu0 %v1480
    %v1559 = vpop.f32.mrb[0].mxu0
    %v1560 = vadd.f32 0.0, %v1559
    %v1561 = vpop.f32.mrb[0].mxu0
    %1562 = vmatprep.mubr.f32.mxu0 0.0
    %1563 = vmatmul.mubr.f32.gmra.mrb[0].mxu0 %v1483
    %v1564 = vpop.f32.mrb[0].mxu0
    %v1565 = vadd.f32 0.0, %v1564
    %v1566 = vpop.f32.mrb[0].mxu0
    %1567 = vmatprep.mubr.f32.mxu0 0.0
    %1568 = vmatmul.mubr.f32.gmra.mrb[0].mxu0 %v1486
    %v1569 = vpop.f32.mrb[0].mxu0
    %v1570 = vadd.f32 0.0, %v1569
    %v1571 = vpop.f32.mrb[0].mxu0
    %1572 = vdwg.mxu0
    %v1573 = vmax.f32 %v1456, 0.0
    %v1574 = vmax.f32 %v1461, 0.0
    %v1575 = vmax.f32 %v1466, 0.0
    %v1576 = vmax.f32 %v1471, 0.0
    %v1577 = vmax.f32 %v1555, 0.0
    %v1578 = vmax.f32 %v1560, 0.0
    %v1579 = vmax.f32 %v1565, 0.0
    %v1580 = vmax.f32 %v1570, 0.0
    %v1581 = vadd.f32 %v1573, %v1577
    %v1582 = vadd.f32 %v1574, %v1578
    %v1583 = vadd.f32 %v1575, %v1579
    %v1584 = vadd.f32 %v1576, %v1580
    %v1585 = vmul.f32 %v1581, 0.5
    %v1586 = vmul.f32 %v1582, 0.5
    %v1587 = vmul.f32 %v1583, 0.5
    %v1588 = vmul.f32 %v1584, 0.5
    %1593 = vrot.lane.b32.xlu0 %v1585, 96
    %v1594 = vpop.permute.xlu0 %1593
    %1595 = vrot.lane.b32.xlu0 %v1586, 96
    %v1596 = vpop.permute.xlu0 %1595
    %1597 = vrot.lane.b32.xlu0 %v1587, 96
    %v1598 = vpop.permute.xlu0 %1597
    %1599 = vrot.lane.b32.xlu0 %v1588, 96
    %v1600 = vpop.permute.xlu0 %1599
    %v1601 = vld [vmem:[%s13] sm:$0xff]
    %v1602 = vld [vmem:[%s13 + $0x8] sm:$0xff]
    %v1603 = vld [vmem:[%s13 + $0x10] sm:$0xff]
    %v1604 = vld [vmem:[%s13 + $0x18] sm:$0xff]
    %v1605 = vld [vmem:[%s14] sm:$0x1]
    %v1607 = vlaneseq
    %v1608 = vshrl.u32 %v1607, 7
    %v1609 = vsub.s32 0, %v1608
    %v1610 = vrot.slane %v1605, %v1609
    %v1613 = vsel %vm869, %v1573, 0
    %v1616 = vsel %vm869, %v1574, 0
    %v1619 = vsel %vm869, %v1575, 0
    %v1622 = vsel %vm869, %v1576, 0
    %v1625 = vsel %vm869, %v1577, 0
    %v1628 = vsel %vm869, %v1578, 0
    %v1631 = vsel %vm869, %v1579, 0
    %v1634 = vsel %vm869, %v1580, 0
    %v1636 = vsel %vm869, %v1594, 0
    %v1638 = vsel %vm869, %v1596, 0
    %v1640 = vsel %vm869, %v1598, 0
    %v1642 = vsel %vm869, %v1600, 0
    %1644 = vmatprep.subr.mxu0 0.0
    %1645 = vmatpush1.msra.mxu0 %v1601
    %1646 = vmatprep.subr.mxu0 0.0
    %1647 = vmatpush1.msra.mxu0 %v1602
    %1648 = vmatprep.subr.mxu0 0.0
    %1649 = vmatpush1.msra.mxu0 %v1603
    %1650 = vmatprep.subr.mxu0 0.0
    %1651 = vmatpush1.msra.mxu0 %v1604
    %1652 = vmatprep.subr.mxu0 0.0
    %1653 = vmatpush1.msra.mxu0 0.0
    %1654 = vmatprep.subr.mxu0 0.0
    %1655 = vmatpush1.msra.mxu0 0.0
    %1656 = vmatprep.subr.mxu0 0.0
    %1657 = vmatpush1.msra.mxu0 0.0
    %1658 = vmatprep.subr.mxu0 0.0
    %1659 = vmatpush1.msra.mxu0 0.0
    %1660 = vmatprep.subr.mxu0 0.0
    %1661 = vmatpush1.msra.mxu0 0.0
    %1662 = vmatprep.subr.mxu0 0.0
    %1663 = vmatpush1.msra.mxu0 0.0
    %1664 = vmatprep.subr.mxu0 0.0
    %1665 = vmatpush1.msra.mxu0 0.0
    %1666 = vmatprep.subr.mxu0 0.0
    %1667 = vmatpush1.msra.mxu0 0.0
    %1668 = vmatprep.subr.mxu0 0.0
    %1669 = vmatpush1.msra.mxu0 0.0
    %1670 = vmatprep.subr.mxu0 0.0
    %1671 = vmatpush1.msra.mxu0 0.0
    %1672 = vmatprep.subr.mxu0 0.0
    %1673 = vmatpush1.msra.mxu0 0.0
    %1674 = vmatprep.subr.mxu0 0.0
    %1675 = vmatpush1.msra.mxu0 0.0
    %1676 = vmatprep.subr.mxu0 0.0
    %1677 = vmatpush1.msra.mxu0 0.0
    %1678 = vmatprep.subr.mxu0 0.0
    %1679 = vmatpush1.msra.mxu0 0.0
    %1680 = vmatprep.subr.mxu0 0.0
    %1681 = vmatpush1.msra.mxu0 0.0
    %1682 = vmatprep.subr.mxu0 0.0
    %1683 = vmatpush1.msra.mxu0 0.0
    %1684 = vmatprep.subr.mxu0 0.0
    %1685 = vmatpush1.msra.mxu0 0.0
    %1686 = vmatprep.subr.mxu0 0.0
    %1687 = vmatpush1.msra.mxu0 0.0
    %1688 = vmatprep.subr.mxu0 0.0
    %1689 = vmatpush1.msra.mxu0 0.0
    %1690 = vmatprep.subr.mxu0 0.0
    %1691 = vmatpush1.msra.mxu0 0.0
    %1692 = vmatprep.subr.mxu0 0.0
    %1693 = vmatpush1.msra.mxu0 0.0
    %1694 = vmatprep.subr.mxu0 0.0
    %1695 = vmatpush1.msra.mxu0 0.0
    %1696 = vmatprep.subr.mxu0 0.0
    %1697 = vmatpush1.msra.mxu0 0.0
    %1698 = vmatprep.subr.mxu0 0.0
    %1699 = vmatpush1.msra.mxu0 0.0
    %1700 = vmatprep.subr.mxu0 0.0
    %1701 = vmatpush1.msra.mxu0 0.0
    %1702 = vmatprep.subr.mxu0 0.0
    %1703 = vmatpush1.msra.mxu0 0.0
    %1704 = vmatprep.subr.mxu0 0.0
    %1705 = vmatpush1.msra.mxu0 0.0
    %1706 = vmatprep.subr.mxu0 0.0
    %1707 = vmatpush1.msra.mxu0 0.0
    %1708 = vmatprep.mubr.f32.mxu0 0.0
    %1709 = vmatmul.mubr.f32.gmra.mrb[0].mxu0 %v1613
    %v1710 = vpop.f32.mrb[0].mxu0
    %v1711 = vadd.f32 %v1610, %v1710
    %v1712 = vpop.f32.mrb[0].mxu0
    %1713 = vmatprep.mubr.f32.mxu0 0.0
    %1714 = vmatmul.mubr.f32.gmra.mrb[0].mxu0 %v1616
    %v1715 = vpop.f32.mrb[0].mxu0
    %v1716 = vadd.f32 %v1610, %v1715
    %v1717 = vpop.f32.mrb[0].mxu0
    %1718 = vmatprep.mubr.f32.mxu0 0.0
    %1719 = vmatmul.mubr.f32.gmra.mrb[0].mxu0 %v1619
    %v1720 = vpop.f32.mrb[0].mxu0
    %v1721 = vadd.f32 %v1610, %v1720
    %v1722 = vpop.f32.mrb[0].mxu0
    %1723 = vmatprep.mubr.f32.mxu0 0.0
    %1724 = vmatmul.mubr.f32.gmra.mrb[0].mxu0 %v1622
    %v1725 = vpop.f32.mrb[0].mxu0
    %v1726 = vadd.f32 %v1610, %v1725
    %v1727 = vpop.f32.mrb[0].mxu0
    %1728 = vmatprep.mubr.f32.mxu0 0.0
    %1729 = vmatmul.mubr.f32.gmra.mrb[0].mxu0 %v1625
    %v1730 = vpop.f32.mrb[0].mxu0
    %v1731 = vadd.f32 %v1610, %v1730
    %v1732 = vpop.f32.mrb[0].mxu0
    %1733 = vmatprep.mubr.f32.mxu0 0.0
    %1734 = vmatmul.mubr.f32.gmra.mrb[0].mxu0 %v1628
    %v1735 = vpop.f32.mrb[0].mxu0
    %v1736 = vadd.f32 %v1610, %v1735
    %v1737 = vpop.f32.mrb[0].mxu0
    %1738 = vmatprep.mubr.f32.mxu0 0.0
    %1739 = vmatmul.mubr.f32.gmra.mrb[0].mxu0 %v1631
    %v1740 = vpop.f32.mrb[0].mxu0
    %v1741 = vadd.f32 %v1610, %v1740
    %v1742 = vpop.f32.mrb[0].mxu0
    %1743 = vmatprep.mubr.f32.mxu0 0.0
    %1744 = vmatmul.mubr.f32.gmra.mrb[0].mxu0 %v1634
    %v1745 = vpop.f32.mrb[0].mxu0
    %v1746 = vadd.f32 %v1610, %v1745
    %v1747 = vpop.f32.mrb[0].mxu0
    %1748 = vmatprep.mubr.f32.mxu0 0.0
    %1749 = vmatmul.mubr.f32.gmra.mrb[0].mxu0 %v1636
    %v1750 = vpop.f32.mrb[0].mxu0
    %v1751 = vadd.f32 %v1610, %v1750
    %v1752 = vpop.f32.mrb[0].mxu0
    %1753 = vmatprep.mubr.f32.mxu0 0.0
    %1754 = vmatmul.mubr.f32.gmra.mrb[0].mxu0 %v1638
    %v1755 = vpop.f32.mrb[0].mxu0
    %v1756 = vadd.f32 %v1610, %v1755
    %v1757 = vpop.f32.mrb[0].mxu0
    %1758 = vmatprep.mubr.f32.mxu0 0.0
    %1759 = vmatmul.mubr.f32.gmra.mrb[0].mxu0 %v1640
    %v1760 = vpop.f32.mrb[0].mxu0
    %v1761 = vadd.f32 %v1610, %v1760
    %v1762 = vpop.f32.mrb[0].mxu0
    %1763 = vmatprep.mubr.f32.mxu0 0.0
    %1764 = vmatmul.mubr.f32.gmra.mrb[0].mxu0 %v1642
    %v1765 = vpop.f32.mrb[0].mxu0
    %v1766 = vadd.f32 %v1610, %v1765
    %v1767 = vpop.f32.mrb[0].mxu0
    %1768 = vdwg.mxu0
    %v1769 = vtanh.pop %v1711
    %v1770 = vtanh.pop %v1716
    %v1771 = vtanh.pop %v1721
    %v1772 = vtanh.pop %v1726
    %v1773 = vtanh.pop %v1731
    %v1774 = vtanh.pop %v1736
    %v1775 = vtanh.pop %v1741
    %v1776 = vtanh.pop %v1746
    %v1777 = vtanh.pop %v1751
    %v1778 = vtanh.pop %v1756
    %v1779 = vtanh.pop %v1761
    %v1780 = vtanh.pop %v1766
    %v1781 = vld [vmem:[%s15] sm:$0xff]
    %v1782 = vld [vmem:[%s15 + $0x8] sm:$0xff]
    %v1784 = vsel %vm136, %v1769, 0
    %v1787 = vsel %vm136, %v1770, 0
    %v1790 = vsel %vm136, %v1771, 0
    %v1793 = vsel %vm136, %v1772, 0
    %v1796 = vsel %vm136, %v1773, 0
    %v1799 = vsel %vm136, %v1774, 0
    %v1802 = vsel %vm136, %v1775, 0
    %v1805 = vsel %vm136, %v1776, 0
    %v1808 = vsel %vm136, %v1777, 0
    %v1811 = vsel %vm136, %v1778, 0
    %v1814 = vsel %vm136, %v1779, 0
    %v1817 = vsel %vm136, %v1780, 0
    %1819 = vmatprep.subr.mxu0 0.0
    %1820 = vmatpush1.msra.mxu0 %v1781
    %1821 = vmatprep.subr.mxu0 0.0
    %1822 = vmatpush1.msra.mxu0 %v1782
    %1823 = vmatprep.subr.mxu0 0.0
    %1824 = vmatpush1.msra.mxu0 0.0
    %1825 = vmatprep.subr.mxu0 0.0
    %1826 = vmatpush1.msra.mxu0 0.0
    %1827 = vmatprep.subr.mxu0 0.0
    %1828 = vmatpush1.msra.mxu0 0.0
    %1829 = vmatprep.subr.mxu0 0.0
    %1830 = vmatpush1.msra.mxu0 0.0
    %1831 = vmatprep.subr.mxu0 0.0
    %1832 = vmatpush1.msra.mxu0 0.0
    %1833 = vmatprep.subr.mxu0 0.0
    %1834 = vmatpush1.msra.mxu0 0.0
    %1835 = vmatprep.subr.mxu0 0.0
    %1836 = vmatpush1.msra.mxu0 0.0
    %1837 = vmatprep.subr.mxu0 0.0
    %1838 = vmatpush1.msra.mxu0 0.0
    %1839 = vmatprep.subr.mxu0 0.0
    %1840 = vmatpush1.msra.mxu0 0.0
    %1841 = vmatprep.subr.mxu0 0.0
    %1842 = vmatpush1.msra.mxu0 0.0
    %1843 = vmatprep.subr.mxu0 0.0
    %1844 = vmatpush1.msra.mxu0 0.0
    %1845 = vmatprep.subr.mxu0 0.0
    %1846 = vmatpush1.msra.mxu0 0.0
    %1847 = vmatprep.subr.mxu0 0.0
    %1848 = vmatpush1.msra.mxu0 0.0
    %1849 = vmatprep.subr.mxu0 0.0
    %1850 = vmatpush1.msra.mxu0 0.0
    %1851 = vmatprep.subr.mxu0 0.0
    %1852 = vmatpush1.msra.mxu0 0.0
    %1853 = vmatprep.subr.mxu0 0.0
    %1854 = vmatpush1.msra.mxu0 0.0
    %1855 = vmatprep.subr.mxu0 0.0
    %1856 = vmatpush1.msra.mxu0 0.0
    %1857 = vmatprep.subr.mxu0 0.0
    %1858 = vmatpush1.msra.mxu0 0.0
    %1859 = vmatprep.subr.mxu0 0.0
    %1860 = vmatpush1.msra.mxu0 0.0
    %1861 = vmatprep.subr.mxu0 0.0
    %1862 = vmatpush1.msra.mxu0 0.0
    %1863 = vmatprep.subr.mxu0 0.0
    %1864 = vmatpush1.msra.mxu0 0.0
    %1865 = vmatprep.subr.mxu0 0.0
    %1866 = vmatpush1.msra.mxu0 0.0
    %1867 = vmatprep.subr.mxu0 0.0
    %1868 = vmatpush1.msra.mxu0 0.0
    %1869 = vmatprep.subr.mxu0 0.0
    %1870 = vmatpush1.msra.mxu0 0.0
    %1871 = vmatprep.subr.mxu0 0.0
    %1872 = vmatpush1.msra.mxu0 0.0
    %1873 = vmatprep.subr.mxu0 0.0
    %1874 = vmatpush1.msra.mxu0 0.0
    %1875 = vmatprep.subr.mxu0 0.0
    %1876 = vmatpush1.msra.mxu0 0.0
    %1877 = vmatprep.subr.mxu0 0.0
    %1878 = vmatpush1.msra.mxu0 0.0
    %1879 = vmatprep.subr.mxu0 0.0
    %1880 = vmatpush1.msra.mxu0 0.0
    %1881 = vmatprep.subr.mxu0 0.0
    %1882 = vmatpush1.msra.mxu0 0.0
    %1883 = vmatprep.mubr.f32.mxu0 0.0
    %1884 = vmatmul.mubr.f32.gmra.mrb[0].mxu0 %v1784
    %v1885 = vpop.f32.mrb[0].mxu0
    %v1886 = vadd.f32 0.0, %v1885
    %v1887 = vpop.f32.mrb[0].mxu0
    %1888 = vmatprep.mubr.f32.mxu0 0.0
    %1889 = vmatmul.mubr.f32.gmra.mrb[0].mxu0 %v1787
    %v1890 = vpop.f32.mrb[0].mxu0
    %v1891 = vadd.f32 0.0, %v1890
    %v1892 = vpop.f32.mrb[0].mxu0
    %1893 = vmatprep.mubr.f32.mxu0 0.0
    %1894 = vmatmul.mubr.f32.gmra.mrb[0].mxu0 %v1790
    %v1895 = vpop.f32.mrb[0].mxu0
    %v1896 = vadd.f32 0.0, %v1895
    %v1897 = vpop.f32.mrb[0].mxu0
    %1898 = vmatprep.mubr.f32.mxu0 0.0
    %1899 = vmatmul.mubr.f32.gmra.mrb[0].mxu0 %v1793
    %v1900 = vpop.f32.mrb[0].mxu0
    %v1901 = vadd.f32 0.0, %v1900
    %v1902 = vpop.f32.mrb[0].mxu0
    %1903 = vmatprep.mubr.f32.mxu0 0.0
    %1904 = vmatmul.mubr.f32.gmra.mrb[0].mxu0 %v1796
    %v1905 = vpop.f32.mrb[0].mxu0
    %v1906 = vadd.f32 0.0, %v1905
    %v1907 = vpop.f32.mrb[0].mxu0
    %1908 = vmatprep.mubr.f32.mxu0 0.0
    %1909 = vmatmul.mubr.f32.gmra.mrb[0].mxu0 %v1799
    %v1910 = vpop.f32.mrb[0].mxu0
    %v1911 = vadd.f32 0.0, %v1910
    %v1912 = vpop.f32.mrb[0].mxu0
    %1913 = vmatprep.mubr.f32.mxu0 0.0
    %1914 = vmatmul.mubr.f32.gmra.mrb[0].mxu0 %v1802
    %v1915 = vpop.f32.mrb[0].mxu0
    %v1916 = vadd.f32 0.0, %v1915
    %v1917 = vpop.f32.mrb[0].mxu0
    %1918 = vmatprep.mubr.f32.mxu0 0.0
    %1919 = vmatmul.mubr.f32.gmra.mrb[0].mxu0 %v1805
    %v1920 = vpop.f32.mrb[0].mxu0
    %v1921 = vadd.f32 0.0, %v1920
    %v1922 = vpop.f32.mrb[0].mxu0
    %1923 = vmatprep.mubr.f32.mxu0 0.0
    %1924 = vmatmul.mubr.f32.gmra.mrb[0].mxu0 %v1808
    %v1925 = vpop.f32.mrb[0].mxu0
    %v1926 = vadd.f32 0.0, %v1925
    %v1927 = vpop.f32.mrb[0].mxu0
    %1928 = vmatprep.mubr.f32.mxu0 0.0
    %1929 = vmatmul.mubr.f32.gmra.mrb[0].mxu0 %v1811
    %v1930 = vpop.f32.mrb[0].mxu0
    %v1931 = vadd.f32 0.0, %v1930
    %v1932 = vpop.f32.mrb[0].mxu0
    %1933 = vmatprep.mubr.f32.mxu0 0.0
    %1934 = vmatmul.mubr.f32.gmra.mrb[0].mxu0 %v1814
    %v1935 = vpop.f32.mrb[0].mxu0
    %v1936 = vadd.f32 0.0, %v1935
    %v1937 = vpop.f32.mrb[0].mxu0
    %1938 = vmatprep.mubr.f32.mxu0 0.0
    %1939 = vmatmul.mubr.f32.gmra.mrb[0].mxu0 %v1817
    %v1940 = vpop.f32.mrb[0].mxu0
    %v1941 = vadd.f32 0.0, %v1940
    %v1942 = vpop.f32.mrb[0].mxu0
    %1943 = vdwg.mxu0
    %v1944 = vmax.f32 %v1886, %v1906
    %v1945 = vmax.f32 %v1891, %v1911
    %v1946 = vmax.f32 %v1896, %v1916
    %v1947 = vmax.f32 %v1901, %v1921
    %v1948 = vmax.f32 %v1944, %v1926
    %v1949 = vmax.f32 %v1945, %v1931
    %v1950 = vmax.f32 %v1946, %v1936
    %v1951 = vmax.f32 %v1947, %v1941
    %v1952 = vsub.f32 %v1886, %v1948
    %v1953 = vsub.f32 %v1891, %v1949
    %v1954 = vsub.f32 %v1896, %v1950
    %v1955 = vsub.f32 %v1901, %v1951
    %v1956 = vmul.f32 %v1952, 1.442695
    %v1957 = vpow.pop %v1956
    %v1958 = vmul.f32 %v1953, 1.442695
    %v1959 = vpow.pop %v1958
    %v1960 = vmul.f32 %v1954, 1.442695
    %v1961 = vpow.pop %v1960
    %v1962 = vmul.f32 %v1955, 1.442695
    %v1963 = vpow.pop %v1962
    %v1964 = vsub.f32 %v1906, %v1948
    %v1965 = vsub.f32 %v1911, %v1949
    %v1966 = vsub.f32 %v1916, %v1950
    %v1967 = vsub.f32 %v1921, %v1951
    %v1968 = vmul.f32 %v1964, 1.442695
    %v1969 = vpow.pop %v1968
    %v1970 = vmul.f32 %v1965, 1.442695
    %v1971 = vpow.pop %v1970
    %v1972 = vmul.f32 %v1966, 1.442695
    %v1973 = vpow.pop %v1972
    %v1974 = vmul.f32 %v1967, 1.442695
    %v1975 = vpow.pop %v1974
    %v1976 = vsub.f32 %v1926, %v1948
    %v1977 = vsub.f32 %v1931, %v1949
    %v1978 = vsub.f32 %v1936, %v1950
    %v1979 = vsub.f32 %v1941, %v1951
    %v1980 = vmul.f32 %v1976, 1.442695
    %v1981 = vpow.pop %v1980
    %v1982 = vmul.f32 %v1977, 1.442695
    %v1983 = vpow.pop %v1982
    %v1984 = vmul.f32 %v1978, 1.442695
    %v1985 = vpow.pop %v1984
    %v1986 = vmul.f32 %v1979, 1.442695
    %v1987 = vpow.pop %v1986
    %v1988 = vadd.f32 %v1957, %v1969
    %v1989 = vadd.f32 %v1959, %v1971
    %v1990 = vadd.f32 %v1961, %v1973
    %v1991 = vadd.f32 %v1963, %v1975
    %v1992 = vadd.f32 %v1988, %v1981
    %v1993 = vadd.f32 %v1989, %v1983
    %v1994 = vadd.f32 %v1990, %v1985
    %v1995 = vadd.f32 %v1991, %v1987
    %v1996 = vrcp.pop %v1992
    %v1997 = vrcp.pop %v1993
    %v1998 = vrcp.pop %v1994
    %v1999 = vrcp.pop %v1995
    %2001 = vset.pattern.permute.xlu0 0
    %2002 = vperm.xlu0 %2001, %v1957
    %v2003 = vpop.permute.xlu0 %2002
    %2006 = vset.pattern.permute.xlu0 0
    %2007 = vperm.xlu0 %2006, %v1959
    %v2008 = vpop.permute.xlu0 %2007
    %2011 = vset.pattern.permute.xlu0 0
    %2012 = vperm.xlu0 %2011, %v1961
    %v2013 = vpop.permute.xlu0 %2012
    %2016 = vset.pattern.permute.xlu0 0
    %2017 = vperm.xlu0 %2016, %v1963
    %v2018 = vpop.permute.xlu0 %2017
    %v2020 = vmul.f32 %v2003, %v1573
    %v2021 = vmul.f32 %v2008, %v1574
    %v2022 = vmul.f32 %v2013, %v1575
    %v2023 = vmul.f32 %v2018, %v1576
    %2025 = vset.pattern.permute.xlu0 0
    %2026 = vperm.xlu0 %2025, %v1969
    %v2027 = vpop.permute.xlu0 %2026
    %2030 = vset.pattern.permute.xlu0 0
    %2031 = vperm.xlu0 %2030, %v1971
    %v2032 = vpop.permute.xlu0 %2031
    %2035 = vset.pattern.permute.xlu0 0
    %2036 = vperm.xlu0 %2035, %v1973
    %v2037 = vpop.permute.xlu0 %2036
    %2040 = vset.pattern.permute.xlu0 0
    %2041 = vperm.xlu0 %2040, %v1975
    %v2042 = vpop.permute.xlu0 %2041
    %v2044 = vmul.f32 %v2027, %v1577
    %v2045 = vmul.f32 %v2032, %v1578
    %v2046 = vmul.f32 %v2037, %v1579
    %v2047 = vmul.f32 %v2042, %v1580
    %v2048 = vadd.f32 %v2020, %v2044
    %v2049 = vadd.f32 %v2021, %v2045
    %v2050 = vadd.f32 %v2022, %v2046
    %v2051 = vadd.f32 %v2023, %v2047
    %2053 = vset.pattern.permute.xlu0 0
    %2054 = vperm.xlu0 %2053, %v1981
    %v2055 = vpop.permute.xlu0 %2054
    %2058 = vset.pattern.permute.xlu0 0
    %2059 = vperm.xlu0 %2058, %v1983
    %v2060 = vpop.permute.xlu0 %2059
    %2063 = vset.pattern.permute.xlu0 0
    %2064 = vperm.xlu0 %2063, %v1985
    %v2065 = vpop.permute.xlu0 %2064
    %2068 = vset.pattern.permute.xlu0 0
    %2069 = vperm.xlu0 %2068, %v1987
    %v2070 = vpop.permute.xlu0 %2069
    %v2072 = vmul.f32 %v2055, %v1585
    %v2073 = vmul.f32 %v2060, %v1586
    %v2074 = vmul.f32 %v2065, %v1587
    %v2075 = vmul.f32 %v2070, %v1588
    %2080 = vrot.lane.b32.xlu0 %v2072, 96
    %v2081 = vpop.permute.xlu0 %2080
    %2082 = vrot.lane.b32.xlu0 %v2073, 96
    %v2083 = vpop.permute.xlu0 %2082
    %2084 = vrot.lane.b32.xlu0 %v2074, 96
    %v2085 = vpop.permute.xlu0 %2084
    %2086 = vrot.lane.b32.xlu0 %v2075, 96
    %v2087 = vpop.permute.xlu0 %2086
    %v2092 = vadd.f32 %v2048, %v2081
    %v2093 = vadd.f32 %v2049, %v2083
    %v2094 = vadd.f32 %v2050, %v2085
    %v2095 = vadd.f32 %v2051, %v2087
    %2097 = vset.pattern.permute.xlu0 0
    %2098 = vperm.xlu0 %2097, %v1996
    %v2099 = vpop.permute.xlu0 %2098
    %2102 = vset.pattern.permute.xlu0 0
    %2103 = vperm.xlu0 %2102, %v1997
    %v2104 = vpop.permute.xlu0 %2103
    %2107 = vset.pattern.permute.xlu0 0
    %2108 = vperm.xlu0 %2107, %v1998
    %v2109 = vpop.permute.xlu0 %2108
    %2112 = vset.pattern.permute.xlu0 0
    %2113 = vperm.xlu0 %2112, %v1999
    %v2114 = vpop.permute.xlu0 %2113
    %v2116 = vmul.f32 %v2092, %v2099
    %v2117 = vmul.f32 %v2093, %v2104
    %v2118 = vmul.f32 %v2094, %v2109
    %v2119 = vmul.f32 %v2095, %v2114
    %v2120 = vld [vmem:[%s18] sm:$0xff]
    %v2121 = vld [vmem:[%s18 + $0x8] sm:$0xff]
    %v2122 = vld [vmem:[%s18 + $0x10] sm:$0xff]
    %v2123 = vld [vmem:[%s18 + $0x18] sm:$0xff]
    %2125 = vset.pattern.permute.xlu0 0
    %2126 = vperm.xlu0 %2125, %v2120
    %v2127 = vpop.permute.xlu0 %2126
    %2130 = vset.pattern.permute.xlu0 0
    %2131 = vperm.xlu0 %2130, %v2121
    %v2132 = vpop.permute.xlu0 %2131
    %2135 = vset.pattern.permute.xlu0 0
    %2136 = vperm.xlu0 %2135, %v2122
    %v2137 = vpop.permute.xlu0 %2136
    %2140 = vset.pattern.permute.xlu0 0
    %2141 = vperm.xlu0 %2140, %v2123
    %v2142 = vpop.permute.xlu0 %2141
    %v2144 = vmul.f32 %v2116, %v2127
    %v2145 = vmul.f32 %v2117, %v2132
    %v2146 = vmul.f32 %v2118, %v2137
    %v2147 = vmul.f32 %v2119, %v2142
    %v2148 = vld [vmem:[%s19] sm:$0xff]
    %v2149 = vld [vmem:[%s19 + $0x8] sm:$0xff]
    %v2150 = vld [vmem:[%s19 + $0x10] sm:$0xff]
    %v2151 = vld [vmem:[%s19 + $0x18] sm:$0xff]
    %2153 = vset.pattern.permute.xlu0 0
    %2154 = vperm.xlu0 %2153, %v2148
    %v2155 = vpop.permute.xlu0 %2154
    %2158 = vset.pattern.permute.xlu0 0
    %2159 = vperm.xlu0 %2158, %v2149
    %v2160 = vpop.permute.xlu0 %2159
    %2163 = vset.pattern.permute.xlu0 0
    %2164 = vperm.xlu0 %2163, %v2150
    %v2165 = vpop.permute.xlu0 %2164
    %2168 = vset.pattern.permute.xlu0 0
    %2169 = vperm.xlu0 %2168, %v2151
    %v2170 = vpop.permute.xlu0 %2169
    %v2172 = vadd.f32 %v2144, %v2155
    %v2173 = vadd.f32 %v2145, %v2160
    %v2174 = vadd.f32 %v2146, %v2165
    %v2175 = vadd.f32 %v2147, %v2170
    %v2176 = vmax.f32 %v2172, 0.0
    %v2177 = vmax.f32 %v2173, 0.0
    %v2178 = vmax.f32 %v2174, 0.0
    %v2179 = vmax.f32 %v2175, 0.0
    %v2180 = vld [vmem:[%s6] sm:$0x3]
    %v2182 = vsel %vm869, %v2180, 0
    %2184 = vmatprep.subr.mxu0 0.0
    %2185 = vmatpush1.msra.mxu0 %v2176
    %2186 = vmatprep.subr.mxu0 0.0
    %2187 = vmatpush1.msra.mxu0 %v2177
    %2188 = vmatprep.subr.mxu0 0.0
    %2189 = vmatpush1.msra.mxu0 %v2178
    %2190 = vmatprep.subr.mxu0 0.0
    %2191 = vmatpush1.msra.mxu0 %v2179
    %2192 = vmatprep.subr.mxu0 0.0
    %2193 = vmatpush1.msra.mxu0 0.0
    %2194 = vmatprep.subr.mxu0 0.0
    %2195 = vmatpush1.msra.mxu0 0.0
    %2196 = vmatprep.subr.mxu0 0.0
    %2197 = vmatpush1.msra.mxu0 0.0
    %2198 = vmatprep.subr.mxu0 0.0
    %2199 = vmatpush1.msra.mxu0 0.0
    %2200 = vmatprep.subr.mxu0 0.0
    %2201 = vmatpush1.msra.mxu0 0.0
    %2202 = vmatprep.subr.mxu0 0.0
    %2203 = vmatpush1.msra.mxu0 0.0
    %2204 = vmatprep.subr.mxu0 0.0
    %2205 = vmatpush1.msra.mxu0 0.0
    %2206 = vmatprep.subr.mxu0 0.0
    %2207 = vmatpush1.msra.mxu0 0.0
    %2208 = vmatprep.subr.mxu0 0.0
    %2209 = vmatpush1.msra.mxu0 0.0
    %2210 = vmatprep.subr.mxu0 0.0
    %2211 = vmatpush1.msra.mxu0 0.0
    %2212 = vmatprep.subr.mxu0 0.0
    %2213 = vmatpush1.msra.mxu0 0.0
    %2214 = vmatprep.subr.mxu0 0.0
    %2215 = vmatpush1.msra.mxu0 0.0
    %2216 = vmatprep.subr.mxu0 0.0
    %2217 = vmatpush1.msra.mxu0 0.0
    %2218 = vmatprep.subr.mxu0 0.0
    %2219 = vmatpush1.msra.mxu0 0.0
    %2220 = vmatprep.subr.mxu0 0.0
    %2221 = vmatpush1.msra.mxu0 0.0
    %2222 = vmatprep.subr.mxu0 0.0
    %2223 = vmatpush1.msra.mxu0 0.0
    %2224 = vmatprep.subr.mxu0 0.0
    %2225 = vmatpush1.msra.mxu0 0.0
    %2226 = vmatprep.subr.mxu0 0.0
    %2227 = vmatpush1.msra.mxu0 0.0
    %2228 = vmatprep.subr.mxu0 0.0
    %2229 = vmatpush1.msra.mxu0 0.0
    %2230 = vmatprep.subr.mxu0 0.0
    %2231 = vmatpush1.msra.mxu0 0.0
    %2232 = vmatprep.subr.mxu0 0.0
    %2233 = vmatpush1.msra.mxu0 0.0
    %2234 = vmatprep.subr.mxu0 0.0
    %2235 = vmatpush1.msra.mxu0 0.0
    %2236 = vmatprep.subr.mxu0 0.0
    %2237 = vmatpush1.msra.mxu0 0.0
    %2238 = vmatprep.subr.mxu0 0.0
    %2239 = vmatpush1.msra.mxu0 0.0
    %2240 = vmatprep.subr.mxu0 0.0
    %2241 = vmatpush1.msra.mxu0 0.0
    %2242 = vmatprep.subr.mxu0 0.0
    %2243 = vmatpush1.msra.mxu0 0.0
    %2244 = vmatprep.subr.mxu0 0.0
    %2245 = vmatpush1.msra.mxu0 0.0
    %2246 = vmatprep.subr.mxu0 0.0
    %2247 = vmatpush1.msra.mxu0 0.0
    %2248 = vmatprep.mubr.f32.mxu0 0.0
    %2249 = vmatmul.mubr.f32.gmra.mrb[0].mxu0 %v2182
    %v2250 = vpop.f32.mrb[0].mxu0
    %v2251 = vadd.f32 0.0, %v2250
    %v2252 = vpop.f32.mrb[0].mxu0
    %2253 = vdwg.mxu0
    %v2254 = vld [vmem:[%s7] sm:$0xff]
    %v2255 = vld [vmem:[%s7 + $0x8] sm:$0xff]
    %v2256 = vld [vmem:[%s7 + $0x10] sm:$0xff]
    %v2257 = vld [vmem:[%s7 + $0x18] sm:$0xff]
    %s2258 = scalar_lea.vmem %s6, 2
    %v2259 = vld [vmem:[%s2258] sm:$0x3]
    %v2261 = vsel %vm869, %v2259, 0
    %2263 = vmatprep.subr.mxu0 0.0
    %2264 = vmatpush1.msra.mxu0 %v2176
    %2265 = vmatprep.subr.mxu0 0.0
    %2266 = vmatpush1.msra.mxu0 %v2177
    %2267 = vmatprep.subr.mxu0 0.0
    %2268 = vmatpush1.msra.mxu0 %v2178
    %2269 = vmatprep.subr.mxu0 0.0
    %2270 = vmatpush1.msra.mxu0 %v2179
    %2271 = vmatprep.subr.mxu0 0.0
    %2272 = vmatpush1.msra.mxu0 0.0
    %2273 = vmatprep.subr.mxu0 0.0
    %2274 = vmatpush1.msra.mxu0 0.0
    %2275 = vmatprep.subr.mxu0 0.0
    %2276 = vmatpush1.msra.mxu0 0.0
    %2277 = vmatprep.subr.mxu0 0.0
    %2278 = vmatpush1.msra.mxu0 0.0
    %2279 = vmatprep.subr.mxu0 0.0
    %2280 = vmatpush1.msra.mxu0 0.0
    %2281 = vmatprep.subr.mxu0 0.0
    %2282 = vmatpush1.msra.mxu0 0.0
    %2283 = vmatprep.subr.mxu0 0.0
    %2284 = vmatpush1.msra.mxu0 0.0
    %2285 = vmatprep.subr.mxu0 0.0
    %2286 = vmatpush1.msra.mxu0 0.0
    %2287 = vmatprep.subr.mxu0 0.0
    %2288 = vmatpush1.msra.mxu0 0.0
    %2289 = vmatprep.subr.mxu0 0.0
    %2290 = vmatpush1.msra.mxu0 0.0
    %2291 = vmatprep.subr.mxu0 0.0
    %2292 = vmatpush1.msra.mxu0 0.0
    %2293 = vmatprep.subr.mxu0 0.0
    %2294 = vmatpush1.msra.mxu0 0.0
    %2295 = vmatprep.subr.mxu0 0.0
    %2296 = vmatpush1.msra.mxu0 0.0
    %2297 = vmatprep.subr.mxu0 0.0
    %2298 = vmatpush1.msra.mxu0 0.0
    %2299 = vmatprep.subr.mxu0 0.0
    %2300 = vmatpush1.msra.mxu0 0.0
    %2301 = vmatprep.subr.mxu0 0.0
    %2302 = vmatpush1.msra.mxu0 0.0
    %2303 = vmatprep.subr.mxu0 0.0
    %2304 = vmatpush1.msra.mxu0 0.0
    %2305 = vmatprep.subr.mxu0 0.0
    %2306 = vmatpush1.msra.mxu0 0.0
    %2307 = vmatprep.subr.mxu0 0.0
    %2308 = vmatpush1.msra.mxu0 0.0
    %2309 = vmatprep.subr.mxu0 0.0
    %2310 = vmatpush1.msra.mxu0 0.0
    %2311 = vmatprep.subr.mxu0 0.0
    %2312 = vmatpush1.msra.mxu0 0.0
    %2313 = vmatprep.subr.mxu0 0.0
    %2314 = vmatpush1.msra.mxu0 0.0
    %2315 = vmatprep.subr.mxu0 0.0
    %2316 = vmatpush1.msra.mxu0 0.0
    %2317 = vmatprep.subr.mxu0 0.0
    %2318 = vmatpush1.msra.mxu0 0.0
    %2319 = vmatprep.subr.mxu0 0.0
    %2320 = vmatpush1.msra.mxu0 0.0
    %2321 = vmatprep.subr.mxu0 0.0
    %2322 = vmatpush1.msra.mxu0 0.0
    %2323 = vmatprep.subr.mxu0 0.0
    %2324 = vmatpush1.msra.mxu0 0.0
    %2325 = vmatprep.subr.mxu0 0.0
    %2326 = vmatpush1.msra.mxu0 0.0
    %2327 = vmatprep.mubr.f32.mxu0 0.0
    %2328 = vmatmul.mubr.f32.gmra.mrb[0].mxu0 %v2261
    %v2329 = vpop.f32.mrb[0].mxu0
    %v2330 = vadd.f32 0.0, %v2329
    %v2331 = vpop.f32.mrb[0].mxu0
    %2332 = vdwg.mxu0
    %s2333 = scalar_lea.vmem %s7, 32
    %v2334 = vld [vmem:[%s2333] sm:$0xff]
    %v2335 = vld [vmem:[%s2333 + $0x8] sm:$0xff]
    %v2336 = vld [vmem:[%s2333 + $0x10] sm:$0xff]
    %v2337 = vld [vmem:[%s2333 + $0x18] sm:$0xff]
    %v2339 = vsel %vm869, %v2330, 0
    %2341 = vmatprep.subr.mxu0 0.0
    %2342 = vmatpush1.msra.mxu0 %v2334
    %2343 = vmatprep.subr.mxu0 0.0
    %2344 = vmatpush1.msra.mxu0 %v2335
    %2345 = vmatprep.subr.mxu0 0.0
    %2346 = vmatpush1.msra.mxu0 %v2336
    %2347 = vmatprep.subr.mxu0 0.0
    %2348 = vmatpush1.msra.mxu0 %v2337
    %2349 = vmatprep.subr.mxu0 0.0
    %2350 = vmatpush1.msra.mxu0 0.0
    %2351 = vmatprep.subr.mxu0 0.0
    %2352 = vmatpush1.msra.mxu0 0.0
    %2353 = vmatprep.subr.mxu0 0.0
    %2354 = vmatpush1.msra.mxu0 0.0
    %2355 = vmatprep.subr.mxu0 0.0
    %2356 = vmatpush1.msra.mxu0 0.0
    %2357 = vmatprep.subr.mxu0 0.0
    %2358 = vmatpush1.msra.mxu0 0.0
    %2359 = vmatprep.subr.mxu0 0.0
    %2360 = vmatpush1.msra.mxu0 0.0
    %2361 = vmatprep.subr.mxu0 0.0
    %2362 = vmatpush1.msra.mxu0 0.0
    %2363 = vmatprep.subr.mxu0 0.0
    %2364 = vmatpush1.msra.mxu0 0.0
    %2365 = vmatprep.subr.mxu0 0.0
    %2366 = vmatpush1.msra.mxu0 0.0
    %2367 = vmatprep.subr.mxu0 0.0
    %2368 = vmatpush1.msra.mxu0 0.0
    %2369 = vmatprep.subr.mxu0 0.0
    %2370 = vmatpush1.msra.mxu0 0.0
    %2371 = vmatprep.subr.mxu0 0.0
    %2372 = vmatpush1.msra.mxu0 0.0
    %2373 = vmatprep.subr.mxu0 0.0
    %2374 = vmatpush1.msra.mxu0 0.0
    %2375 = vmatprep.subr.mxu0 0.0
    %2376 = vmatpush1.msra.mxu0 0.0
    %2377 = vmatprep.subr.mxu0 0.0
    %2378 = vmatpush1.msra.mxu0 0.0
    %2379 = vmatprep.subr.mxu0 0.0
    %2380 = vmatpush1.msra.mxu0 0.0
    %2381 = vmatprep.subr.mxu0 0.0
    %2382 = vmatpush1.msra.mxu0 0.0
    %2383 = vmatprep.subr.mxu0 0.0
    %2384 = vmatpush1.msra.mxu0 0.0
    %2385 = vmatprep.subr.mxu0 0.0
    %2386 = vmatpush1.msra.mxu0 0.0
    %2387 = vmatprep.subr.mxu0 0.0
    %2388 = vmatpush1.msra.mxu0 0.0
    %2389 = vmatprep.subr.mxu0 0.0
    %2390 = vmatpush1.msra.mxu0 0.0
    %2391 = vmatprep.subr.mxu0 0.0
    %2392 = vmatpush1.msra.mxu0 0.0
    %2393 = vmatprep.subr.mxu0 0.0
    %2394 = vmatpush1.msra.mxu0 0.0
    %2395 = vmatprep.subr.mxu0 0.0
    %2396 = vmatpush1.msra.mxu0 0.0
    %2397 = vmatprep.subr.mxu0 0.0
    %2398 = vmatpush1.msra.mxu0 0.0
    %2399 = vmatprep.subr.mxu0 0.0
    %2400 = vmatpush1.msra.mxu0 0.0
    %2401 = vmatprep.subr.mxu0 0.0
    %2402 = vmatpush1.msra.mxu0 0.0
    %2403 = vmatprep.subr.mxu0 0.0
    %2404 = vmatpush1.msra.mxu0 0.0
    %2405 = vmatprep.mubr.f32.mxu0 0.0
    %2406 = vmatmul.mubr.f32.gmra.mrb[0].mxu0 %v2339
    %v2407 = vpop.f32.mrb[0].mxu0
    %v2408 = vadd.f32 0.0, %v2407
    %v2409 = vpop.f32.mrb[0].mxu0
    %2410 = vdwg.mxu0
    %v2412 = vsel %vm869, %v2251, 0
    %2414 = vmatprep.subr.mxu0 0.0
    %2415 = vmatpush1.msra.mxu0 %v2254
    %2416 = vmatprep.subr.mxu0 0.0
    %2417 = vmatpush1.msra.mxu0 %v2255
    %2418 = vmatprep.subr.mxu0 0.0
    %2419 = vmatpush1.msra.mxu0 %v2256
    %2420 = vmatprep.subr.mxu0 0.0
    %2421 = vmatpush1.msra.mxu0 %v2257
    %2422 = vmatprep.subr.mxu0 0.0
    %2423 = vmatpush1.msra.mxu0 0.0
    %2424 = vmatprep.subr.mxu0 0.0
    %2425 = vmatpush1.msra.mxu0 0.0
    %2426 = vmatprep.subr.mxu0 0.0
    %2427 = vmatpush1.msra.mxu0 0.0
    %2428 = vmatprep.subr.mxu0 0.0
    %2429 = vmatpush1.msra.mxu0 0.0
    %2430 = vmatprep.subr.mxu0 0.0
    %2431 = vmatpush1.msra.mxu0 0.0
    %2432 = vmatprep.subr.mxu0 0.0
    %2433 = vmatpush1.msra.mxu0 0.0
    %2434 = vmatprep.subr.mxu0 0.0
    %2435 = vmatpush1.msra.mxu0 0.0
    %2436 = vmatprep.subr.mxu0 0.0
    %2437 = vmatpush1.msra.mxu0 0.0
    %2438 = vmatprep.subr.mxu0 0.0
    %2439 = vmatpush1.msra.mxu0 0.0
    %2440 = vmatprep.subr.mxu0 0.0
    %2441 = vmatpush1.msra.mxu0 0.0
    %2442 = vmatprep.subr.mxu0 0.0
    %2443 = vmatpush1.msra.mxu0 0.0
    %2444 = vmatprep.subr.mxu0 0.0
    %2445 = vmatpush1.msra.mxu0 0.0
    %2446 = vmatprep.subr.mxu0 0.0
    %2447 = vmatpush1.msra.mxu0 0.0
    %2448 = vmatprep.subr.mxu0 0.0
    %2449 = vmatpush1.msra.mxu0 0.0
    %2450 = vmatprep.subr.mxu0 0.0
    %2451 = vmatpush1.msra.mxu0 0.0
    %2452 = vmatprep.subr.mxu0 0.0
    %2453 = vmatpush1.msra.mxu0 0.0
    %2454 = vmatprep.subr.mxu0 0.0
    %2455 = vmatpush1.msra.mxu0 0.0
    %2456 = vmatprep.subr.mxu0 0.0
    %2457 = vmatpush1.msra.mxu0 0.0
    %2458 = vmatprep.subr.mxu0 0.0
    %2459 = vmatpush1.msra.mxu0 0.0
    %2460 = vmatprep.subr.mxu0 0.0
    %2461 = vmatpush1.msra.mxu0 0.0
    %2462 = vmatprep.subr.mxu0 0.0
    %2463 = vmatpush1.msra.mxu0 0.0
    %2464 = vmatprep.subr.mxu0 0.0
    %2465 = vmatpush1.msra.mxu0 0.0
    %2466 = vmatprep.subr.mxu0 0.0
    %2467 = vmatpush1.msra.mxu0 0.0
    %2468 = vmatprep.subr.mxu0 0.0
    %2469 = vmatpush1.msra.mxu0 0.0
    %2470 = vmatprep.subr.mxu0 0.0
    %2471 = vmatpush1.msra.mxu0 0.0
    %2472 = vmatprep.subr.mxu0 0.0
    %2473 = vmatpush1.msra.mxu0 0.0
    %2474 = vmatprep.subr.mxu0 0.0
    %2475 = vmatpush1.msra.mxu0 0.0
    %2476 = vmatprep.subr.mxu0 0.0
    %2477 = vmatpush1.msra.mxu0 0.0
    %2478 = vmatprep.mubr.f32.mxu0 0.0
    %2479 = vmatmul.mubr.f32.gmra.mrb[0].mxu0 %v2412
    %v2480 = vpop.f32.mrb[0].mxu0
    %v2481 = vadd.f32 %v2408, %v2480
    %v2482 = vpop.f32.mrb[0].mxu0
    %2483 = vdwg.mxu0
    %s2484 = scalar_lea.vmem %s6, 4
    %v2485 = vld [vmem:[%s2484] sm:$0x3]
    %v2487 = vsel %vm869, %v2485, 0
    %2489 = vmatprep.subr.mxu0 0.0
    %2490 = vmatpush1.msra.mxu0 %v2176
    %2491 = vmatprep.subr.mxu0 0.0
    %2492 = vmatpush1.msra.mxu0 %v2177
    %2493 = vmatprep.subr.mxu0 0.0
    %2494 = vmatpush1.msra.mxu0 %v2178
    %2495 = vmatprep.subr.mxu0 0.0
    %2496 = vmatpush1.msra.mxu0 %v2179
    %2497 = vmatprep.subr.mxu0 0.0
    %2498 = vmatpush1.msra.mxu0 0.0
    %2499 = vmatprep.subr.mxu0 0.0
    %2500 = vmatpush1.msra.mxu0 0.0
    %2501 = vmatprep.subr.mxu0 0.0
    %2502 = vmatpush1.msra.mxu0 0.0
    %2503 = vmatprep.subr.mxu0 0.0
    %2504 = vmatpush1.msra.mxu0 0.0
    %2505 = vmatprep.subr.mxu0 0.0
    %2506 = vmatpush1.msra.mxu0 0.0
    %2507 = vmatprep.subr.mxu0 0.0
    %2508 = vmatpush1.msra.mxu0 0.0
    %2509 = vmatprep.subr.mxu0 0.0
    %2510 = vmatpush1.msra.mxu0 0.0
    %2511 = vmatprep.subr.mxu0 0.0
    %2512 = vmatpush1.msra.mxu0 0.0
    %2513 = vmatprep.subr.mxu0 0.0
    %2514 = vmatpush1.msra.mxu0 0.0
    %2515 = vmatprep.subr.mxu0 0.0
    %2516 = vmatpush1.msra.mxu0 0.0
    %2517 = vmatprep.subr.mxu0 0.0
    %2518 = vmatpush1.msra.mxu0 0.0
    %2519 = vmatprep.subr.mxu0 0.0
    %2520 = vmatpush1.msra.mxu0 0.0
    %2521 = vmatprep.subr.mxu0 0.0
    %2522 = vmatpush1.msra.mxu0 0.0
    %2523 = vmatprep.subr.mxu0 0.0
    %2524 = vmatpush1.msra.mxu0 0.0
    %2525 = vmatprep.subr.mxu0 0.0
    %2526 = vmatpush1.msra.mxu0 0.0
    %2527 = vmatprep.subr.mxu0 0.0
    %2528 = vmatpush1.msra.mxu0 0.0
    %2529 = vmatprep.subr.mxu0 0.0
    %2530 = vmatpush1.msra.mxu0 0.0
    %2531 = vmatprep.subr.mxu0 0.0
    %2532 = vmatpush1.msra.mxu0 0.0
    %2533 = vmatprep.subr.mxu0 0.0
    %2534 = vmatpush1.msra.mxu0 0.0
    %2535 = vmatprep.subr.mxu0 0.0
    %2536 = vmatpush1.msra.mxu0 0.0
    %2537 = vmatprep.subr.mxu0 0.0
    %2538 = vmatpush1.msra.mxu0 0.0
    %2539 = vmatprep.subr.mxu0 0.0
    %2540 = vmatpush1.msra.mxu0 0.0
    %2541 = vmatprep.subr.mxu0 0.0
    %2542 = vmatpush1.msra.mxu0 0.0
    %2543 = vmatprep.subr.mxu0 0.0
    %2544 = vmatpush1.msra.mxu0 0.0
    %2545 = vmatprep.subr.mxu0 0.0
    %2546 = vmatpush1.msra.mxu0 0.0
    %2547 = vmatprep.subr.mxu0 0.0
    %2548 = vmatpush1.msra.mxu0 0.0
    %2549 = vmatprep.subr.mxu0 0.0
    %2550 = vmatpush1.msra.mxu0 0.0
    %2551 = vmatprep.subr.mxu0 0.0
    %2552 = vmatpush1.msra.mxu0 0.0
    %2553 = vmatprep.mubr.f32.mxu0 0.0
    %2554 = vmatmul.mubr.f32.gmra.mrb[0].mxu0 %v2487
    %v2555 = vpop.f32.mrb[0].mxu0
    %v2556 = vadd.f32 0.0, %v2555
    %v2557 = vpop.f32.mrb[0].mxu0
    %2558 = vdwg.mxu0
    %s2559 = scalar_lea.vmem %s7, 64
    %v2560 = vld [vmem:[%s2559] sm:$0xff]
    %v2561 = vld [vmem:[%s2559 + $0x8] sm:$0xff]
    %v2562 = vld [vmem:[%s2559 + $0x10] sm:$0xff]
    %v2563 = vld [vmem:[%s2559 + $0x18] sm:$0xff]
    %v2565 = vsel %vm869, %v2556, 0
    %2567 = vmatprep.subr.mxu0 0.0
    %2568 = vmatpush1.msra.mxu0 %v2560
    %2569 = vmatprep.subr.mxu0 0.0
    %2570 = vmatpush1.msra.mxu0 %v2561
    %2571 = vmatprep.subr.mxu0 0.0
    %2572 = vmatpush1.msra.mxu0 %v2562
    %2573 = vmatprep.subr.mxu0 0.0
    %2574 = vmatpush1.msra.mxu0 %v2563
    %2575 = vmatprep.subr.mxu0 0.0
    %2576 = vmatpush1.msra.mxu0 0.0
    %2577 = vmatprep.subr.mxu0 0.0
    %2578 = vmatpush1.msra.mxu0 0.0
    %2579 = vmatprep.subr.mxu0 0.0
    %2580 = vmatpush1.msra.mxu0 0.0
    %2581 = vmatprep.subr.mxu0 0.0
    %2582 = vmatpush1.msra.mxu0 0.0
    %2583 = vmatprep.subr.mxu0 0.0
    %2584 = vmatpush1.msra.mxu0 0.0
    %2585 = vmatprep.subr.mxu0 0.0
    %2586 = vmatpush1.msra.mxu0 0.0
    %2587 = vmatprep.subr.mxu0 0.0
    %2588 = vmatpush1.msra.mxu0 0.0
    %2589 = vmatprep.subr.mxu0 0.0
    %2590 = vmatpush1.msra.mxu0 0.0
    %2591 = vmatprep.subr.mxu0 0.0
    %2592 = vmatpush1.msra.mxu0 0.0
    %2593 = vmatprep.subr.mxu0 0.0
    %2594 = vmatpush1.msra.mxu0 0.0
    %2595 = vmatprep.subr.mxu0 0.0
    %2596 = vmatpush1.msra.mxu0 0.0
    %2597 = vmatprep.subr.mxu0 0.0
    %2598 = vmatpush1.msra.mxu0 0.0
    %2599 = vmatprep.subr.mxu0 0.0
    %2600 = vmatpush1.msra.mxu0 0.0
    %2601 = vmatprep.subr.mxu0 0.0
    %2602 = vmatpush1.msra.mxu0 0.0
    %2603 = vmatprep.subr.mxu0 0.0
    %2604 = vmatpush1.msra.mxu0 0.0
    %2605 = vmatprep.subr.mxu0 0.0
    %2606 = vmatpush1.msra.mxu0 0.0
    %2607 = vmatprep.subr.mxu0 0.0
    %2608 = vmatpush1.msra.mxu0 0.0
    %2609 = vmatprep.subr.mxu0 0.0
    %2610 = vmatpush1.msra.mxu0 0.0
    %2611 = vmatprep.subr.mxu0 0.0
    %2612 = vmatpush1.msra.mxu0 0.0
    %2613 = vmatprep.subr.mxu0 0.0
    %2614 = vmatpush1.msra.mxu0 0.0
    %2615 = vmatprep.subr.mxu0 0.0
    %2616 = vmatpush1.msra.mxu0 0.0
    %2617 = vmatprep.subr.mxu0 0.0
    %2618 = vmatpush1.msra.mxu0 0.0
    %2619 = vmatprep.subr.mxu0 0.0
    %2620 = vmatpush1.msra.mxu0 0.0
    %2621 = vmatprep.subr.mxu0 0.0
    %2622 = vmatpush1.msra.mxu0 0.0
    %2623 = vmatprep.subr.mxu0 0.0
    %2624 = vmatpush1.msra.mxu0 0.0
    %2625 = vmatprep.subr.mxu0 0.0
    %2626 = vmatpush1.msra.mxu0 0.0
    %2627 = vmatprep.subr.mxu0 0.0
    %2628 = vmatpush1.msra.mxu0 0.0
    %2629 = vmatprep.subr.mxu0 0.0
    %2630 = vmatpush1.msra.mxu0 0.0
    %2631 = vmatprep.mubr.f32.mxu0 0.0
    %2632 = vmatmul.mubr.f32.gmra.mrb[0].mxu0 %v2565
    %v2633 = vpop.f32.mrb[0].mxu0
    %v2634 = vadd.f32 0.0, %v2633
    %v2635 = vpop.f32.mrb[0].mxu0
    %2636 = vdwg.mxu0
    %v2637 = vadd.f32 %v2481, %v2634
    %s2638 = scalar_lea.vmem %s6, 6
    %v2639 = vld [vmem:[%s2638] sm:$0x3]
    %v2641 = vsel %vm869, %v2639, 0
    %2643 = vmatprep.subr.mxu0 0.0
    %2644 = vmatpush1.msra.mxu0 %v2176
    %2645 = vmatprep.subr.mxu0 0.0
    %2646 = vmatpush1.msra.mxu0 %v2177
    %2647 = vmatprep.subr.mxu0 0.0
    %2648 = vmatpush1.msra.mxu0 %v2178
    %2649 = vmatprep.subr.mxu0 0.0
    %2650 = vmatpush1.msra.mxu0 %v2179
    %2651 = vmatprep.subr.mxu0 0.0
    %2652 = vmatpush1.msra.mxu0 0.0
    %2653 = vmatprep.subr.mxu0 0.0
    %2654 = vmatpush1.msra.mxu0 0.0
    %2655 = vmatprep.subr.mxu0 0.0
    %2656 = vmatpush1.msra.mxu0 0.0
    %2657 = vmatprep.subr.mxu0 0.0
    %2658 = vmatpush1.msra.mxu0 0.0
    %2659 = vmatprep.subr.mxu0 0.0
    %2660 = vmatpush1.msra.mxu0 0.0
    %2661 = vmatprep.subr.mxu0 0.0
    %2662 = vmatpush1.msra.mxu0 0.0
    %2663 = vmatprep.subr.mxu0 0.0
    %2664 = vmatpush1.msra.mxu0 0.0
    %2665 = vmatprep.subr.mxu0 0.0
    %2666 = vmatpush1.msra.mxu0 0.0
    %2667 = vmatprep.subr.mxu0 0.0
    %2668 = vmatpush1.msra.mxu0 0.0
    %2669 = vmatprep.subr.mxu0 0.0
    %2670 = vmatpush1.msra.mxu0 0.0
    %2671 = vmatprep.subr.mxu0 0.0
    %2672 = vmatpush1.msra.mxu0 0.0
    %2673 = vmatprep.subr.mxu0 0.0
    %2674 = vmatpush1.msra.mxu0 0.0
    %2675 = vmatprep.subr.mxu0 0.0
    %2676 = vmatpush1.msra.mxu0 0.0
    %2677 = vmatprep.subr.mxu0 0.0
    %2678 = vmatpush1.msra.mxu0 0.0
    %2679 = vmatprep.subr.mxu0 0.0
    %2680 = vmatpush1.msra.mxu0 0.0
    %2681 = vmatprep.subr.mxu0 0.0
    %2682 = vmatpush1.msra.mxu0 0.0
    %2683 = vmatprep.subr.mxu0 0.0
    %2684 = vmatpush1.msra.mxu0 0.0
    %2685 = vmatprep.subr.mxu0 0.0
    %2686 = vmatpush1.msra.mxu0 0.0
    %2687 = vmatprep.subr.mxu0 0.0
    %2688 = vmatpush1.msra.mxu0 0.0
    %2689 = vmatprep.subr.mxu0 0.0
    %2690 = vmatpush1.msra.mxu0 0.0
    %2691 = vmatprep.subr.mxu0 0.0
    %2692 = vmatpush1.msra.mxu0 0.0
    %2693 = vmatprep.subr.mxu0 0.0
    %2694 = vmatpush1.msra.mxu0 0.0
    %2695 = vmatprep.subr.mxu0 0.0
    %2696 = vmatpush1.msra.mxu0 0.0
    %2697 = vmatprep.subr.mxu0 0.0
    %2698 = vmatpush1.msra.mxu0 0.0
    %2699 = vmatprep.subr.mxu0 0.0
    %2700 = vmatpush1.msra.mxu0 0.0
    %2701 = vmatprep.subr.mxu0 0.0
    %2702 = vmatpush1.msra.mxu0 0.0
    %2703 = vmatprep.subr.mxu0 0.0
    %2704 = vmatpush1.msra.mxu0 0.0
    %2705 = vmatprep.subr.mxu0 0.0
    %2706 = vmatpush1.msra.mxu0 0.0
    %2707 = vmatprep.mubr.f32.mxu0 0.0
    %2708 = vmatmul.mubr.f32.gmra.mrb[0].mxu0 %v2641
    %v2709 = vpop.f32.mrb[0].mxu0
    %v2710 = vadd.f32 0.0, %v2709
    %v2711 = vpop.f32.mrb[0].mxu0
    %2712 = vdwg.mxu0
    %s2713 = scalar_lea.vmem %s7, 96
    %v2714 = vld [vmem:[%s2713] sm:$0xff]
    %v2715 = vld [vmem:[%s2713 + $0x8] sm:$0xff]
    %v2716 = vld [vmem:[%s2713 + $0x10] sm:$0xff]
    %v2717 = vld [vmem:[%s2713 + $0x18] sm:$0xff]
    %v2719 = vsel %vm869, %v2710, 0
    %2721 = vmatprep.subr.mxu0 0.0
    %2722 = vmatpush1.msra.mxu0 %v2714
    %2723 = vmatprep.subr.mxu0 0.0
    %2724 = vmatpush1.msra.mxu0 %v2715
    %2725 = vmatprep.subr.mxu0 0.0
    %2726 = vmatpush1.msra.mxu0 %v2716
    %2727 = vmatprep.subr.mxu0 0.0
    %2728 = vmatpush1.msra.mxu0 %v2717
    %2729 = vmatprep.subr.mxu0 0.0
    %2730 = vmatpush1.msra.mxu0 0.0
    %2731 = vmatprep.subr.mxu0 0.0
    %2732 = vmatpush1.msra.mxu0 0.0
    %2733 = vmatprep.subr.mxu0 0.0
    %2734 = vmatpush1.msra.mxu0 0.0
    %2735 = vmatprep.subr.mxu0 0.0
    %2736 = vmatpush1.msra.mxu0 0.0
    %2737 = vmatprep.subr.mxu0 0.0
    %2738 = vmatpush1.msra.mxu0 0.0
    %2739 = vmatprep.subr.mxu0 0.0
    %2740 = vmatpush1.msra.mxu0 0.0
    %2741 = vmatprep.subr.mxu0 0.0
    %2742 = vmatpush1.msra.mxu0 0.0
    %2743 = vmatprep.subr.mxu0 0.0
    %2744 = vmatpush1.msra.mxu0 0.0
    %2745 = vmatprep.subr.mxu0 0.0
    %2746 = vmatpush1.msra.mxu0 0.0
    %2747 = vmatprep.subr.mxu0 0.0
    %2748 = vmatpush1.msra.mxu0 0.0
    %2749 = vmatprep.subr.mxu0 0.0
    %2750 = vmatpush1.msra.mxu0 0.0
    %2751 = vmatprep.subr.mxu0 0.0
    %2752 = vmatpush1.msra.mxu0 0.0
    %2753 = vmatprep.subr.mxu0 0.0
    %2754 = vmatpush1.msra.mxu0 0.0
    %2755 = vmatprep.subr.mxu0 0.0
    %2756 = vmatpush1.msra.mxu0 0.0
    %2757 = vmatprep.subr.mxu0 0.0
    %2758 = vmatpush1.msra.mxu0 0.0
    %2759 = vmatprep.subr.mxu0 0.0
    %2760 = vmatpush1.msra.mxu0 0.0
    %2761 = vmatprep.subr.mxu0 0.0
    %2762 = vmatpush1.msra.mxu0 0.0
    %2763 = vmatprep.subr.mxu0 0.0
    %2764 = vmatpush1.msra.mxu0 0.0
    %2765 = vmatprep.subr.mxu0 0.0
    %2766 = vmatpush1.msra.mxu0 0.0
    %2767 = vmatprep.subr.mxu0 0.0
    %2768 = vmatpush1.msra.mxu0 0.0
    %2769 = vmatprep.subr.mxu0 0.0
    %2770 = vmatpush1.msra.mxu0 0.0
    %2771 = vmatprep.subr.mxu0 0.0
    %2772 = vmatpush1.msra.mxu0 0.0
    %2773 = vmatprep.subr.mxu0 0.0
    %2774 = vmatpush1.msra.mxu0 0.0
    %2775 = vmatprep.subr.mxu0 0.0
    %2776 = vmatpush1.msra.mxu0 0.0
    %2777 = vmatprep.subr.mxu0 0.0
    %2778 = vmatpush1.msra.mxu0 0.0
    %2779 = vmatprep.subr.mxu0 0.0
    %2780 = vmatpush1.msra.mxu0 0.0
    %2781 = vmatprep.subr.mxu0 0.0
    %2782 = vmatpush1.msra.mxu0 0.0
    %2783 = vmatprep.subr.mxu0 0.0
    %2784 = vmatpush1.msra.mxu0 0.0
    %2785 = vmatprep.mubr.f32.mxu0 0.0
    %2786 = vmatmul.mubr.f32.gmra.mrb[0].mxu0 %v2719
    %v2787 = vpop.f32.mrb[0].mxu0
    %v2788 = vadd.f32 0.0, %v2787
    %v2789 = vpop.f32.mrb[0].mxu0
    %2790 = vdwg.mxu0
    %v2791 = vadd.f32 %v2637, %v2788
    %v2792 = vmul.f32 %v2791, 0.0625
    %v2793 = vld [vmem:[%s20] sm:$0x1]
    %v2795 = vlaneseq
    %v2796 = vshrl.u32 %v2795, 7
    %v2797 = vsub.s32 0, %v2796
    %v2798 = vrot.slane %v2793, %v2797
    %v2800 = vadd.f32 %v2792, %v2798
    %v2801 = vld [vmem:[%s21] sm:$0x1]
    %v2803 = vlaneseq
    %v2804 = vshrl.u32 %v2803, 7
    %v2805 = vsub.s32 0, %v2804
    %v2806 = vrot.slane %v2801, %v2805
    %v2808 = vmul.f32 %v2800, %v2806
    %v2809 = vld [vmem:[%s22] sm:$0x1]
    %v2811 = vlaneseq
    %v2812 = vshrl.u32 %v2811, 7
    %v2813 = vsub.s32 0, %v2812
    %v2814 = vrot.slane %v2809, %v2813
    %v2816 = vadd.f32 %v2808, %v2814
    %v2817 = vmax.f32 %v2816, 0.0
    %v2818 = vld [vmem:[%s23] sm:$0xff]
    %v2819 = vld [vmem:[%s23 + $0x8] sm:$0xff]
    %v2820 = vld [vmem:[%s23 + $0x10] sm:$0xff]
    %v2821 = vld [vmem:[%s23 + $0x18] sm:$0xff]
    %v2822 = vld [vmem:[%s24] sm:$0x1]
    %v2824 = vlaneseq
    %v2825 = vshrl.u32 %v2824, 7
    %v2826 = vsub.s32 0, %v2825
    %v2827 = vrot.slane %v2822, %v2826
    %v2830 = vsel %vm869, %v2817, 0
    %2832 = vmatprep.subr.mxu0 0.0
    %2833 = vmatpush1.msra.mxu0 %v2818
    %2834 = vmatprep.subr.mxu0 0.0
    %2835 = vmatpush1.msra.mxu0 %v2819
    %2836 = vmatprep.subr.mxu0 0.0
    %2837 = vmatpush1.msra.mxu0 %v2820
    %2838 = vmatprep.subr.mxu0 0.0
    %2839 = vmatpush1.msra.mxu0 %v2821
    %2840 = vmatprep.subr.mxu0 0.0
    %2841 = vmatpush1.msra.mxu0 0.0
    %2842 = vmatprep.subr.mxu0 0.0
    %2843 = vmatpush1.msra.mxu0 0.0
    %2844 = vmatprep.subr.mxu0 0.0
    %2845 = vmatpush1.msra.mxu0 0.0
    %2846 = vmatprep.subr.mxu0 0.0
    %2847 = vmatpush1.msra.mxu0 0.0
    %2848 = vmatprep.subr.mxu0 0.0
    %2849 = vmatpush1.msra.mxu0 0.0
    %2850 = vmatprep.subr.mxu0 0.0
    %2851 = vmatpush1.msra.mxu0 0.0
    %2852 = vmatprep.subr.mxu0 0.0
    %2853 = vmatpush1.msra.mxu0 0.0
    %2854 = vmatprep.subr.mxu0 0.0
    %2855 = vmatpush1.msra.mxu0 0.0
    %2856 = vmatprep.subr.mxu0 0.0
    %2857 = vmatpush1.msra.mxu0 0.0
    %2858 = vmatprep.subr.mxu0 0.0
    %2859 = vmatpush1.msra.mxu0 0.0
    %2860 = vmatprep.subr.mxu0 0.0
    %2861 = vmatpush1.msra.mxu0 0.0
    %2862 = vmatprep.subr.mxu0 0.0
    %2863 = vmatpush1.msra.mxu0 0.0
    %2864 = vmatprep.subr.mxu0 0.0
    %2865 = vmatpush1.msra.mxu0 0.0
    %2866 = vmatprep.subr.mxu0 0.0
    %2867 = vmatpush1.msra.mxu0 0.0
    %2868 = vmatprep.subr.mxu0 0.0
    %2869 = vmatpush1.msra.mxu0 0.0
    %2870 = vmatprep.subr.mxu0 0.0
    %2871 = vmatpush1.msra.mxu0 0.0
    %2872 = vmatprep.subr.mxu0 0.0
    %2873 = vmatpush1.msra.mxu0 0.0
    %2874 = vmatprep.subr.mxu0 0.0
    %2875 = vmatpush1.msra.mxu0 0.0
    %2876 = vmatprep.subr.mxu0 0.0
    %2877 = vmatpush1.msra.mxu0 0.0
    %2878 = vmatprep.subr.mxu0 0.0
    %2879 = vmatpush1.msra.mxu0 0.0
    %2880 = vmatprep.subr.mxu0 0.0
    %2881 = vmatpush1.msra.mxu0 0.0
    %2882 = vmatprep.subr.mxu0 0.0
    %2883 = vmatpush1.msra.mxu0 0.0
    %2884 = vmatprep.subr.mxu0 0.0
    %2885 = vmatpush1.msra.mxu0 0.0
    %2886 = vmatprep.subr.mxu0 0.0
    %2887 = vmatpush1.msra.mxu0 0.0
    %2888 = vmatprep.subr.mxu0 0.0
    %2889 = vmatpush1.msra.mxu0 0.0
    %2890 = vmatprep.subr.mxu0 0.0
    %2891 = vmatpush1.msra.mxu0 0.0
    %2892 = vmatprep.subr.mxu0 0.0
    %2893 = vmatpush1.msra.mxu0 0.0
    %2894 = vmatprep.subr.mxu0 0.0
    %2895 = vmatpush1.msra.mxu0 0.0
    %2896 = vmatprep.mubr.f32.mxu0 0.0
    %2897 = vmatmul.mubr.f32.gmra.mrb[0].mxu0 %v2830
    %v2898 = vpop.f32.mrb[0].mxu0
    %v2899 = vadd.f32 %v2827, %v2898
    %v2900 = vpop.f32.mrb[0].mxu0
    %2901 = vdwg.mxu0
    %vm2902 = vcmask 17408
    %2903 = vst.msk [vmem:[#allocation2] sm:$0x3] %vm2902, %v2899
    // Predicated region
    $region102: #{tpu_custom_call.1} parent=1 // pred_check
      _
    $region103: #{tpu_custom_call.1} parent=1 // pred_check_branch
      %2905 = sbr.rel (0) target = $region105
    $region104: #{tpu_custom_call.1} parent=1 // pred_region
      %s2907 = ssub.s32 32, 32
      %2908 = vsyncadd [#allocation3], %s2907
      %s2910 = sshll.u32 [#allocation2], 4
      %s2911 = int_to_ptr.vmem [resolvable:$true] %s2910
      %2913 = dma.vmem_to_hbm [thread:$0]  %s2911, 32, %s25, [#allocation3]
    $region105: #{tpu_custom_call.1} parent=1 // pred_fallthru
      _
    // Predicated region
    $region106: #{tpu_custom_call.1} parent=1 // pred_check
      _
    $region107: #{tpu_custom_call.1} parent=1 // pred_check_branch
      %2915 = sbr.rel (0) target = $region109
    $region108: #{tpu_custom_call.1} parent=1 // pred_region
      %2916 = dma.done [#allocation3], 32
    $region109: #{tpu_custom_call.1} parent=1 // pred_fallthru
      _
    %2917 = vsyncpa [#allocation3], 1

</llo_original>
